<compile_context>
chip_gen: v7x
topology: tpu7x:2x2x1
jax: 0.10.0
libtpu: 0.0.40
codegen_flags: <defaults>
</compile_context>

<pallas_src>
import jax
import jax.numpy as jnp
from jax import lax
from jax.experimental import pallas as pl
from jax.experimental.pallas import tpu as pltpu

BN_EPS = 1e-5
HIDDEN = 800
LANE = 128


def _round_up(n, m=LANE):
    return ((n + m - 1) // m) * m


def pendulum_encoder_kernel(x_ref,
                            w1_ref, g1_ref, be1_ref,
                            w2_ref, g2_ref, be2_ref,
                            w3_ref, b3_ref,
                            out_ref):
    """One microbatch per grid step.

    x_ref:   (B, Din)   f32  (cast to bf16 in-kernel)
    w1_ref:  (Din, Hp)  bf16 (Hp = 896; padded cols are zero)
    w2_ref:  (H, Hp)    bf16 (H = 800; contraction dim left unpadded)
    w3_ref:  (H, Op)    bf16
    g*/be*:  (1, Hp)    f32  BN affine (gamma=0 / beta=0 on padded lanes)
    b3_ref:  (1, Op)    f32
    out_ref: (B, Op)    f32
    """

    def bn_relu(h, g_ref, be_ref):
        # Training-mode BatchNorm1d: per-microbatch mean, biased batch variance,
        # fused into a single scale/shift. The preceding Linear bias is exactly
        # cancelled by the mean subtraction, so it was dropped at pack time.
        mean = jnp.mean(h, axis=0, keepdims=True)
        var = jnp.mean(jnp.square(h - mean), axis=0, keepdims=True)
        scale = g_ref[...] * lax.rsqrt(var + BN_EPS)
        shift = be_ref[...] - mean * scale
        return jnp.maximum(h * scale + shift, 0.0)          # ReLU

    # Layer 1: Linear (bias folded away by BN) -> BN -> ReLU.
    x = x_ref[...].astype(jnp.bfloat16)
    h = jnp.dot(x, w1_ref[...], preferred_element_type=jnp.float32)     # (B, Hp)
    h = bn_relu(h, g1_ref, be1_ref)

    # Layer 2: contraction dim kept at 800 -- the padded 96 lanes of h are exactly
    # zero and simply dropped (saves DMAing 96 zero rows of w2).
    h = jnp.dot(h[:, :HIDDEN].astype(jnp.bfloat16), w2_ref[...],
                preferred_element_type=jnp.float32)                     # (B, Hp)
    h = bn_relu(h, g2_ref, be2_ref)

    # Layer 3: plain Linear + bias, lane-dense (Op = 128*k) output store.
    out_ref[...] = (jnp.dot(h[:, :HIDDEN].astype(jnp.bfloat16), w3_ref[...],
                            preferred_element_type=jnp.float32) + b3_ref[...])


def init_params(key, dim_in, dim_out, hidden=HIDDEN):
    """Deterministic synthetic f32 parameters (shapes match the PyTorch module)."""
    ks = jax.random.split(key, 3)

    def lin(k, fan_in, fan_out):
        kw, kb = jax.random.split(k)
        bound = 1.0 / jnp.sqrt(float(fan_in))
        w = jax.random.uniform(kw, (fan_in, fan_out), jnp.float32, -bound, bound)
        b = jax.random.uniform(kb, (1, fan_out), jnp.float32, -bound, bound)
        return w, b

    w1, b1 = lin(ks[0], dim_in, hidden)
    w2, b2 = lin(ks[1], hidden, hidden)
    w3, b3 = lin(ks[2], hidden, 2 * dim_out)
    # BatchNorm affine params (gamma=1, beta=0 default init).
    g1 = jnp.ones((1, hidden), jnp.float32)
    be1 = jnp.zeros((1, hidden), jnp.float32)
    g2 = jnp.ones((1, hidden), jnp.float32)
    be2 = jnp.zeros((1, hidden), jnp.float32)
    return (w1, b1, g1, be1, w2, b2, g2, be2, w3, b3)


def pack_params(params, dim_in, dim_out, hidden=HIDDEN):
    """Pad only the lane (output-feature) dims to multiples of 128 and cast weights
    to bf16.  Contraction dims (dim_in, 800) stay unpadded.  b1/b2 are dropped
    (exactly cancelled by the following training-mode BatchNorm)."""
    w1, _b1, g1, be1, w2, _b2, g2, be2, w3, b3 = params
    h_p = _round_up(hidden)
    o_p = _round_up(2 * dim_out)

    def pad_cols(a, cols):
        return jnp.pad(a, ((0, 0), (0, cols - a.shape[1])))

    w1p = pad_cols(w1, h_p).astype(jnp.bfloat16)      # (dim_in, 896)
    w2p = pad_cols(w2, h_p).astype(jnp.bfloat16)      # (800, 896)
    w3p = pad_cols(w3, o_p).astype(jnp.bfloat16)      # (800, o_p)
    g1p, be1p = pad_cols(g1, h_p), pad_cols(be1, h_p)
    g2p, be2p = pad_cols(g2, h_p), pad_cols(be2, h_p)
    b3p = pad_cols(b3, o_p)
    return (w1p, g1p, be1p, w2p, g2p, be2p, w3p, b3p)


def pendulum_encoder(x, packed, dim_in, dim_out):
    """x: (num_microbatches, B, dim_in) f32.  Each microbatch gets its own BatchNorm
    batch statistics -- exactly one PyTorch forward() call per microbatch."""
    n_mb, B, _ = x.shape
    o_p = _round_up(2 * dim_out)
    w1p, g1p, be1p, w2p, g2p, be2p, w3p, b3p = packed

    const2 = lambda i: (0, 0)     # weights: same block every step -> DMA'd once
    in_specs = [
        pl.BlockSpec((pl.Squeezed(), B, dim_in), lambda i: (i, 0, 0)),   # x tile
        pl.BlockSpec(w1p.shape, const2),
        pl.BlockSpec(g1p.shape, const2),
        pl.BlockSpec(be1p.shape, const2),
        pl.BlockSpec(w2p.shape, const2),
        pl.BlockSpec(g2p.shape, const2),
        pl.BlockSpec(be2p.shape, const2),
        pl.BlockSpec(w3p.shape, const2),
        pl.BlockSpec(b3p.shape, const2),
    ]
    out_spec = pl.BlockSpec((pl.Squeezed(), B, o_p), lambda i: (i, 0, 0))

    out = pl.pallas_call(
        pendulum_encoder_kernel,
        out_shape=jax.ShapeDtypeStruct((n_mb, B, o_p), jnp.float32),
        grid=(n_mb,),
        in_specs=in_specs,
        out_specs=out_spec,
        compiler_params=pltpu.CompilerParams(
            dimension_semantics=("parallel",),   # shard microbatches across TCs (v7x)
            vmem_limit_bytes=16 << 20),          # working set ~4 MB -> safe everywhere
    )(x, w1p, g1p, be1p, w2p, g2p, be2p, w3p, b3p)

    # .chunk(2, dim=1) -> (mean, logvar); strip lane padding.
    return out[..., :dim_out], out[..., dim_out:2 * dim_out]


if __name__ == "__main__":
    N_MB, B, DIM_IN, DIM_OUT = 4, 8, 128, 8     # 4 microbatches of 8 samples

    key = jax.random.PRNGKey(0)
    kx, kp = jax.random.split(key)
    x = jax.random.normal(kx, (N_MB, B, DIM_IN), jnp.float32)

    params = init_params(kp, DIM_IN, DIM_OUT)
    packed = pack_params(params, DIM_IN, DIM_OUT)

    mean, logvar = pendulum_encoder(x, packed, DIM_IN, DIM_OUT)
    jax.block_until_ready((mean, logvar))
    assert mean.shape == (N_MB, B, DIM_OUT) and logvar.shape == (N_MB, B, DIM_OUT)

    # Pure-JAX reference with the original (unfused) PyTorch algebra -- biases b1/b2
    # included, standard BN formula, per-microbatch batch statistics -- using the same
    # bf16-quantized weights and bf16 matmul inputs so the comparison isolates kernel
    # correctness rather than quantization error.
    w1, b1, g1, be1, w2, b2, g2, be2, w3, b3 = params
    w1p, _, _, w2p, _, _, w3p, _ = packed
    w1q = w1p[:, :HIDDEN]
    w2q = w2p[:, :HIDDEN]
    w3q = w3p[:, :2 * DIM_OUT]

    def lin_ref(h, w_bf16, b):
        return jnp.dot(h.astype(jnp.bfloat16), w_bf16,
                       preferred_element_type=jnp.float32) + b

    def bn_relu_ref(h, g, be):
        m = h.mean(0, keepdims=True)
        v = jnp.square(h - m).mean(0, keepdims=True)
        return jnp.maximum((h - m) * lax.rsqrt(v + BN_EPS) * g + be, 0.0)

    refs = []
    for i in range(N_MB):
        h = bn_relu_ref(lin_ref(x[i], w1q, b1), g1, be1)
        h = bn_relu_ref(lin_ref(h, w2q, b2), g2, be2)
        refs.append(lin_ref(h, w3q, b3))
    ref = jnp.stack(refs)

    assert jnp.allclose(mean, ref[..., :DIM_OUT], atol=5e-3, rtol=5e-3)
    assert jnp.allclose(logvar, ref[..., DIM_OUT:], atol=5e-3, rtol=5e-3)

    print("KERNEL_OK")
</pallas_src>

<mosaic_0001>
module attributes {stable_mosaic.version = 11 : i64} {
  func.func @pendulum_encoder_kernel(%arg0: i32, %arg1: memref<1x8x128xf32, #tpu.memory_space<vmem>>, %arg2: memref<128x896xbf16, #tpu.memory_space<vmem>>, %arg3: memref<1x896xf32, #tpu.memory_space<vmem>>, %arg4: memref<1x896xf32, #tpu.memory_space<vmem>>, %arg5: memref<800x896xbf16, #tpu.memory_space<vmem>>, %arg6: memref<1x896xf32, #tpu.memory_space<vmem>>, %arg7: memref<1x896xf32, #tpu.memory_space<vmem>>, %arg8: memref<800x128xbf16, #tpu.memory_space<vmem>>, %arg9: memref<1x128xf32, #tpu.memory_space<vmem>>, %arg10: memref<1x8x128xf32, #tpu.memory_space<vmem>>) attributes {dimension_semantics = [#tpu.dimension_semantics<parallel>], iteration_bounds = array<i64: 4>, scalar_prefetch = 0 : i64, scratch_operands = 0 : i64, tpu.core_type = #tpu.core_type<tc>, window_params = [{transform_indices = @transform_0, window_bounds = array<i64: 1, 8, 128>}, {pipeline_mode = #tpu.pipeline_mode<synchronous>, transform_indices = @transform_1, window_bounds = array<i64: 128, 896>}, {pipeline_mode = #tpu.pipeline_mode<synchronous>, transform_indices = @transform_2, window_bounds = array<i64: 1, 896>}, {pipeline_mode = #tpu.pipeline_mode<synchronous>, transform_indices = @transform_3, window_bounds = array<i64: 1, 896>}, {pipeline_mode = #tpu.pipeline_mode<synchronous>, transform_indices = @transform_4, window_bounds = array<i64: 800, 896>}, {pipeline_mode = #tpu.pipeline_mode<synchronous>, transform_indices = @transform_5, window_bounds = array<i64: 1, 896>}, {pipeline_mode = #tpu.pipeline_mode<synchronous>, transform_indices = @transform_6, window_bounds = array<i64: 1, 896>}, {pipeline_mode = #tpu.pipeline_mode<synchronous>, transform_indices = @transform_7, window_bounds = array<i64: 800, 128>}, {pipeline_mode = #tpu.pipeline_mode<synchronous>, transform_indices = @transform_8, window_bounds = array<i64: 1, 128>}, {transform_indices = @transform_9, window_bounds = array<i64: 1, 8, 128>}]} {
    %c0 = arith.constant 0 : index
    %c0_0 = arith.constant 0 : index
    %c0_1 = arith.constant 0 : index
    %0 = vector.load %arg1[%c0, %c0_0, %c0_1] : memref<1x8x128xf32, #tpu.memory_space<vmem>>, vector<1x8x128xf32>
    %1 = vector.shape_cast %0 : vector<1x8x128xf32> to vector<8x128xf32>
    %2 = arith.truncf %1 : vector<8x128xf32> to vector<8x128xbf16>
    %c0_2 = arith.constant 0 : index
    %c0_3 = arith.constant 0 : index
    %3 = vector.load %arg2[%c0_2, %c0_3] : memref<128x896xbf16, #tpu.memory_space<vmem>>, vector<128x896xbf16>
    %cst = arith.constant dense<0.000000e+00> : vector<8x896xf32>
    %4 = tpu.matmul %2, %3, %cst {dimension_numbers = #tpu.dot_dimension_numbers<[1], [0], [0], [1], [0, 0, 1, 1], [], []>} : vector<8x128xbf16>, vector<128x896xbf16>, vector<8x896xf32> -> vector<8x896xf32>
    %cst_4 = arith.constant dense<0.000000e+00> : vector<896xf32>
    %5 = vector.multi_reduction <add>, %4, %cst_4 [0] : vector<8x896xf32> to vector<896xf32>
    %6 = vector.shape_cast %5 : vector<896xf32> to vector<1x896xf32>
    %cst_5 = arith.constant 8.000000e+00 : f32
    %7 = vector.broadcast %cst_5 : f32 to vector<1x896xf32>
    %8 = arith.divf %6, %7 : vector<1x896xf32>
    %9 = vector.broadcast %8 : vector<1x896xf32> to vector<8x896xf32>
    %10 = arith.subf %4, %9 : vector<8x896xf32>
    %11 = arith.mulf %10, %10 : vector<8x896xf32>
    %cst_6 = arith.constant dense<0.000000e+00> : vector<896xf32>
    %12 = vector.multi_reduction <add>, %11, %cst_6 [0] : vector<8x896xf32> to vector<896xf32>
    %13 = vector.shape_cast %12 : vector<896xf32> to vector<1x896xf32>
    %cst_7 = arith.constant 8.000000e+00 : f32
    %14 = vector.broadcast %cst_7 : f32 to vector<1x896xf32>
    %15 = arith.divf %13, %14 : vector<1x896xf32>
    %c0_8 = arith.constant 0 : index
    %c0_9 = arith.constant 0 : index
    %16 = vector.load %arg3[%c0_8, %c0_9] : memref<1x896xf32, #tpu.memory_space<vmem>>, vector<1x896xf32>
    %cst_10 = arith.constant 9.99999974E-6 : f32
    %17 = vector.broadcast %cst_10 : f32 to vector<1x896xf32>
    %18 = arith.addf %15, %17 : vector<1x896xf32>
    %19 = math.rsqrt %18 : vector<1x896xf32>
    %20 = arith.mulf %16, %19 : vector<1x896xf32>
    %c0_11 = arith.constant 0 : index
    %c0_12 = arith.constant 0 : index
    %21 = vector.load %arg4[%c0_11, %c0_12] : memref<1x896xf32, #tpu.memory_space<vmem>>, vector<1x896xf32>
    %22 = arith.mulf %8, %20 : vector<1x896xf32>
    %23 = arith.subf %21, %22 : vector<1x896xf32>
    %24 = vector.broadcast %20 : vector<1x896xf32> to vector<8x896xf32>
    %25 = arith.mulf %4, %24 : vector<8x896xf32>
    %26 = vector.broadcast %23 : vector<1x896xf32> to vector<8x896xf32>
    %27 = arith.addf %25, %26 : vector<8x896xf32>
    %cst_13 = arith.constant 0.000000e+00 : f32
    %28 = vector.broadcast %cst_13 : f32 to vector<8x896xf32>
    %29 = arith.maximumf %27, %28 : vector<8x896xf32>
    %30 = vector.extract_strided_slice %29 {offsets = [0, 0], sizes = [8, 800], strides = [1, 1]} : vector<8x896xf32> to vector<8x800xf32>
    %31 = arith.truncf %30 : vector<8x800xf32> to vector<8x800xbf16>
    %c0_14 = arith.constant 0 : index
    %c0_15 = arith.constant 0 : index
    %32 = vector.load %arg5[%c0_14, %c0_15] : memref<800x896xbf16, #tpu.memory_space<vmem>>, vector<800x896xbf16>
    %cst_16 = arith.constant dense<0.000000e+00> : vector<8x896xf32>
    %33 = tpu.matmul %31, %32, %cst_16 {dimension_numbers = #tpu.dot_dimension_numbers<[1], [0], [0], [1], [0, 0, 1, 1], [], []>} : vector<8x800xbf16>, vector<800x896xbf16>, vector<8x896xf32> -> vector<8x896xf32>
    %cst_17 = arith.constant dense<0.000000e+00> : vector<896xf32>
    %34 = vector.multi_reduction <add>, %33, %cst_17 [0] : vector<8x896xf32> to vector<896xf32>
    %35 = vector.shape_cast %34 : vector<896xf32> to vector<1x896xf32>
    %cst_18 = arith.constant 8.000000e+00 : f32
    %36 = vector.broadcast %cst_18 : f32 to vector<1x896xf32>
    %37 = arith.divf %35, %36 : vector<1x896xf32>
    %38 = vector.broadcast %37 : vector<1x896xf32> to vector<8x896xf32>
    %39 = arith.subf %33, %38 : vector<8x896xf32>
    %40 = arith.mulf %39, %39 : vector<8x896xf32>
    %cst_19 = arith.constant dense<0.000000e+00> : vector<896xf32>
    %41 = vector.multi_reduction <add>, %40, %cst_19 [0] : vector<8x896xf32> to vector<896xf32>
    %42 = vector.shape_cast %41 : vector<896xf32> to vector<1x896xf32>
    %cst_20 = arith.constant 8.000000e+00 : f32
    %43 = vector.broadcast %cst_20 : f32 to vector<1x896xf32>
    %44 = arith.divf %42, %43 : vector<1x896xf32>
    %c0_21 = arith.constant 0 : index
    %c0_22 = arith.constant 0 : index
    %45 = vector.load %arg6[%c0_21, %c0_22] : memref<1x896xf32, #tpu.memory_space<vmem>>, vector<1x896xf32>
    %cst_23 = arith.constant 9.99999974E-6 : f32
    %46 = vector.broadcast %cst_23 : f32 to vector<1x896xf32>
    %47 = arith.addf %44, %46 : vector<1x896xf32>
    %48 = math.rsqrt %47 : vector<1x896xf32>
    %49 = arith.mulf %45, %48 : vector<1x896xf32>
    %c0_24 = arith.constant 0 : index
    %c0_25 = arith.constant 0 : index
    %50 = vector.load %arg7[%c0_24, %c0_25] : memref<1x896xf32, #tpu.memory_space<vmem>>, vector<1x896xf32>
    %51 = arith.mulf %37, %49 : vector<1x896xf32>
    %52 = arith.subf %50, %51 : vector<1x896xf32>
    %53 = vector.broadcast %49 : vector<1x896xf32> to vector<8x896xf32>
    %54 = arith.mulf %33, %53 : vector<8x896xf32>
    %55 = vector.broadcast %52 : vector<1x896xf32> to vector<8x896xf32>
    %56 = arith.addf %54, %55 : vector<8x896xf32>
    %cst_26 = arith.constant 0.000000e+00 : f32
    %57 = vector.broadcast %cst_26 : f32 to vector<8x896xf32>
    %58 = arith.maximumf %56, %57 : vector<8x896xf32>
    %59 = vector.extract_strided_slice %58 {offsets = [0, 0], sizes = [8, 800], strides = [1, 1]} : vector<8x896xf32> to vector<8x800xf32>
    %60 = arith.truncf %59 : vector<8x800xf32> to vector<8x800xbf16>
    %c0_27 = arith.constant 0 : index
    %c0_28 = arith.constant 0 : index
    %61 = vector.load %arg8[%c0_27, %c0_28] : memref<800x128xbf16, #tpu.memory_space<vmem>>, vector<800x128xbf16>
    %cst_29 = arith.constant dense<0.000000e+00> : vector<8x128xf32>
    %62 = tpu.matmul %60, %61, %cst_29 {dimension_numbers = #tpu.dot_dimension_numbers<[1], [0], [0], [1], [0, 0, 1, 1], [], []>} : vector<8x800xbf16>, vector<800x128xbf16>, vector<8x128xf32> -> vector<8x128xf32>
    %c0_30 = arith.constant 0 : index
    %c0_31 = arith.constant 0 : index
    %63 = vector.load %arg9[%c0_30, %c0_31] : memref<1x128xf32, #tpu.memory_space<vmem>>, vector<1x128xf32>
    %64 = vector.broadcast %63 : vector<1x128xf32> to vector<8x128xf32>
    %65 = arith.addf %62, %64 : vector<8x128xf32>
    %c0_32 = arith.constant 0 : index
    %c0_33 = arith.constant 0 : index
    %c0_34 = arith.constant 0 : index
    %66 = vector.load %arg10[%c0_32, %c0_33, %c0_34] : memref<1x8x128xf32, #tpu.memory_space<vmem>>, vector<1x8x128xf32>
    %67 = vector.shape_cast %66 : vector<1x8x128xf32> to vector<8x128xf32>
    %68 = vector.shape_cast %65 : vector<8x128xf32> to vector<1x8x128xf32>
    tpu.vector_store %arg10[%c0_32, %c0_33, %c0_34], %68 {strides = array<i32>} : memref<1x8x128xf32, #tpu.memory_space<vmem>>, vector<1x8x128xf32>,
    return
  }
  func.func @transform_0(%arg0: i32) -> (i32, i32, i32) {
    %c0_i32 = arith.constant 0 : i32
    %c0_i32_0 = arith.constant 0 : i32
    %c0_i32_1 = arith.constant 0 : i32
    return %arg0, %c0_i32, %c0_i32_0 : i32, i32, i32
  }
  func.func @transform_1(%arg0: i32) -> (i32, i32) {
    %c0_i32 = arith.constant 0 : i32
    %c0_i32_0 = arith.constant 0 : i32
    %c0_i32_1 = arith.constant 0 : i32
    return %c0_i32, %c0_i32_0 : i32, i32
  }
  func.func @transform_2(%arg0: i32) -> (i32, i32) {
    %c0_i32 = arith.constant 0 : i32
    %c0_i32_0 = arith.constant 0 : i32
    %c0_i32_1 = arith.constant 0 : i32
    return %c0_i32, %c0_i32_0 : i32, i32
  }
  func.func @transform_3(%arg0: i32) -> (i32, i32) {
    %c0_i32 = arith.constant 0 : i32
    %c0_i32_0 = arith.constant 0 : i32
    %c0_i32_1 = arith.constant 0 : i32
    return %c0_i32, %c0_i32_0 : i32, i32
  }
  func.func @transform_4(%arg0: i32) -> (i32, i32) {
    %c0_i32 = arith.constant 0 : i32
    %c0_i32_0 = arith.constant 0 : i32
    %c0_i32_1 = arith.constant 0 : i32
    return %c0_i32, %c0_i32_0 : i32, i32
  }
  func.func @transform_5(%arg0: i32) -> (i32, i32) {
    %c0_i32 = arith.constant 0 : i32
    %c0_i32_0 = arith.constant 0 : i32
    %c0_i32_1 = arith.constant 0 : i32
    return %c0_i32, %c0_i32_0 : i32, i32
  }
  func.func @transform_6(%arg0: i32) -> (i32, i32) {
    %c0_i32 = arith.constant 0 : i32
    %c0_i32_0 = arith.constant 0 : i32
    %c0_i32_1 = arith.constant 0 : i32
    return %c0_i32, %c0_i32_0 : i32, i32
  }
  func.func @transform_7(%arg0: i32) -> (i32, i32) {
    %c0_i32 = arith.constant 0 : i32
    %c0_i32_0 = arith.constant 0 : i32
    %c0_i32_1 = arith.constant 0 : i32
    return %c0_i32, %c0_i32_0 : i32, i32
  }
  func.func @transform_8(%arg0: i32) -> (i32, i32) {
    %c0_i32 = arith.constant 0 : i32
    %c0_i32_0 = arith.constant 0 : i32
    %c0_i32_1 = arith.constant 0 : i32
    return %c0_i32, %c0_i32_0 : i32, i32
  }
  func.func @transform_9(%arg0: i32) -> (i32, i32, i32) {
    %c0_i32 = arith.constant 0 : i32
    %c0_i32_0 = arith.constant 0 : i32
    %c0_i32_1 = arith.constant 0 : i32
    return %arg0, %c0_i32, %c0_i32_0 : i32, i32, i32
  }
}

</mosaic_0001>

<llo_original>
// kernel: tpu_custom_call.1
$region0: #{tpu_custom_call.1}
  #allocation0 [shape = 'u32[]', space=smem, size = 0x4, offset = 0x4, fixed_abs, tag = 'smem constant byte address 0x4 - core index']
  #allocation1 [shape = 'u32[144,128]{1,0:T(1,128)}', space=vmem, size = 0x12000, scoped, tag = 'internal scratch']
  %s0 = inlined_call_operand.hbm [shape: f32[4,8,128], index: 0, kind: input, shape index: {}]
  %s1 = inlined_call_operand.hbm [shape: bf16[128,896], index: 1, kind: input, shape index: {}]
  %s2 = inlined_call_operand.hbm [shape: f32[1,896], index: 2, kind: input, shape index: {}]
  %s3 = inlined_call_operand.hbm [shape: f32[1,896], index: 3, kind: input, shape index: {}]
  %s4 = inlined_call_operand.hbm [shape: bf16[800,896], index: 4, kind: input, shape index: {}]
  %s5 = inlined_call_operand.hbm [shape: f32[1,896], index: 5, kind: input, shape index: {}]
  %s6 = inlined_call_operand.hbm [shape: f32[1,896], index: 6, kind: input, shape index: {}]
  %s7 = inlined_call_operand.hbm [shape: bf16[800,128], index: 7, kind: input, shape index: {}]
  %s8 = inlined_call_operand.hbm [shape: f32[1,128], index: 8, kind: input, shape index: {}]
  %s9 = inlined_call_operand.hbm [shape: f32[4,8,128], index: 9, kind: output, shape index: {}]
  %s10 = sld [smem:[#allocation0]]
  $region105: #{tpu_custom_call.1} parent=0
    _
  %s12 = ssub.s32 1, %s10
  %s13 = scalar_select 0, %s12, %s10
  $region1: #{tpu_custom_call.1} parent=0
    #allocation2 [shape = 'u8[8192]{0}', space=vmem, size = 0x2000, scoped, tag = 'input window, operand 0']
    #allocation3 [shape = 's32[2]{0}', space=sflag, size = 0x8, scoped, tag = 'scoped memory for tpu_custom_call.1']
    #allocation4 [shape = 's32[2]{0}', space=sflag, size = 0x8, scoped, tag = 'scoped memory for tpu_custom_call.1']
    #allocation5 [shape = 'u8[229376]{0}', space=vmem, size = 0x38000, scoped, tag = 'input window, operand 1, single buffered']
    #allocation6 [shape = 's32[1]{0}', space=sflag, size = 0x4, scoped, tag = 'scoped memory for tpu_custom_call.1']
    #allocation7 [shape = 'u8[3584]{0}', space=vmem, size = 0x1000, scoped, tag = 'input window, operand 2, single buffered']
    #allocation8 [shape = 'u8[3584]{0}', space=vmem, size = 0x1000, scoped, tag = 'input window, operand 3, single buffered']
    #allocation9 [shape = 's32[1]{0}', space=sflag, size = 0x4, scoped, tag = 'scoped memory for tpu_custom_call.1']
    #allocation10 [shape = 'u8[1433600]{0}', space=vmem, size = 0x15e000, scoped, tag = 'input window, operand 4, single buffered']
    #allocation11 [shape = 'u8[3584]{0}', space=vmem, size = 0x1000, scoped, tag = 'input window, operand 5, single buffered']
    #allocation12 [shape = 's32[1]{0}', space=sflag, size = 0x4, scoped, tag = 'scoped memory for tpu_custom_call.1']
    #allocation13 [shape = 'u8[3584]{0}', space=vmem, size = 0x1000, scoped, tag = 'input window, operand 6, single buffered']
    #allocation14 [shape = 'u8[204800]{0}', space=vmem, size = 0x32000, scoped, tag = 'input window, operand 7, single buffered']
    #allocation15 [shape = 's32[1]{0}', space=sflag, size = 0x4, scoped, tag = 'scoped memory for tpu_custom_call.1']
    #allocation16 [shape = 'u8[512]{0}', space=vmem, size = 0x400, scoped, tag = 'input window, operand 8, single buffered']
    #allocation17 [shape = 'u8[8192]{0}', space=vmem, size = 0x2000, scoped, tag = 'output window, operand 0']
    %14 = vsyncpa [#allocation3], 0
    %s15 = scalar_lea.sflag [#allocation3], 1
    %16 = vsyncpa %s15, 0
    %17 = vsyncpa [#allocation6], 0
    %18 = vsyncpa [#allocation9], 0
    %19 = vsyncpa [#allocation12], 0
    %20 = vsyncpa [#allocation15], 0
    %21 = vsyncpa [#allocation4], 0
    %s22 = scalar_lea.sflag [#allocation4], 1
    %23 = vsyncpa %s22, 0
    loop: start=0, step=1, limit=6
    $region2: #{tpu_custom_call.1} parent=1 // loop_pre_header
      _
    $region3: #{tpu_custom_call.1} parent=1 // loop_header
      %s25 = sphi 0, %s29
      %p26 = scmp.ge.s32.totalorder %s25, 6
      %s35 = sphi 0, %s37
      %s38 = sphi 0, %s35
      %s39 = sphi 0, %s38
      %s55 = sphi 0, %s39
      %s59 = sphi 0, %s59
      %s61 = sphi 0, %s59
      %s62 = sphi 0, %s61
      %s76 = sphi 0, %s62
      %s80 = sphi 0, %s80
      %s82 = sphi 0, %s80
      %s83 = sphi 0, %s82
      %s97 = sphi 0, %s83
      %s101 = sphi 0, %s101
      %s103 = sphi 0, %s101
      %s104 = sphi 0, %s103
      %s118 = sphi 0, %s104
      %s122 = sphi 0, %s122
      %s124 = sphi 0, %s122
      %s125 = sphi 0, %s124
      %s139 = sphi 0, %s125
      %s143 = sphi 0, %s143
      %s145 = sphi 0, %s143
      %s146 = sphi 0, %s145
      %s160 = sphi 0, %s146
      %s164 = sphi 0, %s164
      %s166 = sphi 0, %s164
      %s167 = sphi 0, %s166
      %s181 = sphi 0, %s167
      %s185 = sphi 0, %s185
      %s187 = sphi 0, %s185
      %s188 = sphi 0, %s187
      %s202 = sphi 0, %s188
      %s206 = sphi 0, %s206
      %s208 = sphi 0, %s206
      %s209 = sphi 0, %s208
      %s223 = sphi 0, %s209
      %s229 = sphi 0, %s231
      %s232 = sphi 0, %s229
      %s233 = sphi 0, %s232
      %s249 = sphi 0, %s233
    $region4: #{tpu_custom_call.1} parent=1 // loop_header_branch
      %28 = sbr.rel (%p26) target = $region8
    $region5: #{tpu_custom_call.1} parent=1 // loop_body
      %s30 = ssub.s32 %s25, 1
      %s31 = ssub.s32 %s25, 2
      %s32 = sadd.s32 %s25, 1
      %s33 = ssub.s32 %s25, %s32
      %p34 = scmp.eq.s32.totalorder %s33, 0
      %s36 = sadd.s32 %s35, 1
      %s37 = scalar_select %p34, %s35, %s36
      %p40 = pneg %p34
      %p41 = scmp.eq.s32.totalorder %s25, 3
      %p42 = por %p40, %p41
      %p43 = scmp.ne.s32.totalorder %s35, %s38
      %p44 = scmp.eq.s32.totalorder %s25, 0
      %p45 = por %p43, %p44
      %p46 = scmp.ne.s32.totalorder %s35, %s38
      %p47 = scmp.eq.s32.totalorder %s30, 3
      %p48 = por %p46, %p47
      %p49 = scmp.ne.s32.totalorder %s38, %s39
      %p50 = scmp.eq.s32.totalorder %s30, 0
      %p51 = por %p49, %p50
      %p52 = scmp.ne.s32.totalorder %s38, %s39
      %p53 = scmp.eq.s32.totalorder %s31, 3
      %p54 = por %p52, %p53
      %p56 = scmp.ne.s32.totalorder %s39, %s55
      %p57 = scmp.eq.s32.totalorder %s31, 0
      %p58 = por %p56, %p57
      %s60 = sadd.s32 %s59, 1
      %p63 = scmp.eq.s32.totalorder %s25, 3
      %p64 = scmp.ne.s32.totalorder %s59, %s61
      %p65 = scmp.eq.s32.totalorder %s25, 0
      %p66 = por %p64, %p65
      %p67 = scmp.ne.s32.totalorder %s59, %s61
      %p68 = scmp.eq.s32.totalorder %s30, 3
      %p69 = por %p67, %p68
      %p70 = scmp.ne.s32.totalorder %s61, %s62
      %p71 = scmp.eq.s32.totalorder %s30, 0
      %p72 = por %p70, %p71
      %p73 = scmp.ne.s32.totalorder %s61, %s62
      %p74 = scmp.eq.s32.totalorder %s31, 3
      %p75 = por %p73, %p74
      %p77 = scmp.ne.s32.totalorder %s62, %s76
      %p78 = scmp.eq.s32.totalorder %s31, 0
      %p79 = por %p77, %p78
      %s81 = sadd.s32 %s80, 1
      %p84 = scmp.eq.s32.totalorder %s25, 3
      %p85 = scmp.ne.s32.totalorder %s80, %s82
      %p86 = scmp.eq.s32.totalorder %s25, 0
      %p87 = por %p85, %p86
      %p88 = scmp.ne.s32.totalorder %s80, %s82
      %p89 = scmp.eq.s32.totalorder %s30, 3
      %p90 = por %p88, %p89
      %p91 = scmp.ne.s32.totalorder %s82, %s83
      %p92 = scmp.eq.s32.totalorder %s30, 0
      %p93 = por %p91, %p92
      %p94 = scmp.ne.s32.totalorder %s82, %s83
      %p95 = scmp.eq.s32.totalorder %s31, 3
      %p96 = por %p94, %p95
      %p98 = scmp.ne.s32.totalorder %s83, %s97
      %p99 = scmp.eq.s32.totalorder %s31, 0
      %p100 = por %p98, %p99
      %s102 = sadd.s32 %s101, 1
      %p105 = scmp.eq.s32.totalorder %s25, 3
      %p106 = scmp.ne.s32.totalorder %s101, %s103
      %p107 = scmp.eq.s32.totalorder %s25, 0
      %p108 = por %p106, %p107
      %p109 = scmp.ne.s32.totalorder %s101, %s103
      %p110 = scmp.eq.s32.totalorder %s30, 3
      %p111 = por %p109, %p110
      %p112 = scmp.ne.s32.totalorder %s103, %s104
      %p113 = scmp.eq.s32.totalorder %s30, 0
      %p114 = por %p112, %p113
      %p115 = scmp.ne.s32.totalorder %s103, %s104
      %p116 = scmp.eq.s32.totalorder %s31, 3
      %p117 = por %p115, %p116
      %p119 = scmp.ne.s32.totalorder %s104, %s118
      %p120 = scmp.eq.s32.totalorder %s31, 0
      %p121 = por %p119, %p120
      %s123 = sadd.s32 %s122, 1
      %p126 = scmp.eq.s32.totalorder %s25, 3
      %p127 = scmp.ne.s32.totalorder %s122, %s124
      %p128 = scmp.eq.s32.totalorder %s25, 0
      %p129 = por %p127, %p128
      %p130 = scmp.ne.s32.totalorder %s122, %s124
      %p131 = scmp.eq.s32.totalorder %s30, 3
      %p132 = por %p130, %p131
      %p133 = scmp.ne.s32.totalorder %s124, %s125
      %p134 = scmp.eq.s32.totalorder %s30, 0
      %p135 = por %p133, %p134
      %p136 = scmp.ne.s32.totalorder %s124, %s125
      %p137 = scmp.eq.s32.totalorder %s31, 3
      %p138 = por %p136, %p137
      %p140 = scmp.ne.s32.totalorder %s125, %s139
      %p141 = scmp.eq.s32.totalorder %s31, 0
      %p142 = por %p140, %p141
      %s144 = sadd.s32 %s143, 1
      %p147 = scmp.eq.s32.totalorder %s25, 3
      %p148 = scmp.ne.s32.totalorder %s143, %s145
      %p149 = scmp.eq.s32.totalorder %s25, 0
      %p150 = por %p148, %p149
      %p151 = scmp.ne.s32.totalorder %s143, %s145
      %p152 = scmp.eq.s32.totalorder %s30, 3
      %p153 = por %p151, %p152
      %p154 = scmp.ne.s32.totalorder %s145, %s146
      %p155 = scmp.eq.s32.totalorder %s30, 0
      %p156 = por %p154, %p155
      %p157 = scmp.ne.s32.totalorder %s145, %s146
      %p158 = scmp.eq.s32.totalorder %s31, 3
      %p159 = por %p157, %p158
      %p161 = scmp.ne.s32.totalorder %s146, %s160
      %p162 = scmp.eq.s32.totalorder %s31, 0
      %p163 = por %p161, %p162
      %s165 = sadd.s32 %s164, 1
      %p168 = scmp.eq.s32.totalorder %s25, 3
      %p169 = scmp.ne.s32.totalorder %s164, %s166
      %p170 = scmp.eq.s32.totalorder %s25, 0
      %p171 = por %p169, %p170
      %p172 = scmp.ne.s32.totalorder %s164, %s166
      %p173 = scmp.eq.s32.totalorder %s30, 3
      %p174 = por %p172, %p173
      %p175 = scmp.ne.s32.totalorder %s166, %s167
      %p176 = scmp.eq.s32.totalorder %s30, 0
      %p177 = por %p175, %p176
      %p178 = scmp.ne.s32.totalorder %s166, %s167
      %p179 = scmp.eq.s32.totalorder %s31, 3
      %p180 = por %p178, %p179
      %p182 = scmp.ne.s32.totalorder %s167, %s181
      %p183 = scmp.eq.s32.totalorder %s31, 0
      %p184 = por %p182, %p183
      %s186 = sadd.s32 %s185, 1
      %p189 = scmp.eq.s32.totalorder %s25, 3
      %p190 = scmp.ne.s32.totalorder %s185, %s187
      %p191 = scmp.eq.s32.totalorder %s25, 0
      %p192 = por %p190, %p191
      %p193 = scmp.ne.s32.totalorder %s185, %s187
      %p194 = scmp.eq.s32.totalorder %s30, 3
      %p195 = por %p193, %p194
      %p196 = scmp.ne.s32.totalorder %s187, %s188
      %p197 = scmp.eq.s32.totalorder %s30, 0
      %p198 = por %p196, %p197
      %p199 = scmp.ne.s32.totalorder %s187, %s188
      %p200 = scmp.eq.s32.totalorder %s31, 3
      %p201 = por %p199, %p200
      %p203 = scmp.ne.s32.totalorder %s188, %s202
      %p204 = scmp.eq.s32.totalorder %s31, 0
      %p205 = por %p203, %p204
      %s207 = sadd.s32 %s206, 1
      %p210 = scmp.eq.s32.totalorder %s25, 3
      %p211 = scmp.ne.s32.totalorder %s206, %s208
      %p212 = scmp.eq.s32.totalorder %s25, 0
      %p213 = por %p211, %p212
      %p214 = scmp.ne.s32.totalorder %s206, %s208
      %p215 = scmp.eq.s32.totalorder %s30, 3
      %p216 = por %p214, %p215
      %p217 = scmp.ne.s32.totalorder %s208, %s209
      %p218 = scmp.eq.s32.totalorder %s30, 0
      %p219 = por %p217, %p218
      %p220 = scmp.ne.s32.totalorder %s208, %s209
      %p221 = scmp.eq.s32.totalorder %s31, 3
      %p222 = por %p220, %p221
      %p224 = scmp.ne.s32.totalorder %s209, %s223
      %p225 = scmp.eq.s32.totalorder %s31, 0
      %p226 = por %p224, %p225
      %s227 = ssub.s32 %s25, %s32
      %p228 = scmp.eq.s32.totalorder %s227, 0
      %s230 = sadd.s32 %s229, 1
      %s231 = scalar_select %p228, %s229, %s230
      %p234 = pneg %p228
      %p235 = scmp.eq.s32.totalorder %s25, 3
      %p236 = por %p234, %p235
      %p237 = scmp.ne.s32.totalorder %s229, %s232
      %p238 = scmp.eq.s32.totalorder %s25, 0
      %p239 = por %p237, %p238
      %p240 = scmp.ne.s32.totalorder %s229, %s232
      %p241 = scmp.eq.s32.totalorder %s30, 3
      %p242 = por %p240, %p241
      %p243 = scmp.ne.s32.totalorder %s232, %s233
      %p244 = scmp.eq.s32.totalorder %s30, 0
      %p245 = por %p243, %p244
      %p246 = scmp.ne.s32.totalorder %s232, %s233
      %p247 = scmp.eq.s32.totalorder %s31, 3
      %p248 = por %p246, %p247
      %p250 = scmp.ne.s32.totalorder %s233, %s249
      %p251 = scmp.eq.s32.totalorder %s31, 0
      %p252 = por %p250, %p251
      %p253 = scmp.le.s32.totalorder 1, %s25
      %p254 = scmp.lt.s32.totalorder %s25, 5
      %p255 = pnand %p253, %p254
      %p256 = pneg %p255
      // Predicated region
      $region9: #{tpu_custom_call.1} parent=5 // pred_check
        _
      $region10: #{tpu_custom_call.1} parent=5 // pred_check_branch
        %258 = sbr.rel (%p255) target = $region12
      $region11: #{tpu_custom_call.1} parent=5 // pred_region
        %s259 = ssub.s32 %s25, 1
        // Predicated region
        $region13: #{tpu_custom_call.1} parent=11 // pred_check
          %p260 = pneg %p72
        $region14: #{tpu_custom_call.1} parent=11 // pred_check_branch
          %262 = sbr.rel (%p260) target = $region16
        $region15: #{tpu_custom_call.1} parent=11 // pred_region
          %s264 = ssub.s32 7168, 7168
          %265 = vsyncadd [#allocation6], %s264
          %s266 = sshll.u32 [#allocation5], 4
          %s267 = int_to_ptr.vmem [resolvable:$true] %s266
          %272 = dma.hbm_to_vmem [thread:$0]  %s1, 7168, %s267, [#allocation6], 448, 448, 28
        $region16: #{tpu_custom_call.1} parent=11 // pred_fallthru
          _
        // Predicated region
        $region17: #{tpu_custom_call.1} parent=11 // pred_check
          %p273 = pneg %p93
        $region18: #{tpu_custom_call.1} parent=11 // pred_check_branch
          %275 = sbr.rel (%p273) target = $region20
        $region19: #{tpu_custom_call.1} parent=11 // pred_region
          %s277 = ssub.s32 112, 112
          %278 = vsyncadd [#allocation6], %s277
          %s280 = sshll.u32 [#allocation7], 4
          %s281 = int_to_ptr.vmem [resolvable:$true] %s280
          %283 = dma.hbm_to_vmem [thread:$0]  %s2, 112, %s281, [#allocation6]
        $region20: #{tpu_custom_call.1} parent=11 // pred_fallthru
          _
        // Predicated region
        $region21: #{tpu_custom_call.1} parent=11 // pred_check
          %p284 = pneg %p114
        $region22: #{tpu_custom_call.1} parent=11 // pred_check_branch
          %286 = sbr.rel (%p284) target = $region24
        $region23: #{tpu_custom_call.1} parent=11 // pred_region
          %s288 = ssub.s32 112, 112
          %289 = vsyncadd [#allocation9], %s288
          %s291 = sshll.u32 [#allocation8], 4
          %s292 = int_to_ptr.vmem [resolvable:$true] %s291
          %294 = dma.hbm_to_vmem [thread:$0]  %s3, 112, %s292, [#allocation9]
        $region24: #{tpu_custom_call.1} parent=11 // pred_fallthru
          _
        // Predicated region
        $region25: #{tpu_custom_call.1} parent=11 // pred_check
          %p295 = pneg %p135
        $region26: #{tpu_custom_call.1} parent=11 // pred_check_branch
          %297 = sbr.rel (%p295) target = $region28
        $region27: #{tpu_custom_call.1} parent=11 // pred_region
          %s299 = ssub.s32 44800, 44800
          %300 = vsyncadd [#allocation9], %s299
          %s301 = sshll.u32 [#allocation10], 4
          %s302 = int_to_ptr.vmem [resolvable:$true] %s301
          %307 = dma.hbm_to_vmem [thread:$0]  %s4, 44800, %s302, [#allocation9], 448, 448, 28
        $region28: #{tpu_custom_call.1} parent=11 // pred_fallthru
          _
        // Predicated region
        $region29: #{tpu_custom_call.1} parent=11 // pred_check
          %p308 = pneg %p156
        $region30: #{tpu_custom_call.1} parent=11 // pred_check_branch
          %310 = sbr.rel (%p308) target = $region32
        $region31: #{tpu_custom_call.1} parent=11 // pred_region
          %s312 = ssub.s32 112, 112
          %313 = vsyncadd [#allocation12], %s312
          %s315 = sshll.u32 [#allocation11], 4
          %s316 = int_to_ptr.vmem [resolvable:$true] %s315
          %318 = dma.hbm_to_vmem [thread:$0]  %s5, 112, %s316, [#allocation12]
        $region32: #{tpu_custom_call.1} parent=11 // pred_fallthru
          _
        // Predicated region
        $region33: #{tpu_custom_call.1} parent=11 // pred_check
          %p319 = pneg %p177
        $region34: #{tpu_custom_call.1} parent=11 // pred_check_branch
          %321 = sbr.rel (%p319) target = $region36
        $region35: #{tpu_custom_call.1} parent=11 // pred_region
          %s323 = ssub.s32 112, 112
          %324 = vsyncadd [#allocation12], %s323
          %s326 = sshll.u32 [#allocation13], 4
          %s327 = int_to_ptr.vmem [resolvable:$true] %s326
          %329 = dma.hbm_to_vmem [thread:$0]  %s6, 112, %s327, [#allocation12]
        $region36: #{tpu_custom_call.1} parent=11 // pred_fallthru
          _
        // Predicated region
        $region37: #{tpu_custom_call.1} parent=11 // pred_check
          %p330 = pneg %p198
        $region38: #{tpu_custom_call.1} parent=11 // pred_check_branch
          %332 = sbr.rel (%p330) target = $region40
        $region39: #{tpu_custom_call.1} parent=11 // pred_region
          %s334 = ssub.s32 6400, 6400
          %335 = vsyncadd [#allocation15], %s334
          %s336 = sshll.u32 [#allocation14], 4
          %s337 = int_to_ptr.vmem [resolvable:$true] %s336
          %342 = dma.hbm_to_vmem [thread:$0]  %s7, 6400, %s337, [#allocation15], 64, 64, 4
        $region40: #{tpu_custom_call.1} parent=11 // pred_fallthru
          _
        // Predicated region
        $region41: #{tpu_custom_call.1} parent=11 // pred_check
          %p343 = pneg %p219
        $region42: #{tpu_custom_call.1} parent=11 // pred_check_branch
          %345 = sbr.rel (%p343) target = $region44
        $region43: #{tpu_custom_call.1} parent=11 // pred_region
          %s347 = ssub.s32 16, 16
          %348 = vsyncadd [#allocation15], %s347
          %s350 = sshll.u32 [#allocation16], 4
          %s351 = int_to_ptr.vmem [resolvable:$true] %s350
          %353 = dma.hbm_to_vmem [thread:$0]  %s8, 16, %s351, [#allocation15]
        $region44: #{tpu_custom_call.1} parent=11 // pred_fallthru
          _
      $region12: #{tpu_custom_call.1} parent=5 // pred_fallthru
        _
      %p354 = scmp.lt.s32.totalorder %s25, 4
      // Predicated region
      $region45: #{tpu_custom_call.1} parent=5 // pred_check
        %p355 = pneg %p354
      $region46: #{tpu_custom_call.1} parent=5 // pred_check_branch
        %357 = sbr.rel (%p355) target = $region48
      $region47: #{tpu_custom_call.1} parent=5 // pred_region
        // Predicated region
        $region49: #{tpu_custom_call.1} parent=47 // pred_check
          %p358 = pneg %p45
        $region50: #{tpu_custom_call.1} parent=47 // pred_check_branch
          %360 = sbr.rel (%p358) target = $region52
        $region51: #{tpu_custom_call.1} parent=47 // pred_region
          %s361 = sand.u32 %s35, 1
          %s362 = scalar_lea.sflag [#allocation3], %s361
          %s363 = sand.u32 %s35, 1
          %s364 = smul.addr %s363, 8
          %s365 = scalar_lea.vmem [#allocation2], %s364
          %s367 = ssub.s32 128, 128
          %368 = vsyncadd %s362, %s367
          %s369 = smul.addr %s25, 128
          %s370 = scalar_lea.hbm %s0, %s369
          %s372 = sshll.u32 %s365, 4
          %s373 = int_to_ptr.vmem [resolvable:$true] %s372
          %375 = dma.hbm_to_vmem [thread:$0]  %s370, 128, %s373, %s362
        $region52: #{tpu_custom_call.1} parent=47 // pred_fallthru
          _
      $region48: #{tpu_custom_call.1} parent=5 // pred_fallthru
        _
      %p376 = scmp.le.s32.totalorder 1, %s25
      %p377 = scmp.lt.s32.totalorder %s25, 5
      %p378 = pnand %p376, %p377
      %p379 = pneg %p378
      // Predicated region
      $region53: #{tpu_custom_call.1} parent=5 // pred_check
        _
      $region54: #{tpu_custom_call.1} parent=5 // pred_check_branch
        %381 = sbr.rel (%p378) target = $region56
      $region55: #{tpu_custom_call.1} parent=5 // pred_region
        %s382 = ssub.s32 %s25, 1
        %s383 = sand.u32 %s38, 1
        %s384 = scalar_lea.sflag [#allocation3], %s383
        %s385 = sand.u32 %s38, 1
        %s386 = smul.addr %s385, 8
        %s387 = scalar_lea.vmem [#allocation2], %s386
        // Predicated region
        $region57: #{tpu_custom_call.1} parent=55 // pred_check
          %p388 = pneg %p51
        $region58: #{tpu_custom_call.1} parent=55 // pred_check_branch
          %390 = sbr.rel (%p388) target = $region60
        $region59: #{tpu_custom_call.1} parent=55 // pred_region
          %391 = dma.done %s384, 128
        $region60: #{tpu_custom_call.1} parent=55 // pred_fallthru
          _
        // Predicated region
        $region61: #{tpu_custom_call.1} parent=55 // pred_check
          %p392 = pneg %p72
        $region62: #{tpu_custom_call.1} parent=55 // pred_check_branch
          %394 = sbr.rel (%p392) target = $region64
        $region63: #{tpu_custom_call.1} parent=55 // pred_region
          %395 = dma.done [#allocation6], 7168
        $region64: #{tpu_custom_call.1} parent=55 // pred_fallthru
          _
        // Predicated region
        $region65: #{tpu_custom_call.1} parent=55 // pred_check
          %p396 = pneg %p93
        $region66: #{tpu_custom_call.1} parent=55 // pred_check_branch
          %398 = sbr.rel (%p396) target = $region68
        $region67: #{tpu_custom_call.1} parent=55 // pred_region
          %399 = dma.done [#allocation6], 112
        $region68: #{tpu_custom_call.1} parent=55 // pred_fallthru
          _
        // Predicated region
        $region69: #{tpu_custom_call.1} parent=55 // pred_check
          %p400 = pneg %p114
        $region70: #{tpu_custom_call.1} parent=55 // pred_check_branch
          %402 = sbr.rel (%p400) target = $region72
        $region71: #{tpu_custom_call.1} parent=55 // pred_region
          %403 = dma.done [#allocation9], 112
        $region72: #{tpu_custom_call.1} parent=55 // pred_fallthru
          _
        // Predicated region
        $region73: #{tpu_custom_call.1} parent=55 // pred_check
          %p404 = pneg %p135
        $region74: #{tpu_custom_call.1} parent=55 // pred_check_branch
          %406 = sbr.rel (%p404) target = $region76
        $region75: #{tpu_custom_call.1} parent=55 // pred_region
          %407 = dma.done [#allocation9], 44800
        $region76: #{tpu_custom_call.1} parent=55 // pred_fallthru
          _
        // Predicated region
        $region77: #{tpu_custom_call.1} parent=55 // pred_check
          %p408 = pneg %p156
        $region78: #{tpu_custom_call.1} parent=55 // pred_check_branch
          %410 = sbr.rel (%p408) target = $region80
        $region79: #{tpu_custom_call.1} parent=55 // pred_region
          %411 = dma.done [#allocation12], 112
        $region80: #{tpu_custom_call.1} parent=55 // pred_fallthru
          _
        // Predicated region
        $region81: #{tpu_custom_call.1} parent=55 // pred_check
          %p412 = pneg %p177
        $region82: #{tpu_custom_call.1} parent=55 // pred_check_branch
          %414 = sbr.rel (%p412) target = $region84
        $region83: #{tpu_custom_call.1} parent=55 // pred_region
          %415 = dma.done [#allocation12], 112
        $region84: #{tpu_custom_call.1} parent=55 // pred_fallthru
          _
        // Predicated region
        $region85: #{tpu_custom_call.1} parent=55 // pred_check
          %p416 = pneg %p198
        $region86: #{tpu_custom_call.1} parent=55 // pred_check_branch
          %418 = sbr.rel (%p416) target = $region88
        $region87: #{tpu_custom_call.1} parent=55 // pred_region
          %419 = dma.done [#allocation15], 6400
        $region88: #{tpu_custom_call.1} parent=55 // pred_fallthru
          _
        // Predicated region
        $region89: #{tpu_custom_call.1} parent=55 // pred_check
          %p420 = pneg %p219
        $region90: #{tpu_custom_call.1} parent=55 // pred_check_branch
          %422 = sbr.rel (%p420) target = $region92
        $region91: #{tpu_custom_call.1} parent=55 // pred_region
          %423 = dma.done [#allocation15], 16
        $region92: #{tpu_custom_call.1} parent=55 // pred_fallthru
          _
        %s424 = sand.u32 %s38, 1
        %s425 = scalar_lea.sflag [#allocation3], %s424
        %s426 = sand.u32 %s38, 1
        %s427 = smul.addr %s426, 8
        %s428 = scalar_lea.vmem [#allocation2], %s427
        %p429 = pneg %p51
        %p430 = pneg %p48
        %p431 = pneg %p72
        %p432 = pneg %p69
        %p433 = pneg %p93
        %p434 = pneg %p90
        %p435 = pneg %p114
        %p436 = pneg %p111
        %p437 = pneg %p135
        %p438 = pneg %p132
        %p439 = pneg %p156
        %p440 = pneg %p153
        %p441 = pneg %p177
        %p442 = pneg %p174
        %p443 = pneg %p198
        %p444 = pneg %p195
        %p445 = pneg %p219
        %p446 = pneg %p216
        %p447 = pneg %p245
        %p448 = pneg %p242
        %s449 = sand.u32 %s232, 1
        %s450 = scalar_lea.sflag [#allocation4], %s449
        %s451 = sand.u32 %s232, 1
        %s452 = smul.addr %s451, 8
        %s453 = scalar_lea.vmem [#allocation17], %s452
        %v455 = vld [vmem:[%s387] sm:$0xff]
        %v456 = vpack.c.bf16 %v455, %v455
        %v457 = vld [vmem:[#allocation5] sm:$0xff]
        %v458 = vld [vmem:[#allocation5 + $0x8] sm:$0xff]
        %v459 = vld [vmem:[#allocation5 + $0x10] sm:$0xff]
        %v460 = vld [vmem:[#allocation5 + $0x18] sm:$0xf]
        %v461 = vld [vmem:[#allocation5 + $0x1c] sm:$0xff]
        %v462 = vld [vmem:[#allocation5 + $0x24] sm:$0xff]
        %v463 = vld [vmem:[#allocation5 + $0x2c] sm:$0xff]
        %v464 = vld [vmem:[#allocation5 + $0x34] sm:$0xf]
        %v465 = vld [vmem:[#allocation5 + $0x38] sm:$0xff]
        %v466 = vld [vmem:[#allocation5 + $0x40] sm:$0xff]
        %v467 = vld [vmem:[#allocation5 + $0x48] sm:$0xff]
        %v468 = vld [vmem:[#allocation5 + $0x50] sm:$0xf]
        %v469 = vld [vmem:[#allocation5 + $0x54] sm:$0xff]
        %v470 = vld [vmem:[#allocation5 + $0x5c] sm:$0xff]
        %v471 = vld [vmem:[#allocation5 + $0x64] sm:$0xff]
        %v472 = vld [vmem:[#allocation5 + $0x6c] sm:$0xf]
        %v473 = vld [vmem:[#allocation5 + $0x70] sm:$0xff]
        %v474 = vld [vmem:[#allocation5 + $0x78] sm:$0xff]
        %v475 = vld [vmem:[#allocation5 + $0x80] sm:$0xff]
        %v476 = vld [vmem:[#allocation5 + $0x88] sm:$0xf]
        %v477 = vld [vmem:[#allocation5 + $0x8c] sm:$0xff]
        %v478 = vld [vmem:[#allocation5 + $0x94] sm:$0xff]
        %v479 = vld [vmem:[#allocation5 + $0x9c] sm:$0xff]
        %v480 = vld [vmem:[#allocation5 + $0xa4] sm:$0xf]
        %v481 = vld [vmem:[#allocation5 + $0xa8] sm:$0xff]
        %v482 = vld [vmem:[#allocation5 + $0xb0] sm:$0xff]
        %v483 = vld [vmem:[#allocation5 + $0xb8] sm:$0xff]
        %v484 = vld [vmem:[#allocation5 + $0xc0] sm:$0xf]
        %v485 = vld [vmem:[#allocation5 + $0xc4] sm:$0xff]
        %v486 = vld [vmem:[#allocation5 + $0xcc] sm:$0xff]
        %v487 = vld [vmem:[#allocation5 + $0xd4] sm:$0xff]
        %v488 = vld [vmem:[#allocation5 + $0xdc] sm:$0xf]
        %v489 = vld [vmem:[#allocation5 + $0xe0] sm:$0xff]
        %v490 = vld [vmem:[#allocation5 + $0xe8] sm:$0xff]
        %v491 = vld [vmem:[#allocation5 + $0xf0] sm:$0xff]
        %v492 = vld [vmem:[#allocation5 + $0xf8] sm:$0xf]
        %v493 = vld [vmem:[#allocation5 + $0xfc] sm:$0xff]
        %v494 = vld [vmem:[#allocation5 + $0x104] sm:$0xff]
        %v495 = vld [vmem:[#allocation5 + $0x10c] sm:$0xff]
        %v496 = vld [vmem:[#allocation5 + $0x114] sm:$0xf]
        %v497 = vld [vmem:[#allocation5 + $0x118] sm:$0xff]
        %v498 = vld [vmem:[#allocation5 + $0x120] sm:$0xff]
        %v499 = vld [vmem:[#allocation5 + $0x128] sm:$0xff]
        %v500 = vld [vmem:[#allocation5 + $0x130] sm:$0xf]
        %v501 = vld [vmem:[#allocation5 + $0x134] sm:$0xff]
        %v502 = vld [vmem:[#allocation5 + $0x13c] sm:$0xff]
        %v503 = vld [vmem:[#allocation5 + $0x144] sm:$0xff]
        %v504 = vld [vmem:[#allocation5 + $0x14c] sm:$0xf]
        %v505 = vld [vmem:[#allocation5 + $0x150] sm:$0xff]
        %v506 = vld [vmem:[#allocation5 + $0x158] sm:$0xff]
        %v507 = vld [vmem:[#allocation5 + $0x160] sm:$0xff]
        %v508 = vld [vmem:[#allocation5 + $0x168] sm:$0xf]
        %v509 = vld [vmem:[#allocation5 + $0x16c] sm:$0xff]
        %v510 = vld [vmem:[#allocation5 + $0x174] sm:$0xff]
        %v511 = vld [vmem:[#allocation5 + $0x17c] sm:$0xff]
        %v512 = vld [vmem:[#allocation5 + $0x184] sm:$0xf]
        %v513 = vld [vmem:[#allocation5 + $0x188] sm:$0xff]
        %v514 = vld [vmem:[#allocation5 + $0x190] sm:$0xff]
        %v515 = vld [vmem:[#allocation5 + $0x198] sm:$0xff]
        %v516 = vld [vmem:[#allocation5 + $0x1a0] sm:$0xf]
        %v517 = vld [vmem:[#allocation5 + $0x1a4] sm:$0xff]
        %v518 = vld [vmem:[#allocation5 + $0x1ac] sm:$0xff]
        %v519 = vld [vmem:[#allocation5 + $0x1b4] sm:$0xff]
        %v520 = vld [vmem:[#allocation5 + $0x1bc] sm:$0xf]
        %v585 = vunpack.c.l.b16 %v457
        %v586 = vunpack.c.h.b16 %v457
        %v587 = vunpack.c.l.b16 %v458
        %v588 = vunpack.c.h.b16 %v458
        %v589 = vunpack.c.l.b16 %v459
        %v590 = vunpack.c.h.b16 %v459
        %v591 = vunpack.c.l.b16 %v460
        %v592 = vunpack.c.l.b16 %v461
        %v593 = vunpack.c.h.b16 %v461
        %v594 = vunpack.c.l.b16 %v462
        %v595 = vunpack.c.h.b16 %v462
        %v596 = vunpack.c.l.b16 %v463
        %v597 = vunpack.c.h.b16 %v463
        %v598 = vunpack.c.l.b16 %v464
        %v599 = vunpack.c.l.b16 %v465
        %v600 = vunpack.c.h.b16 %v465
        %v601 = vunpack.c.l.b16 %v466
        %v602 = vunpack.c.h.b16 %v466
        %v603 = vunpack.c.l.b16 %v467
        %v604 = vunpack.c.h.b16 %v467
        %v605 = vunpack.c.l.b16 %v468
        %v606 = vunpack.c.l.b16 %v469
        %v607 = vunpack.c.h.b16 %v469
        %v608 = vunpack.c.l.b16 %v470
        %v609 = vunpack.c.h.b16 %v470
        %v610 = vunpack.c.l.b16 %v471
        %v611 = vunpack.c.h.b16 %v471
        %v612 = vunpack.c.l.b16 %v472
        %v613 = vunpack.c.l.b16 %v473
        %v614 = vunpack.c.h.b16 %v473
        %v615 = vunpack.c.l.b16 %v474
        %v616 = vunpack.c.h.b16 %v474
        %v617 = vunpack.c.l.b16 %v475
        %v618 = vunpack.c.h.b16 %v475
        %v619 = vunpack.c.l.b16 %v476
        %v620 = vunpack.c.l.b16 %v477
        %v621 = vunpack.c.h.b16 %v477
        %v622 = vunpack.c.l.b16 %v478
        %v623 = vunpack.c.h.b16 %v478
        %v624 = vunpack.c.l.b16 %v479
        %v625 = vunpack.c.h.b16 %v479
        %v626 = vunpack.c.l.b16 %v480
        %v627 = vunpack.c.l.b16 %v481
        %v628 = vunpack.c.h.b16 %v481
        %v629 = vunpack.c.l.b16 %v482
        %v630 = vunpack.c.h.b16 %v482
        %v631 = vunpack.c.l.b16 %v483
        %v632 = vunpack.c.h.b16 %v483
        %v633 = vunpack.c.l.b16 %v484
        %v634 = vunpack.c.l.b16 %v485
        %v635 = vunpack.c.h.b16 %v485
        %v636 = vunpack.c.l.b16 %v486
        %v637 = vunpack.c.h.b16 %v486
        %v638 = vunpack.c.l.b16 %v487
        %v639 = vunpack.c.h.b16 %v487
        %v640 = vunpack.c.l.b16 %v488
        %v641 = vunpack.c.l.b16 %v489
        %v642 = vunpack.c.h.b16 %v489
        %v643 = vunpack.c.l.b16 %v490
        %v644 = vunpack.c.h.b16 %v490
        %v645 = vunpack.c.l.b16 %v491
        %v646 = vunpack.c.h.b16 %v491
        %v647 = vunpack.c.l.b16 %v492
        %v648 = vunpack.c.l.b16 %v493
        %v649 = vunpack.c.h.b16 %v493
        %v650 = vunpack.c.l.b16 %v494
        %v651 = vunpack.c.h.b16 %v494
        %v652 = vunpack.c.l.b16 %v495
        %v653 = vunpack.c.h.b16 %v495
        %v654 = vunpack.c.l.b16 %v496
        %v655 = vunpack.c.l.b16 %v497
        %v656 = vunpack.c.h.b16 %v497
        %v657 = vunpack.c.l.b16 %v498
        %v658 = vunpack.c.h.b16 %v498
        %v659 = vunpack.c.l.b16 %v499
        %v660 = vunpack.c.h.b16 %v499
        %v661 = vunpack.c.l.b16 %v500
        %v662 = vunpack.c.l.b16 %v501
        %v663 = vunpack.c.h.b16 %v501
        %v664 = vunpack.c.l.b16 %v502
        %v665 = vunpack.c.h.b16 %v502
        %v666 = vunpack.c.l.b16 %v503
        %v667 = vunpack.c.h.b16 %v503
        %v668 = vunpack.c.l.b16 %v504
        %v669 = vunpack.c.l.b16 %v505
        %v670 = vunpack.c.h.b16 %v505
        %v671 = vunpack.c.l.b16 %v506
        %v672 = vunpack.c.h.b16 %v506
        %v673 = vunpack.c.l.b16 %v507
        %v674 = vunpack.c.h.b16 %v507
        %v675 = vunpack.c.l.b16 %v508
        %v676 = vunpack.c.l.b16 %v509
        %v677 = vunpack.c.h.b16 %v509
        %v678 = vunpack.c.l.b16 %v510
        %v679 = vunpack.c.h.b16 %v510
        %v680 = vunpack.c.l.b16 %v511
        %v681 = vunpack.c.h.b16 %v511
        %v682 = vunpack.c.l.b16 %v512
        %v683 = vunpack.c.l.b16 %v513
        %v684 = vunpack.c.h.b16 %v513
        %v685 = vunpack.c.l.b16 %v514
        %v686 = vunpack.c.h.b16 %v514
        %v687 = vunpack.c.l.b16 %v515
        %v688 = vunpack.c.h.b16 %v515
        %v689 = vunpack.c.l.b16 %v516
        %v690 = vunpack.c.l.b16 %v517
        %v691 = vunpack.c.h.b16 %v517
        %v692 = vunpack.c.l.b16 %v518
        %v693 = vunpack.c.h.b16 %v518
        %v694 = vunpack.c.l.b16 %v519
        %v695 = vunpack.c.h.b16 %v519
        %v696 = vunpack.c.l.b16 %v520
        %v697 = vpack.c.b16 %v592, %v585
        %v698 = vpack.c.b16 %v593, %v586
        %v699 = vpack.c.b16 %v594, %v587
        %v700 = vpack.c.b16 %v595, %v588
        %v701 = vpack.c.b16 %v596, %v589
        %v702 = vpack.c.b16 %v597, %v590
        %v703 = vpack.c.b16 %v598, %v591
        %v704 = vpack.c.b16 %v606, %v599
        %v705 = vpack.c.b16 %v607, %v600
        %v706 = vpack.c.b16 %v608, %v601
        %v707 = vpack.c.b16 %v609, %v602
        %v708 = vpack.c.b16 %v610, %v603
        %v709 = vpack.c.b16 %v611, %v604
        %v710 = vpack.c.b16 %v612, %v605
        %v711 = vpack.c.b16 %v620, %v613
        %v712 = vpack.c.b16 %v621, %v614
        %v713 = vpack.c.b16 %v622, %v615
        %v714 = vpack.c.b16 %v623, %v616
        %v715 = vpack.c.b16 %v624, %v617
        %v716 = vpack.c.b16 %v625, %v618
        %v717 = vpack.c.b16 %v626, %v619
        %v718 = vpack.c.b16 %v634, %v627
        %v719 = vpack.c.b16 %v635, %v628
        %v720 = vpack.c.b16 %v636, %v629
        %v721 = vpack.c.b16 %v637, %v630
        %v722 = vpack.c.b16 %v638, %v631
        %v723 = vpack.c.b16 %v639, %v632
        %v724 = vpack.c.b16 %v640, %v633
        %v725 = vpack.c.b16 %v648, %v641
        %v726 = vpack.c.b16 %v649, %v642
        %v727 = vpack.c.b16 %v650, %v643
        %v728 = vpack.c.b16 %v651, %v644
        %v729 = vpack.c.b16 %v652, %v645
        %v730 = vpack.c.b16 %v653, %v646
        %v731 = vpack.c.b16 %v654, %v647
        %v732 = vpack.c.b16 %v662, %v655
        %v733 = vpack.c.b16 %v663, %v656
        %v734 = vpack.c.b16 %v664, %v657
        %v735 = vpack.c.b16 %v665, %v658
        %v736 = vpack.c.b16 %v666, %v659
        %v737 = vpack.c.b16 %v667, %v660
        %v738 = vpack.c.b16 %v668, %v661
        %v739 = vpack.c.b16 %v676, %v669
        %v740 = vpack.c.b16 %v677, %v670
        %v741 = vpack.c.b16 %v678, %v671
        %v742 = vpack.c.b16 %v679, %v672
        %v743 = vpack.c.b16 %v680, %v673
        %v744 = vpack.c.b16 %v681, %v674
        %v745 = vpack.c.b16 %v682, %v675
        %v746 = vpack.c.b16 %v690, %v683
        %v747 = vpack.c.b16 %v691, %v684
        %v748 = vpack.c.b16 %v692, %v685
        %v749 = vpack.c.b16 %v693, %v686
        %v750 = vpack.c.b16 %v694, %v687
        %v751 = vpack.c.b16 %v695, %v688
        %v752 = vpack.c.b16 %v696, %v689
        %809 = vmatprep.subr.bf16.mxu0 %v698
        %810 = vmatpush1.bf16.msra.mxu0 %v697
        %811 = vmatprep.subr.bf16.mxu0 %v705
        %812 = vmatpush1.bf16.msra.mxu0 %v704
        %813 = vmatprep.subr.bf16.mxu0 %v712
        %814 = vmatpush1.bf16.msra.mxu0 %v711
        %815 = vmatprep.subr.bf16.mxu0 %v719
        %816 = vmatpush1.bf16.msra.mxu0 %v718
        %817 = vmatprep.subr.bf16.mxu0 %v726
        %818 = vmatpush1.bf16.msra.mxu0 %v725
        %819 = vmatprep.subr.bf16.mxu0 %v733
        %820 = vmatpush1.bf16.msra.mxu0 %v732
        %821 = vmatprep.subr.bf16.mxu0 %v740
        %822 = vmatpush1.bf16.msra.mxu0 %v739
        %823 = vmatprep.subr.bf16.mxu0 %v747
        %824 = vmatpush1.bf16.msra.mxu0 %v746
        %825 = vmatprep.subr.bf16.mxu0 0
        %826 = vmatpush1.bf16.msra.mxu0 0
        %827 = vmatprep.subr.bf16.mxu0 0
        %828 = vmatpush1.bf16.msra.mxu0 0
        %829 = vmatprep.subr.bf16.mxu0 0
        %830 = vmatpush1.bf16.msra.mxu0 0
        %831 = vmatprep.subr.bf16.mxu0 0
        %832 = vmatpush1.bf16.msra.mxu0 0
        %833 = vmatprep.subr.bf16.mxu0 0
        %834 = vmatpush1.bf16.msra.mxu0 0
        %835 = vmatprep.subr.bf16.mxu0 0
        %836 = vmatpush1.bf16.msra.mxu0 0
        %837 = vmatprep.subr.bf16.mxu0 0
        %838 = vmatpush1.bf16.msra.mxu0 0
        %839 = vmatprep.subr.bf16.mxu0 0
        %840 = vmatpush1.bf16.msra.mxu0 0
        %841 = vmatprep.mubr.bf16.mxu0 0
        %842 = vmatmul.mubr.bf16.gmra.mrb[0].mxu0 %v456
        %v843 = vpop.f32.mrb[0].mxu0
        %v844 = vadd.f32 0.0, %v843
        %v845 = vpop.f32.mrb[0].mxu0
        %v846 = vadd.f32 0.0, %v845
        %v847 = vpop.f32.mrb[0].mxu0
        %v848 = vpop.f32.mrb[0].mxu0
        %849 = vdwg.mxu0
        %850 = vmatprep.subr.bf16.mxu0 %v700
        %851 = vmatpush1.bf16.msra.mxu0 %v699
        %852 = vmatprep.subr.bf16.mxu0 %v707
        %853 = vmatpush1.bf16.msra.mxu0 %v706
        %854 = vmatprep.subr.bf16.mxu0 %v714
        %855 = vmatpush1.bf16.msra.mxu0 %v713
        %856 = vmatprep.subr.bf16.mxu0 %v721
        %857 = vmatpush1.bf16.msra.mxu0 %v720
        %858 = vmatprep.subr.bf16.mxu0 %v728
        %859 = vmatpush1.bf16.msra.mxu0 %v727
        %860 = vmatprep.subr.bf16.mxu0 %v735
        %861 = vmatpush1.bf16.msra.mxu0 %v734
        %862 = vmatprep.subr.bf16.mxu0 %v742
        %863 = vmatpush1.bf16.msra.mxu0 %v741
        %864 = vmatprep.subr.bf16.mxu0 %v749
        %865 = vmatpush1.bf16.msra.mxu0 %v748
        %866 = vmatprep.subr.bf16.mxu0 0
        %867 = vmatpush1.bf16.msra.mxu0 0
        %868 = vmatprep.subr.bf16.mxu0 0
        %869 = vmatpush1.bf16.msra.mxu0 0
        %870 = vmatprep.subr.bf16.mxu0 0
        %871 = vmatpush1.bf16.msra.mxu0 0
        %872 = vmatprep.subr.bf16.mxu0 0
        %873 = vmatpush1.bf16.msra.mxu0 0
        %874 = vmatprep.subr.bf16.mxu0 0
        %875 = vmatpush1.bf16.msra.mxu0 0
        %876 = vmatprep.subr.bf16.mxu0 0
        %877 = vmatpush1.bf16.msra.mxu0 0
        %878 = vmatprep.subr.bf16.mxu0 0
        %879 = vmatpush1.bf16.msra.mxu0 0
        %880 = vmatprep.subr.bf16.mxu0 0
        %881 = vmatpush1.bf16.msra.mxu0 0
        %882 = vmatprep.mubr.bf16.mxu0 0
        %883 = vmatmul.mubr.bf16.gmra.mrb[0].mxu0 %v456
        %v884 = vpop.f32.mrb[0].mxu0
        %v885 = vadd.f32 0.0, %v884
        %v886 = vpop.f32.mrb[0].mxu0
        %v887 = vadd.f32 0.0, %v886
        %v888 = vpop.f32.mrb[0].mxu0
        %v889 = vpop.f32.mrb[0].mxu0
        %890 = vdwg.mxu0
        %891 = vmatprep.subr.bf16.mxu0 %v702
        %892 = vmatpush1.bf16.msra.mxu0 %v701
        %893 = vmatprep.subr.bf16.mxu0 %v709
        %894 = vmatpush1.bf16.msra.mxu0 %v708
        %895 = vmatprep.subr.bf16.mxu0 %v716
        %896 = vmatpush1.bf16.msra.mxu0 %v715
        %897 = vmatprep.subr.bf16.mxu0 %v723
        %898 = vmatpush1.bf16.msra.mxu0 %v722
        %899 = vmatprep.subr.bf16.mxu0 %v730
        %900 = vmatpush1.bf16.msra.mxu0 %v729
        %901 = vmatprep.subr.bf16.mxu0 %v737
        %902 = vmatpush1.bf16.msra.mxu0 %v736
        %903 = vmatprep.subr.bf16.mxu0 %v744
        %904 = vmatpush1.bf16.msra.mxu0 %v743
        %905 = vmatprep.subr.bf16.mxu0 %v751
        %906 = vmatpush1.bf16.msra.mxu0 %v750
        %907 = vmatprep.subr.bf16.mxu0 0
        %908 = vmatpush1.bf16.msra.mxu0 0
        %909 = vmatprep.subr.bf16.mxu0 0
        %910 = vmatpush1.bf16.msra.mxu0 0
        %911 = vmatprep.subr.bf16.mxu0 0
        %912 = vmatpush1.bf16.msra.mxu0 0
        %913 = vmatprep.subr.bf16.mxu0 0
        %914 = vmatpush1.bf16.msra.mxu0 0
        %915 = vmatprep.subr.bf16.mxu0 0
        %916 = vmatpush1.bf16.msra.mxu0 0
        %917 = vmatprep.subr.bf16.mxu0 0
        %918 = vmatpush1.bf16.msra.mxu0 0
        %919 = vmatprep.subr.bf16.mxu0 0
        %920 = vmatpush1.bf16.msra.mxu0 0
        %921 = vmatprep.subr.bf16.mxu0 0
        %922 = vmatpush1.bf16.msra.mxu0 0
        %923 = vmatprep.mubr.bf16.mxu0 0
        %924 = vmatmul.mubr.bf16.gmra.mrb[0].mxu0 %v456
        %v925 = vpop.f32.mrb[0].mxu0
        %v926 = vadd.f32 0.0, %v925
        %v927 = vpop.f32.mrb[0].mxu0
        %v928 = vadd.f32 0.0, %v927
        %v929 = vpop.f32.mrb[0].mxu0
        %v930 = vpop.f32.mrb[0].mxu0
        %931 = vdwg.mxu0
        %932 = vmatprep.subr.bf16.mxu0 0
        %933 = vmatpush1.bf16.msra.mxu0 %v703
        %934 = vmatprep.subr.bf16.mxu0 0
        %935 = vmatpush1.bf16.msra.mxu0 %v710
        %936 = vmatprep.subr.bf16.mxu0 0
        %937 = vmatpush1.bf16.msra.mxu0 %v717
        %938 = vmatprep.subr.bf16.mxu0 0
        %939 = vmatpush1.bf16.msra.mxu0 %v724
        %940 = vmatprep.subr.bf16.mxu0 0
        %941 = vmatpush1.bf16.msra.mxu0 %v731
        %942 = vmatprep.subr.bf16.mxu0 0
        %943 = vmatpush1.bf16.msra.mxu0 %v738
        %944 = vmatprep.subr.bf16.mxu0 0
        %945 = vmatpush1.bf16.msra.mxu0 %v745
        %946 = vmatprep.subr.bf16.mxu0 0
        %947 = vmatpush1.bf16.msra.mxu0 %v752
        %948 = vmatprep.subr.bf16.mxu0 0
        %949 = vmatpush1.bf16.msra.mxu0 0
        %950 = vmatprep.subr.bf16.mxu0 0
        %951 = vmatpush1.bf16.msra.mxu0 0
        %952 = vmatprep.subr.bf16.mxu0 0
        %953 = vmatpush1.bf16.msra.mxu0 0
        %954 = vmatprep.subr.bf16.mxu0 0
        %955 = vmatpush1.bf16.msra.mxu0 0
        %956 = vmatprep.subr.bf16.mxu0 0
        %957 = vmatpush1.bf16.msra.mxu0 0
        %958 = vmatprep.subr.bf16.mxu0 0
        %959 = vmatpush1.bf16.msra.mxu0 0
        %960 = vmatprep.subr.bf16.mxu0 0
        %961 = vmatpush1.bf16.msra.mxu0 0
        %962 = vmatprep.subr.bf16.mxu0 0
        %963 = vmatpush1.bf16.msra.mxu0 0
        %964 = vmatprep.mubr.bf16.mxu0 0
        %965 = vmatmul.mubr.bf16.gmra.mrb[0].mxu0 %v456
        %v966 = vpop.f32.mrb[0].mxu0
        %v967 = vadd.f32 0.0, %v966
        %v968 = vpop.f32.mrb[0].mxu0
        %v969 = vpop.f32.mrb[0].mxu0
        %v970 = vpop.f32.mrb[0].mxu0
        %971 = vdwg.mxu0
        %v972 = vrot.slane %v844, 4
        %v973 = vadd.f32 %v844, %v972
        %v974 = vrot.slane %v973, 2
        %v975 = vadd.f32 %v973, %v974
        %v976 = vrot.slane %v975, 1
        %v977 = vadd.f32 %v975, %v976
        %v978 = vrot.slane %v846, 4
        %v979 = vadd.f32 %v846, %v978
        %v980 = vrot.slane %v979, 2
        %v981 = vadd.f32 %v979, %v980
        %v982 = vrot.slane %v981, 1
        %v983 = vadd.f32 %v981, %v982
        %v984 = vrot.slane %v885, 4
        %v985 = vadd.f32 %v885, %v984
        %v986 = vrot.slane %v985, 2
        %v987 = vadd.f32 %v985, %v986
        %v988 = vrot.slane %v987, 1
        %v989 = vadd.f32 %v987, %v988
        %v990 = vrot.slane %v887, 4
        %v991 = vadd.f32 %v887, %v990
        %v992 = vrot.slane %v991, 2
        %v993 = vadd.f32 %v991, %v992
        %v994 = vrot.slane %v993, 1
        %v995 = vadd.f32 %v993, %v994
        %v996 = vrot.slane %v926, 4
        %v997 = vadd.f32 %v926, %v996
        %v998 = vrot.slane %v997, 2
        %v999 = vadd.f32 %v997, %v998
        %v1000 = vrot.slane %v999, 1
        %v1001 = vadd.f32 %v999, %v1000
        %v1002 = vrot.slane %v928, 4
        %v1003 = vadd.f32 %v928, %v1002
        %v1004 = vrot.slane %v1003, 2
        %v1005 = vadd.f32 %v1003, %v1004
        %v1006 = vrot.slane %v1005, 1
        %v1007 = vadd.f32 %v1005, %v1006
        %v1008 = vrot.slane %v967, 4
        %v1009 = vadd.f32 %v967, %v1008
        %v1010 = vrot.slane %v1009, 2
        %v1011 = vadd.f32 %v1009, %v1010
        %v1012 = vrot.slane %v1011, 1
        %v1013 = vadd.f32 %v1011, %v1012
        %v1014 = vrcp.pop 8.0
        %v1015 = vmul.f32 %v977, %v1014
        %v1016 = vmul.f32 %v983, %v1014
        %v1017 = vmul.f32 %v989, %v1014
        %v1018 = vmul.f32 %v995, %v1014
        %v1019 = vmul.f32 %v1001, %v1014
        %v1020 = vmul.f32 %v1007, %v1014
        %v1021 = vmul.f32 %v1013, %v1014
        %v1022 = vsub.f32 %v844, %v1015
        %v1023 = vsub.f32 %v846, %v1016
        %v1024 = vsub.f32 %v885, %v1017
        %v1025 = vsub.f32 %v887, %v1018
        %v1026 = vsub.f32 %v926, %v1019
        %v1027 = vsub.f32 %v928, %v1020
        %v1028 = vsub.f32 %v967, %v1021
        %v1029 = vmul.f32 %v1022, %v1022
        %v1030 = vmul.f32 %v1023, %v1023
        %v1031 = vmul.f32 %v1024, %v1024
        %v1032 = vmul.f32 %v1025, %v1025
        %v1033 = vmul.f32 %v1026, %v1026
        %v1034 = vmul.f32 %v1027, %v1027
        %v1035 = vmul.f32 %v1028, %v1028
        %v1036 = vrot.slane %v1029, 4
        %v1037 = vadd.f32 %v1029, %v1036
        %v1038 = vrot.slane %v1037, 2
        %v1039 = vadd.f32 %v1037, %v1038
        %v1040 = vrot.slane %v1039, 1
        %v1041 = vadd.f32 %v1039, %v1040
        %v1042 = vrot.slane %v1030, 4
        %v1043 = vadd.f32 %v1030, %v1042
        %v1044 = vrot.slane %v1043, 2
        %v1045 = vadd.f32 %v1043, %v1044
        %v1046 = vrot.slane %v1045, 1
        %v1047 = vadd.f32 %v1045, %v1046
        %v1048 = vrot.slane %v1031, 4
        %v1049 = vadd.f32 %v1031, %v1048
        %v1050 = vrot.slane %v1049, 2
        %v1051 = vadd.f32 %v1049, %v1050
        %v1052 = vrot.slane %v1051, 1
        %v1053 = vadd.f32 %v1051, %v1052
        %v1054 = vrot.slane %v1032, 4
        %v1055 = vadd.f32 %v1032, %v1054
        %v1056 = vrot.slane %v1055, 2
        %v1057 = vadd.f32 %v1055, %v1056
        %v1058 = vrot.slane %v1057, 1
        %v1059 = vadd.f32 %v1057, %v1058
        %v1060 = vrot.slane %v1033, 4
        %v1061 = vadd.f32 %v1033, %v1060
        %v1062 = vrot.slane %v1061, 2
        %v1063 = vadd.f32 %v1061, %v1062
        %v1064 = vrot.slane %v1063, 1
        %v1065 = vadd.f32 %v1063, %v1064
        %v1066 = vrot.slane %v1034, 4
        %v1067 = vadd.f32 %v1034, %v1066
        %v1068 = vrot.slane %v1067, 2
        %v1069 = vadd.f32 %v1067, %v1068
        %v1070 = vrot.slane %v1069, 1
        %v1071 = vadd.f32 %v1069, %v1070
        %v1072 = vrot.slane %v1035, 4
        %v1073 = vadd.f32 %v1035, %v1072
        %v1074 = vrot.slane %v1073, 2
        %v1075 = vadd.f32 %v1073, %v1074
        %v1076 = vrot.slane %v1075, 1
        %v1077 = vadd.f32 %v1075, %v1076
        %v1078 = vmul.f32 %v1041, %v1014
        %v1079 = vmul.f32 %v1047, %v1014
        %v1080 = vmul.f32 %v1053, %v1014
        %v1081 = vmul.f32 %v1059, %v1014
        %v1082 = vmul.f32 %v1065, %v1014
        %v1083 = vmul.f32 %v1071, %v1014
        %v1084 = vmul.f32 %v1077, %v1014
        %v1085 = vld [vmem:[#allocation7] sm:$0xff]
        %v1086 = vadd.f32 %v1078, 1e-05
        %v1087 = vadd.f32 %v1079, 1e-05
        %v1088 = vadd.f32 %v1080, 1e-05
        %v1089 = vadd.f32 %v1081, 1e-05
        %v1090 = vadd.f32 %v1082, 1e-05
        %v1091 = vadd.f32 %v1083, 1e-05
        %v1092 = vadd.f32 %v1084, 1e-05
        %v1093 = vrsqrt.pop %v1086
        %v1094 = vrsqrt.pop %v1087
        %v1095 = vrsqrt.pop %v1088
        %v1096 = vrsqrt.pop %v1089
        %v1097 = vrsqrt.pop %v1090
        %v1098 = vrsqrt.pop %v1091
        %v1099 = vrsqrt.pop %v1092
        %v1107 = vcombine.low %v1093, %v1094
        %v1108 = vcombine.low %v1095, %v1096
        %v1109 = vcombine.low %v1097, %v1098
        %v1111 = vunpack.c.l.s4 1966171168
        %v1112 = vunpack.c.0.s8 %v1111
        %v1113 = vlaneseq
        %v1114 = vshrl.u32 %v1113, 7
        %v1115 = vsub.s32 %v1112, %v1114
        %v1116 = vrot.slane %v1107, %v1115
        %v1118 = vunpack.c.l.s4 1966171168
        %v1119 = vunpack.c.0.s8 %v1118
        %v1120 = vlaneseq
        %v1121 = vshrl.u32 %v1120, 7
        %v1122 = vsub.s32 %v1119, %v1121
        %v1123 = vrot.slane %v1108, %v1122
        %v1125 = vunpack.c.l.s4 1966171168
        %v1126 = vunpack.c.0.s8 %v1125
        %v1127 = vlaneseq
        %v1128 = vshrl.u32 %v1127, 7
        %v1129 = vsub.s32 %v1126, %v1128
        %v1130 = vrot.slane %v1109, %v1129
        %v1132 = vunpack.c.l.s4 1966171168
        %v1133 = vunpack.c.0.s8 %v1132
        %v1134 = vlaneseq
        %v1135 = vshrl.u32 %v1134, 7
        %v1136 = vsub.s32 %v1133, %v1135
        %v1137 = vrot.slane %v1099, %v1136
        %v1138 = vcombine.low %v1116, %v1123
        %v1139 = vcombine.low %v1130, %v1137
        %v1141 = vunpack.c.l.s4 1966171168
        %v1142 = vunpack.c.0.s8 %v1141
        %v1143 = vlaneseq
        %v1144 = vshrl.u32 %v1143, 7
        %v1145 = vsub.s32 %v1142, %v1144
        %v1146 = vrot.slane %v1138, %v1145
        %v1148 = vunpack.c.l.s4 1966171168
        %v1149 = vunpack.c.0.s8 %v1148
        %v1150 = vlaneseq
        %v1151 = vshrl.u32 %v1150, 7
        %v1152 = vsub.s32 %v1149, %v1151
        %v1153 = vrot.slane %v1139, %v1152
        %v1154 = vcombine.low %v1146, %v1153
        %v1156 = vmul.f32 %v1085, %v1154
        %v1157 = vld [vmem:[#allocation8] sm:$0xff]
        %v1159 = vlaneseq
        %v1160 = vshrl.u32 %v1159, 7
        %v1161 = vsub.s32 0, %v1160
        %v1162 = vrot.slane %v1156, %v1161
        %v1163 = vlaneseq
        %v1164 = vshrl.u32 %v1163, 7
        %v1165 = vsub.s32 1, %v1164
        %v1166 = vrot.slane %v1156, %v1165
        %v1167 = vlaneseq
        %v1168 = vshrl.u32 %v1167, 7
        %v1169 = vsub.s32 2, %v1168
        %v1170 = vrot.slane %v1156, %v1169
        %v1171 = vlaneseq
        %v1172 = vshrl.u32 %v1171, 7
        %v1173 = vsub.s32 3, %v1172
        %v1174 = vrot.slane %v1156, %v1173
        %v1175 = vlaneseq
        %v1176 = vshrl.u32 %v1175, 7
        %v1177 = vsub.s32 4, %v1176
        %v1178 = vrot.slane %v1156, %v1177
        %v1179 = vlaneseq
        %v1180 = vshrl.u32 %v1179, 7
        %v1181 = vsub.s32 5, %v1180
        %v1182 = vrot.slane %v1156, %v1181
        %v1183 = vlaneseq
        %v1184 = vshrl.u32 %v1183, 7
        %v1185 = vsub.s32 6, %v1184
        %v1186 = vrot.slane %v1156, %v1185
        %v1194 = vmul.f32 %v1015, %v1162
        %v1195 = vmul.f32 %v1016, %v1166
        %v1196 = vmul.f32 %v1017, %v1170
        %v1197 = vmul.f32 %v1018, %v1174
        %v1198 = vmul.f32 %v1019, %v1178
        %v1199 = vmul.f32 %v1020, %v1182
        %v1200 = vmul.f32 %v1021, %v1186
        %v1208 = vcombine.low %v1194, %v1195
        %v1209 = vcombine.low %v1196, %v1197
        %v1210 = vcombine.low %v1198, %v1199
        %v1212 = vunpack.c.l.s4 1966171168
        %v1213 = vunpack.c.0.s8 %v1212
        %v1214 = vlaneseq
        %v1215 = vshrl.u32 %v1214, 7
        %v1216 = vsub.s32 %v1213, %v1215
        %v1217 = vrot.slane %v1208, %v1216
        %v1219 = vunpack.c.l.s4 1966171168
        %v1220 = vunpack.c.0.s8 %v1219
        %v1221 = vlaneseq
        %v1222 = vshrl.u32 %v1221, 7
        %v1223 = vsub.s32 %v1220, %v1222
        %v1224 = vrot.slane %v1209, %v1223
        %v1226 = vunpack.c.l.s4 1966171168
        %v1227 = vunpack.c.0.s8 %v1226
        %v1228 = vlaneseq
        %v1229 = vshrl.u32 %v1228, 7
        %v1230 = vsub.s32 %v1227, %v1229
        %v1231 = vrot.slane %v1210, %v1230
        %v1233 = vunpack.c.l.s4 1966171168
        %v1234 = vunpack.c.0.s8 %v1233
        %v1235 = vlaneseq
        %v1236 = vshrl.u32 %v1235, 7
        %v1237 = vsub.s32 %v1234, %v1236
        %v1238 = vrot.slane %v1200, %v1237
        %v1239 = vcombine.low %v1217, %v1224
        %v1240 = vcombine.low %v1231, %v1238
        %v1242 = vunpack.c.l.s4 1966171168
        %v1243 = vunpack.c.0.s8 %v1242
        %v1244 = vlaneseq
        %v1245 = vshrl.u32 %v1244, 7
        %v1246 = vsub.s32 %v1243, %v1245
        %v1247 = vrot.slane %v1239, %v1246
        %v1249 = vunpack.c.l.s4 1966171168
        %v1250 = vunpack.c.0.s8 %v1249
        %v1251 = vlaneseq
        %v1252 = vshrl.u32 %v1251, 7
        %v1253 = vsub.s32 %v1250, %v1252
        %v1254 = vrot.slane %v1240, %v1253
        %v1255 = vcombine.low %v1247, %v1254
        %v1257 = vsub.f32 %v1157, %v1255
        %v1258 = vmul.f32 %v844, %v1162
        %v1259 = vmul.f32 %v846, %v1166
        %v1260 = vmul.f32 %v885, %v1170
        %v1261 = vmul.f32 %v887, %v1174
        %v1262 = vmul.f32 %v926, %v1178
        %v1263 = vmul.f32 %v928, %v1182
        %v1264 = vmul.f32 %v967, %v1186
        %v1266 = vlaneseq
        %v1267 = vshrl.u32 %v1266, 7
        %v1268 = vsub.s32 0, %v1267
        %v1269 = vrot.slane %v1257, %v1268
        %v1270 = vlaneseq
        %v1271 = vshrl.u32 %v1270, 7
        %v1272 = vsub.s32 1, %v1271
        %v1273 = vrot.slane %v1257, %v1272
        %v1274 = vlaneseq
        %v1275 = vshrl.u32 %v1274, 7
        %v1276 = vsub.s32 2, %v1275
        %v1277 = vrot.slane %v1257, %v1276
        %v1278 = vlaneseq
        %v1279 = vshrl.u32 %v1278, 7
        %v1280 = vsub.s32 3, %v1279
        %v1281 = vrot.slane %v1257, %v1280
        %v1282 = vlaneseq
        %v1283 = vshrl.u32 %v1282, 7
        %v1284 = vsub.s32 4, %v1283
        %v1285 = vrot.slane %v1257, %v1284
        %v1286 = vlaneseq
        %v1287 = vshrl.u32 %v1286, 7
        %v1288 = vsub.s32 5, %v1287
        %v1289 = vrot.slane %v1257, %v1288
        %v1290 = vlaneseq
        %v1291 = vshrl.u32 %v1290, 7
        %v1292 = vsub.s32 6, %v1291
        %v1293 = vrot.slane %v1257, %v1292
        %v1301 = vadd.f32 %v1258, %v1269
        %v1302 = vadd.f32 %v1259, %v1273
        %v1303 = vadd.f32 %v1260, %v1277
        %v1304 = vadd.f32 %v1261, %v1281
        %v1305 = vadd.f32 %v1262, %v1285
        %v1306 = vadd.f32 %v1263, %v1289
        %v1307 = vadd.f32 %v1264, %v1293
        %v1308 = vmax.f32 %v1301, 0.0
        %v1309 = vmax.f32 %v1302, 0.0
        %v1310 = vmax.f32 %v1303, 0.0
        %v1311 = vmax.f32 %v1304, 0.0
        %v1312 = vmax.f32 %v1305, 0.0
        %v1313 = vmax.f32 %v1306, 0.0
        %v1314 = vmax.f32 %v1307, 0.0
        %v1315 = vpack.c.bf16 %v1308, %v1308
        %v1316 = vpack.c.bf16 %v1309, %v1309
        %v1317 = vpack.c.bf16 %v1310, %v1310
        %v1318 = vpack.c.bf16 %v1311, %v1311
        %v1319 = vpack.c.bf16 %v1312, %v1312
        %v1320 = vpack.c.bf16 %v1313, %v1313
        %v1321 = vpack.c.bf16 %v1314, %v1314
        %v1322 = vld [vmem:[#allocation10] sm:$0xff]
        %v1323 = vld [vmem:[#allocation10 + $0x8] sm:$0xff]
        %v1324 = vld [vmem:[#allocation10 + $0x10] sm:$0xff]
        %v1325 = vld [vmem:[#allocation10 + $0x18] sm:$0xf]
        %v1326 = vld [vmem:[#allocation10 + $0x1c] sm:$0xff]
        %v1327 = vld [vmem:[#allocation10 + $0x24] sm:$0xff]
        %v1328 = vld [vmem:[#allocation10 + $0x2c] sm:$0xff]
        %v1329 = vld [vmem:[#allocation10 + $0x34] sm:$0xf]
        %v1330 = vld [vmem:[#allocation10 + $0x38] sm:$0xff]
        %v1331 = vld [vmem:[#allocation10 + $0x40] sm:$0xff]
        %v1332 = vld [vmem:[#allocation10 + $0x48] sm:$0xff]
        %v1333 = vld [vmem:[#allocation10 + $0x50] sm:$0xf]
        %v1334 = vld [vmem:[#allocation10 + $0x54] sm:$0xff]
        %v1335 = vld [vmem:[#allocation10 + $0x5c] sm:$0xff]
        %v1336 = vld [vmem:[#allocation10 + $0x64] sm:$0xff]
        %v1337 = vld [vmem:[#allocation10 + $0x6c] sm:$0xf]
        %v1338 = vld [vmem:[#allocation10 + $0x70] sm:$0xff]
        %v1339 = vld [vmem:[#allocation10 + $0x78] sm:$0xff]
        %v1340 = vld [vmem:[#allocation10 + $0x80] sm:$0xff]
        %v1341 = vld [vmem:[#allocation10 + $0x88] sm:$0xf]
        %v1342 = vld [vmem:[#allocation10 + $0x8c] sm:$0xff]
        %v1343 = vld [vmem:[#allocation10 + $0x94] sm:$0xff]
        %v1344 = vld [vmem:[#allocation10 + $0x9c] sm:$0xff]
        %v1345 = vld [vmem:[#allocation10 + $0xa4] sm:$0xf]
        %v1346 = vld [vmem:[#allocation10 + $0xa8] sm:$0xff]
        %v1347 = vld [vmem:[#allocation10 + $0xb0] sm:$0xff]
        %v1348 = vld [vmem:[#allocation10 + $0xb8] sm:$0xff]
        %v1349 = vld [vmem:[#allocation10 + $0xc0] sm:$0xf]
        %v1350 = vld [vmem:[#allocation10 + $0xc4] sm:$0xff]
        %v1351 = vld [vmem:[#allocation10 + $0xcc] sm:$0xff]
        %v1352 = vld [vmem:[#allocation10 + $0xd4] sm:$0xff]
        %v1353 = vld [vmem:[#allocation10 + $0xdc] sm:$0xf]
        %v1354 = vld [vmem:[#allocation10 + $0xe0] sm:$0xff]
        %v1355 = vld [vmem:[#allocation10 + $0xe8] sm:$0xff]
        %v1356 = vld [vmem:[#allocation10 + $0xf0] sm:$0xff]
        %v1357 = vld [vmem:[#allocation10 + $0xf8] sm:$0xf]
        %v1358 = vld [vmem:[#allocation10 + $0xfc] sm:$0xff]
        %v1359 = vld [vmem:[#allocation10 + $0x104] sm:$0xff]
        %v1360 = vld [vmem:[#allocation10 + $0x10c] sm:$0xff]
        %v1361 = vld [vmem:[#allocation10 + $0x114] sm:$0xf]
        %v1362 = vld [vmem:[#allocation10 + $0x118] sm:$0xff]
        %v1363 = vld [vmem:[#allocation10 + $0x120] sm:$0xff]
        %v1364 = vld [vmem:[#allocation10 + $0x128] sm:$0xff]
        %v1365 = vld [vmem:[#allocation10 + $0x130] sm:$0xf]
        %v1366 = vld [vmem:[#allocation10 + $0x134] sm:$0xff]
        %v1367 = vld [vmem:[#allocation10 + $0x13c] sm:$0xff]
        %v1368 = vld [vmem:[#allocation10 + $0x144] sm:$0xff]
        %v1369 = vld [vmem:[#allocation10 + $0x14c] sm:$0xf]
        %v1370 = vld [vmem:[#allocation10 + $0x150] sm:$0xff]
        %v1371 = vld [vmem:[#allocation10 + $0x158] sm:$0xff]
        %v1372 = vld [vmem:[#allocation10 + $0x160] sm:$0xff]
        %v1373 = vld [vmem:[#allocation10 + $0x168] sm:$0xf]
        %v1374 = vld [vmem:[#allocation10 + $0x16c] sm:$0xff]
        %v1375 = vld [vmem:[#allocation10 + $0x174] sm:$0xff]
        %v1376 = vld [vmem:[#allocation10 + $0x17c] sm:$0xff]
        %v1377 = vld [vmem:[#allocation10 + $0x184] sm:$0xf]
        %v1378 = vld [vmem:[#allocation10 + $0x188] sm:$0xff]
        %v1379 = vld [vmem:[#allocation10 + $0x190] sm:$0xff]
        %v1380 = vld [vmem:[#allocation10 + $0x198] sm:$0xff]
        %v1381 = vld [vmem:[#allocation10 + $0x1a0] sm:$0xf]
        %v1382 = vld [vmem:[#allocation10 + $0x1a4] sm:$0xff]
        %v1383 = vld [vmem:[#allocation10 + $0x1ac] sm:$0xff]
        %v1384 = vld [vmem:[#allocation10 + $0x1b4] sm:$0xff]
        %v1385 = vld [vmem:[#allocation10 + $0x1bc] sm:$0xf]
        %v1386 = vld [vmem:[#allocation10 + $0x1c0] sm:$0xff]
        %v1387 = vld [vmem:[#allocation10 + $0x1c8] sm:$0xff]
        %v1388 = vld [vmem:[#allocation10 + $0x1d0] sm:$0xff]
        %v1389 = vld [vmem:[#allocation10 + $0x1d8] sm:$0xf]
        %v1390 = vld [vmem:[#allocation10 + $0x1dc] sm:$0xff]
        %v1391 = vld [vmem:[#allocation10 + $0x1e4] sm:$0xff]
        %v1392 = vld [vmem:[#allocation10 + $0x1ec] sm:$0xff]
        %v1393 = vld [vmem:[#allocation10 + $0x1f4] sm:$0xf]
        %v1394 = vld [vmem:[#allocation10 + $0x1f8] sm:$0xff]
        %v1395 = vld [vmem:[#allocation10 + $0x200] sm:$0xff]
        %v1396 = vld [vmem:[#allocation10 + $0x208] sm:$0xff]
        %v1397 = vld [vmem:[#allocation10 + $0x210] sm:$0xf]
        %v1398 = vld [vmem:[#allocation10 + $0x214] sm:$0xff]
        %v1399 = vld [vmem:[#allocation10 + $0x21c] sm:$0xff]
        %v1400 = vld [vmem:[#allocation10 + $0x224] sm:$0xff]
        %v1401 = vld [vmem:[#allocation10 + $0x22c] sm:$0xf]
        %v1402 = vld [vmem:[#allocation10 + $0x230] sm:$0xff]
        %v1403 = vld [vmem:[#allocation10 + $0x238] sm:$0xff]
        %v1404 = vld [vmem:[#allocation10 + $0x240] sm:$0xff]
        %v1405 = vld [vmem:[#allocation10 + $0x248] sm:$0xf]
        %v1406 = vld [vmem:[#allocation10 + $0x24c] sm:$0xff]
        %v1407 = vld [vmem:[#allocation10 + $0x254] sm:$0xff]
        %v1408 = vld [vmem:[#allocation10 + $0x25c] sm:$0xff]
        %v1409 = vld [vmem:[#allocation10 + $0x264] sm:$0xf]
        %v1410 = vld [vmem:[#allocation10 + $0x268] sm:$0xff]
        %v1411 = vld [vmem:[#allocation10 + $0x270] sm:$0xff]
        %v1412 = vld [vmem:[#allocation10 + $0x278] sm:$0xff]
        %v1413 = vld [vmem:[#allocation10 + $0x280] sm:$0xf]
        %v1414 = vld [vmem:[#allocation10 + $0x284] sm:$0xff]
        %v1415 = vld [vmem:[#allocation10 + $0x28c] sm:$0xff]
        %v1416 = vld [vmem:[#allocation10 + $0x294] sm:$0xff]
        %v1417 = vld [vmem:[#allocation10 + $0x29c] sm:$0xf]
        %v1418 = vld [vmem:[#allocation10 + $0x2a0] sm:$0xff]
        %v1419 = vld [vmem:[#allocation10 + $0x2a8] sm:$0xff]
        %v1420 = vld [vmem:[#allocation10 + $0x2b0] sm:$0xff]
        %v1421 = vld [vmem:[#allocation10 + $0x2b8] sm:$0xf]
        %v1422 = vld [vmem:[#allocation10 + $0x2bc] sm:$0xff]
        %v1423 = vld [vmem:[#allocation10 + $0x2c4] sm:$0xff]
        %v1424 = vld [vmem:[#allocation10 + $0x2cc] sm:$0xff]
        %v1425 = vld [vmem:[#allocation10 + $0x2d4] sm:$0xf]
        %v1426 = vld [vmem:[#allocation10 + $0x2d8] sm:$0xff]
        %v1427 = vld [vmem:[#allocation10 + $0x2e0] sm:$0xff]
        %v1428 = vld [vmem:[#allocation10 + $0x2e8] sm:$0xff]
        %v1429 = vld [vmem:[#allocation10 + $0x2f0] sm:$0xf]
        %v1430 = vld [vmem:[#allocation10 + $0x2f4] sm:$0xff]
        %v1431 = vld [vmem:[#allocation10 + $0x2fc] sm:$0xff]
        %v1432 = vld [vmem:[#allocation10 + $0x304] sm:$0xff]
        %v1433 = vld [vmem:[#allocation10 + $0x30c] sm:$0xf]
        %v1434 = vld [vmem:[#allocation10 + $0x310] sm:$0xff]
        %v1435 = vld [vmem:[#allocation10 + $0x318] sm:$0xff]
        %v1436 = vld [vmem:[#allocation10 + $0x320] sm:$0xff]
        %v1437 = vld [vmem:[#allocation10 + $0x328] sm:$0xf]
        %v1438 = vld [vmem:[#allocation10 + $0x32c] sm:$0xff]
        %v1439 = vld [vmem:[#allocation10 + $0x334] sm:$0xff]
        %v1440 = vld [vmem:[#allocation10 + $0x33c] sm:$0xff]
        %v1441 = vld [vmem:[#allocation10 + $0x344] sm:$0xf]
        %v1442 = vld [vmem:[#allocation10 + $0x348] sm:$0xff]
        %v1443 = vld [vmem:[#allocation10 + $0x350] sm:$0xff]
        %v1444 = vld [vmem:[#allocation10 + $0x358] sm:$0xff]
        %v1445 = vld [vmem:[#allocation10 + $0x360] sm:$0xf]
        %v1446 = vld [vmem:[#allocation10 + $0x364] sm:$0xff]
        %v1447 = vld [vmem:[#allocation10 + $0x36c] sm:$0xff]
        %v1448 = vld [vmem:[#allocation10 + $0x374] sm:$0xff]
        %v1449 = vld [vmem:[#allocation10 + $0x37c] sm:$0xf]
        %v1450 = vld [vmem:[#allocation10 + $0x380] sm:$0xff]
        %v1451 = vld [vmem:[#allocation10 + $0x388] sm:$0xff]
        %v1452 = vld [vmem:[#allocation10 + $0x390] sm:$0xff]
        %v1453 = vld [vmem:[#allocation10 + $0x398] sm:$0xf]
        %v1454 = vld [vmem:[#allocation10 + $0x39c] sm:$0xff]
        %v1455 = vld [vmem:[#allocation10 + $0x3a4] sm:$0xff]
        %v1456 = vld [vmem:[#allocation10 + $0x3ac] sm:$0xff]
        %v1457 = vld [vmem:[#allocation10 + $0x3b4] sm:$0xf]
        %v1458 = vld [vmem:[#allocation10 + $0x3b8] sm:$0xff]
        %v1459 = vld [vmem:[#allocation10 + $0x3c0] sm:$0xff]
        %v1460 = vld [vmem:[#allocation10 + $0x3c8] sm:$0xff]
        %v1461 = vld [vmem:[#allocation10 + $0x3d0] sm:$0xf]
        %v1462 = vld [vmem:[#allocation10 + $0x3d4] sm:$0xff]
        %v1463 = vld [vmem:[#allocation10 + $0x3dc] sm:$0xff]
        %v1464 = vld [vmem:[#allocation10 + $0x3e4] sm:$0xff]
        %v1465 = vld [vmem:[#allocation10 + $0x3ec] sm:$0xf]
        %v1466 = vld [vmem:[#allocation10 + $0x3f0] sm:$0xff]
        %v1467 = vld [vmem:[#allocation10 + $0x3f8] sm:$0xff]
        %v1468 = vld [vmem:[#allocation10 + $0x400] sm:$0xff]
        %v1469 = vld [vmem:[#allocation10 + $0x408] sm:$0xf]
        %v1470 = vld [vmem:[#allocation10 + $0x40c] sm:$0xff]
        %v1471 = vld [vmem:[#allocation10 + $0x414] sm:$0xff]
        %v1472 = vld [vmem:[#allocation10 + $0x41c] sm:$0xff]
        %v1473 = vld [vmem:[#allocation10 + $0x424] sm:$0xf]
        %v1474 = vld [vmem:[#allocation10 + $0x428] sm:$0xff]
        %v1475 = vld [vmem:[#allocation10 + $0x430] sm:$0xff]
        %v1476 = vld [vmem:[#allocation10 + $0x438] sm:$0xff]
        %v1477 = vld [vmem:[#allocation10 + $0x440] sm:$0xf]
        %v1478 = vld [vmem:[#allocation10 + $0x444] sm:$0xff]
        %v1479 = vld [vmem:[#allocation10 + $0x44c] sm:$0xff]
        %v1480 = vld [vmem:[#allocation10 + $0x454] sm:$0xff]
        %v1481 = vld [vmem:[#allocation10 + $0x45c] sm:$0xf]
        %v1482 = vld [vmem:[#allocation10 + $0x460] sm:$0xff]
        %v1483 = vld [vmem:[#allocation10 + $0x468] sm:$0xff]
        %v1484 = vld [vmem:[#allocation10 + $0x470] sm:$0xff]
        %v1485 = vld [vmem:[#allocation10 + $0x478] sm:$0xf]
        %v1486 = vld [vmem:[#allocation10 + $0x47c] sm:$0xff]
        %v1487 = vld [vmem:[#allocation10 + $0x484] sm:$0xff]
        %v1488 = vld [vmem:[#allocation10 + $0x48c] sm:$0xff]
        %v1489 = vld [vmem:[#allocation10 + $0x494] sm:$0xf]
        %v1490 = vld [vmem:[#allocation10 + $0x498] sm:$0xff]
        %v1491 = vld [vmem:[#allocation10 + $0x4a0] sm:$0xff]
        %v1492 = vld [vmem:[#allocation10 + $0x4a8] sm:$0xff]
        %v1493 = vld [vmem:[#allocation10 + $0x4b0] sm:$0xf]
        %v1494 = vld [vmem:[#allocation10 + $0x4b4] sm:$0xff]
        %v1495 = vld [vmem:[#allocation10 + $0x4bc] sm:$0xff]
        %v1496 = vld [vmem:[#allocation10 + $0x4c4] sm:$0xff]
        %v1497 = vld [vmem:[#allocation10 + $0x4cc] sm:$0xf]
        %v1498 = vld [vmem:[#allocation10 + $0x4d0] sm:$0xff]
        %v1499 = vld [vmem:[#allocation10 + $0x4d8] sm:$0xff]
        %v1500 = vld [vmem:[#allocation10 + $0x4e0] sm:$0xff]
        %v1501 = vld [vmem:[#allocation10 + $0x4e8] sm:$0xf]
        %v1502 = vld [vmem:[#allocation10 + $0x4ec] sm:$0xff]
        %v1503 = vld [vmem:[#allocation10 + $0x4f4] sm:$0xff]
        %v1504 = vld [vmem:[#allocation10 + $0x4fc] sm:$0xff]
        %v1505 = vld [vmem:[#allocation10 + $0x504] sm:$0xf]
        %v1506 = vld [vmem:[#allocation10 + $0x508] sm:$0xff]
        %v1507 = vld [vmem:[#allocation10 + $0x510] sm:$0xff]
        %v1508 = vld [vmem:[#allocation10 + $0x518] sm:$0xff]
        %v1509 = vld [vmem:[#allocation10 + $0x520] sm:$0xf]
        %v1510 = vld [vmem:[#allocation10 + $0x524] sm:$0xff]
        %v1511 = vld [vmem:[#allocation10 + $0x52c] sm:$0xff]
        %v1512 = vld [vmem:[#allocation10 + $0x534] sm:$0xff]
        %v1513 = vld [vmem:[#allocation10 + $0x53c] sm:$0xf]
        %v1514 = vld [vmem:[#allocation10 + $0x540] sm:$0xff]
        %v1515 = vld [vmem:[#allocation10 + $0x548] sm:$0xff]
        %v1516 = vld [vmem:[#allocation10 + $0x550] sm:$0xff]
        %v1517 = vld [vmem:[#allocation10 + $0x558] sm:$0xf]
        %v1518 = vld [vmem:[#allocation10 + $0x55c] sm:$0xff]
        %v1519 = vld [vmem:[#allocation10 + $0x564] sm:$0xff]
        %v1520 = vld [vmem:[#allocation10 + $0x56c] sm:$0xff]
        %v1521 = vld [vmem:[#allocation10 + $0x574] sm:$0xf]
        %v1522 = vld [vmem:[#allocation10 + $0x578] sm:$0xff]
        %v1523 = vld [vmem:[#allocation10 + $0x580] sm:$0xff]
        %v1524 = vld [vmem:[#allocation10 + $0x588] sm:$0xff]
        %v1525 = vld [vmem:[#allocation10 + $0x590] sm:$0xf]
        %v1526 = vld [vmem:[#allocation10 + $0x594] sm:$0xff]
        %v1527 = vld [vmem:[#allocation10 + $0x59c] sm:$0xff]
        %v1528 = vld [vmem:[#allocation10 + $0x5a4] sm:$0xff]
        %v1529 = vld [vmem:[#allocation10 + $0x5ac] sm:$0xf]
        %v1530 = vld [vmem:[#allocation10 + $0x5b0] sm:$0xff]
        %v1531 = vld [vmem:[#allocation10 + $0x5b8] sm:$0xff]
        %v1532 = vld [vmem:[#allocation10 + $0x5c0] sm:$0xff]
        %v1533 = vld [vmem:[#allocation10 + $0x5c8] sm:$0xf]
        %v1534 = vld [vmem:[#allocation10 + $0x5cc] sm:$0xff]
        %v1535 = vld [vmem:[#allocation10 + $0x5d4] sm:$0xff]
        %v1536 = vld [vmem:[#allocation10 + $0x5dc] sm:$0xff]
        %v1537 = vld [vmem:[#allocation10 + $0x5e4] sm:$0xf]
        %v1538 = vld [vmem:[#allocation10 + $0x5e8] sm:$0xff]
        %v1539 = vld [vmem:[#allocation10 + $0x5f0] sm:$0xff]
        %v1540 = vld [vmem:[#allocation10 + $0x5f8] sm:$0xff]
        %v1541 = vld [vmem:[#allocation10 + $0x600] sm:$0xf]
        %v1542 = vld [vmem:[#allocation10 + $0x604] sm:$0xff]
        %v1543 = vld [vmem:[#allocation10 + $0x60c] sm:$0xff]
        %v1544 = vld [vmem:[#allocation10 + $0x614] sm:$0xff]
        %v1545 = vld [vmem:[#allocation10 + $0x61c] sm:$0xf]
        %v1546 = vld [vmem:[#allocation10 + $0x620] sm:$0xff]
        %v1547 = vld [vmem:[#allocation10 + $0x628] sm:$0xff]
        %v1548 = vld [vmem:[#allocation10 + $0x630] sm:$0xff]
        %v1549 = vld [vmem:[#allocation10 + $0x638] sm:$0xf]
        %v1550 = vld [vmem:[#allocation10 + $0x63c] sm:$0xff]
        %v1551 = vld [vmem:[#allocation10 + $0x644] sm:$0xff]
        %v1552 = vld [vmem:[#allocation10 + $0x64c] sm:$0xff]
        %v1553 = vld [vmem:[#allocation10 + $0x654] sm:$0xf]
        %v1554 = vld [vmem:[#allocation10 + $0x658] sm:$0xff]
        %v1555 = vld [vmem:[#allocation10 + $0x660] sm:$0xff]
        %v1556 = vld [vmem:[#allocation10 + $0x668] sm:$0xff]
        %v1557 = vld [vmem:[#allocation10 + $0x670] sm:$0xf]
        %v1558 = vld [vmem:[#allocation10 + $0x674] sm:$0xff]
        %v1559 = vld [vmem:[#allocation10 + $0x67c] sm:$0xff]
        %v1560 = vld [vmem:[#allocation10 + $0x684] sm:$0xff]
        %v1561 = vld [vmem:[#allocation10 + $0x68c] sm:$0xf]
        %v1562 = vld [vmem:[#allocation10 + $0x690] sm:$0xff]
        %v1563 = vld [vmem:[#allocation10 + $0x698] sm:$0xff]
        %v1564 = vld [vmem:[#allocation10 + $0x6a0] sm:$0xff]
        %v1565 = vld [vmem:[#allocation10 + $0x6a8] sm:$0xf]
        %v1566 = vld [vmem:[#allocation10 + $0x6ac] sm:$0xff]
        %v1567 = vld [vmem:[#allocation10 + $0x6b4] sm:$0xff]
        %v1568 = vld [vmem:[#allocation10 + $0x6bc] sm:$0xff]
        %v1569 = vld [vmem:[#allocation10 + $0x6c4] sm:$0xf]
        %v1570 = vld [vmem:[#allocation10 + $0x6c8] sm:$0xff]
        %v1571 = vld [vmem:[#allocation10 + $0x6d0] sm:$0xff]
        %v1572 = vld [vmem:[#allocation10 + $0x6d8] sm:$0xff]
        %v1573 = vld [vmem:[#allocation10 + $0x6e0] sm:$0xf]
        %v1574 = vld [vmem:[#allocation10 + $0x6e4] sm:$0xff]
        %v1575 = vld [vmem:[#allocation10 + $0x6ec] sm:$0xff]
        %v1576 = vld [vmem:[#allocation10 + $0x6f4] sm:$0xff]
        %v1577 = vld [vmem:[#allocation10 + $0x6fc] sm:$0xf]
        %v1578 = vld [vmem:[#allocation10 + $0x700] sm:$0xff]
        %v1579 = vld [vmem:[#allocation10 + $0x708] sm:$0xff]
        %v1580 = vld [vmem:[#allocation10 + $0x710] sm:$0xff]
        %v1581 = vld [vmem:[#allocation10 + $0x718] sm:$0xf]
        %v1582 = vld [vmem:[#allocation10 + $0x71c] sm:$0xff]
        %v1583 = vld [vmem:[#allocation10 + $0x724] sm:$0xff]
        %v1584 = vld [vmem:[#allocation10 + $0x72c] sm:$0xff]
        %v1585 = vld [vmem:[#allocation10 + $0x734] sm:$0xf]
        %v1586 = vld [vmem:[#allocation10 + $0x738] sm:$0xff]
        %v1587 = vld [vmem:[#allocation10 + $0x740] sm:$0xff]
        %v1588 = vld [vmem:[#allocation10 + $0x748] sm:$0xff]
        %v1589 = vld [vmem:[#allocation10 + $0x750] sm:$0xf]
        %v1590 = vld [vmem:[#allocation10 + $0x754] sm:$0xff]
        %v1591 = vld [vmem:[#allocation10 + $0x75c] sm:$0xff]
        %v1592 = vld [vmem:[#allocation10 + $0x764] sm:$0xff]
        %v1593 = vld [vmem:[#allocation10 + $0x76c] sm:$0xf]
        %v1594 = vld [vmem:[#allocation10 + $0x770] sm:$0xff]
        %v1595 = vld [vmem:[#allocation10 + $0x778] sm:$0xff]
        %v1596 = vld [vmem:[#allocation10 + $0x780] sm:$0xff]
        %v1597 = vld [vmem:[#allocation10 + $0x788] sm:$0xf]
        %v1598 = vld [vmem:[#allocation10 + $0x78c] sm:$0xff]
        %v1599 = vld [vmem:[#allocation10 + $0x794] sm:$0xff]
        %v1600 = vld [vmem:[#allocation10 + $0x79c] sm:$0xff]
        %v1601 = vld [vmem:[#allocation10 + $0x7a4] sm:$0xf]
        %v1602 = vld [vmem:[#allocation10 + $0x7a8] sm:$0xff]
        %v1603 = vld [vmem:[#allocation10 + $0x7b0] sm:$0xff]
        %v1604 = vld [vmem:[#allocation10 + $0x7b8] sm:$0xff]
        %v1605 = vld [vmem:[#allocation10 + $0x7c0] sm:$0xf]
        %v1606 = vld [vmem:[#allocation10 + $0x7c4] sm:$0xff]
        %v1607 = vld [vmem:[#allocation10 + $0x7cc] sm:$0xff]
        %v1608 = vld [vmem:[#allocation10 + $0x7d4] sm:$0xff]
        %v1609 = vld [vmem:[#allocation10 + $0x7dc] sm:$0xf]
        %v1610 = vld [vmem:[#allocation10 + $0x7e0] sm:$0xff]
        %v1611 = vld [vmem:[#allocation10 + $0x7e8] sm:$0xff]
        %v1612 = vld [vmem:[#allocation10 + $0x7f0] sm:$0xff]
        %v1613 = vld [vmem:[#allocation10 + $0x7f8] sm:$0xf]
        %v1614 = vld [vmem:[#allocation10 + $0x7fc] sm:$0xff]
        %v1615 = vld [vmem:[#allocation10 + $0x804] sm:$0xff]
        %v1616 = vld [vmem:[#allocation10 + $0x80c] sm:$0xff]
        %v1617 = vld [vmem:[#allocation10 + $0x814] sm:$0xf]
        %v1618 = vld [vmem:[#allocation10 + $0x818] sm:$0xff]
        %v1619 = vld [vmem:[#allocation10 + $0x820] sm:$0xff]
        %v1620 = vld [vmem:[#allocation10 + $0x828] sm:$0xff]
        %v1621 = vld [vmem:[#allocation10 + $0x830] sm:$0xf]
        %v1622 = vld [vmem:[#allocation10 + $0x834] sm:$0xff]
        %v1623 = vld [vmem:[#allocation10 + $0x83c] sm:$0xff]
        %v1624 = vld [vmem:[#allocation10 + $0x844] sm:$0xff]
        %v1625 = vld [vmem:[#allocation10 + $0x84c] sm:$0xf]
        %v1626 = vld [vmem:[#allocation10 + $0x850] sm:$0xff]
        %v1627 = vld [vmem:[#allocation10 + $0x858] sm:$0xff]
        %v1628 = vld [vmem:[#allocation10 + $0x860] sm:$0xff]
        %v1629 = vld [vmem:[#allocation10 + $0x868] sm:$0xf]
        %v1630 = vld [vmem:[#allocation10 + $0x86c] sm:$0xff]
        %v1631 = vld [vmem:[#allocation10 + $0x874] sm:$0xff]
        %v1632 = vld [vmem:[#allocation10 + $0x87c] sm:$0xff]
        %v1633 = vld [vmem:[#allocation10 + $0x884] sm:$0xf]
        %v1634 = vld [vmem:[#allocation10 + $0x888] sm:$0xff]
        %v1635 = vld [vmem:[#allocation10 + $0x890] sm:$0xff]
        %v1636 = vld [vmem:[#allocation10 + $0x898] sm:$0xff]
        %v1637 = vld [vmem:[#allocation10 + $0x8a0] sm:$0xf]
        %v1638 = vld [vmem:[#allocation10 + $0x8a4] sm:$0xff]
        %v1639 = vld [vmem:[#allocation10 + $0x8ac] sm:$0xff]
        %v1640 = vld [vmem:[#allocation10 + $0x8b4] sm:$0xff]
        %v1641 = vld [vmem:[#allocation10 + $0x8bc] sm:$0xf]
        %v1642 = vld [vmem:[#allocation10 + $0x8c0] sm:$0xff]
        %v1643 = vld [vmem:[#allocation10 + $0x8c8] sm:$0xff]
        %v1644 = vld [vmem:[#allocation10 + $0x8d0] sm:$0xff]
        %v1645 = vld [vmem:[#allocation10 + $0x8d8] sm:$0xf]
        %v1646 = vld [vmem:[#allocation10 + $0x8dc] sm:$0xff]
        %v1647 = vld [vmem:[#allocation10 + $0x8e4] sm:$0xff]
        %v1648 = vld [vmem:[#allocation10 + $0x8ec] sm:$0xff]
        %v1649 = vld [vmem:[#allocation10 + $0x8f4] sm:$0xf]
        %v1650 = vld [vmem:[#allocation10 + $0x8f8] sm:$0xff]
        %v1651 = vld [vmem:[#allocation10 + $0x900] sm:$0xff]
        %v1652 = vld [vmem:[#allocation10 + $0x908] sm:$0xff]
        %v1653 = vld [vmem:[#allocation10 + $0x910] sm:$0xf]
        %v1654 = vld [vmem:[#allocation10 + $0x914] sm:$0xff]
        %v1655 = vld [vmem:[#allocation10 + $0x91c] sm:$0xff]
        %v1656 = vld [vmem:[#allocation10 + $0x924] sm:$0xff]
        %v1657 = vld [vmem:[#allocation10 + $0x92c] sm:$0xf]
        %v1658 = vld [vmem:[#allocation10 + $0x930] sm:$0xff]
        %v1659 = vld [vmem:[#allocation10 + $0x938] sm:$0xff]
        %v1660 = vld [vmem:[#allocation10 + $0x940] sm:$0xff]
        %v1661 = vld [vmem:[#allocation10 + $0x948] sm:$0xf]
        %v1662 = vld [vmem:[#allocation10 + $0x94c] sm:$0xff]
        %v1663 = vld [vmem:[#allocation10 + $0x954] sm:$0xff]
        %v1664 = vld [vmem:[#allocation10 + $0x95c] sm:$0xff]
        %v1665 = vld [vmem:[#allocation10 + $0x964] sm:$0xf]
        %v1666 = vld [vmem:[#allocation10 + $0x968] sm:$0xff]
        %v1667 = vld [vmem:[#allocation10 + $0x970] sm:$0xff]
        %v1668 = vld [vmem:[#allocation10 + $0x978] sm:$0xff]
        %v1669 = vld [vmem:[#allocation10 + $0x980] sm:$0xf]
        %v1670 = vld [vmem:[#allocation10 + $0x984] sm:$0xff]
        %v1671 = vld [vmem:[#allocation10 + $0x98c] sm:$0xff]
        %v1672 = vld [vmem:[#allocation10 + $0x994] sm:$0xff]
        %v1673 = vld [vmem:[#allocation10 + $0x99c] sm:$0xf]
        %v1674 = vld [vmem:[#allocation10 + $0x9a0] sm:$0xff]
        %v1675 = vld [vmem:[#allocation10 + $0x9a8] sm:$0xff]
        %v1676 = vld [vmem:[#allocation10 + $0x9b0] sm:$0xff]
        %v1677 = vld [vmem:[#allocation10 + $0x9b8] sm:$0xf]
        %v1678 = vld [vmem:[#allocation10 + $0x9bc] sm:$0xff]
        %v1679 = vld [vmem:[#allocation10 + $0x9c4] sm:$0xff]
        %v1680 = vld [vmem:[#allocation10 + $0x9cc] sm:$0xff]
        %v1681 = vld [vmem:[#allocation10 + $0x9d4] sm:$0xf]
        %v1682 = vld [vmem:[#allocation10 + $0x9d8] sm:$0xff]
        %v1683 = vld [vmem:[#allocation10 + $0x9e0] sm:$0xff]
        %v1684 = vld [vmem:[#allocation10 + $0x9e8] sm:$0xff]
        %v1685 = vld [vmem:[#allocation10 + $0x9f0] sm:$0xf]
        %v1686 = vld [vmem:[#allocation10 + $0x9f4] sm:$0xff]
        %v1687 = vld [vmem:[#allocation10 + $0x9fc] sm:$0xff]
        %v1688 = vld [vmem:[#allocation10 + $0xa04] sm:$0xff]
        %v1689 = vld [vmem:[#allocation10 + $0xa0c] sm:$0xf]
        %v1690 = vld [vmem:[#allocation10 + $0xa10] sm:$0xff]
        %v1691 = vld [vmem:[#allocation10 + $0xa18] sm:$0xff]
        %v1692 = vld [vmem:[#allocation10 + $0xa20] sm:$0xff]
        %v1693 = vld [vmem:[#allocation10 + $0xa28] sm:$0xf]
        %v1694 = vld [vmem:[#allocation10 + $0xa2c] sm:$0xff]
        %v1695 = vld [vmem:[#allocation10 + $0xa34] sm:$0xff]
        %v1696 = vld [vmem:[#allocation10 + $0xa3c] sm:$0xff]
        %v1697 = vld [vmem:[#allocation10 + $0xa44] sm:$0xf]
        %v1698 = vld [vmem:[#allocation10 + $0xa48] sm:$0xff]
        %v1699 = vld [vmem:[#allocation10 + $0xa50] sm:$0xff]
        %v1700 = vld [vmem:[#allocation10 + $0xa58] sm:$0xff]
        %v1701 = vld [vmem:[#allocation10 + $0xa60] sm:$0xf]
        %v1702 = vld [vmem:[#allocation10 + $0xa64] sm:$0xff]
        %v1703 = vld [vmem:[#allocation10 + $0xa6c] sm:$0xff]
        %v1704 = vld [vmem:[#allocation10 + $0xa74] sm:$0xff]
        %v1705 = vld [vmem:[#allocation10 + $0xa7c] sm:$0xf]
        %v1706 = vld [vmem:[#allocation10 + $0xa80] sm:$0xff]
        %v1707 = vld [vmem:[#allocation10 + $0xa88] sm:$0xff]
        %v1708 = vld [vmem:[#allocation10 + $0xa90] sm:$0xff]
        %v1709 = vld [vmem:[#allocation10 + $0xa98] sm:$0xf]
        %v1710 = vld [vmem:[#allocation10 + $0xa9c] sm:$0xff]
        %v1711 = vld [vmem:[#allocation10 + $0xaa4] sm:$0xff]
        %v1712 = vld [vmem:[#allocation10 + $0xaac] sm:$0xff]
        %v1713 = vld [vmem:[#allocation10 + $0xab4] sm:$0xf]
        %v1714 = vld [vmem:[#allocation10 + $0xab8] sm:$0xff]
        %v1715 = vld [vmem:[#allocation10 + $0xac0] sm:$0xff]
        %v1716 = vld [vmem:[#allocation10 + $0xac8] sm:$0xff]
        %v1717 = vld [vmem:[#allocation10 + $0xad0] sm:$0xf]
        %v1718 = vld [vmem:[#allocation10 + $0xad4] sm:$0xff]
        %v1719 = vld [vmem:[#allocation10 + $0xadc] sm:$0xff]
        %v1720 = vld [vmem:[#allocation10 + $0xae4] sm:$0xff]
        %v1721 = vld [vmem:[#allocation10 + $0xaec] sm:$0xf]
        %v2122 = vunpack.c.l.b16 %v1322
        %v2123 = vunpack.c.h.b16 %v1322
        %v2124 = vunpack.c.l.b16 %v1323
        %v2125 = vunpack.c.h.b16 %v1323
        %v2126 = vunpack.c.l.b16 %v1324
        %v2127 = vunpack.c.h.b16 %v1324
        %v2128 = vunpack.c.l.b16 %v1325
        %v2129 = vunpack.c.l.b16 %v1326
        %v2130 = vunpack.c.h.b16 %v1326
        %v2131 = vunpack.c.l.b16 %v1327
        %v2132 = vunpack.c.h.b16 %v1327
        %v2133 = vunpack.c.l.b16 %v1328
        %v2134 = vunpack.c.h.b16 %v1328
        %v2135 = vunpack.c.l.b16 %v1329
        %v2136 = vunpack.c.l.b16 %v1330
        %v2137 = vunpack.c.h.b16 %v1330
        %v2138 = vunpack.c.l.b16 %v1331
        %v2139 = vunpack.c.h.b16 %v1331
        %v2140 = vunpack.c.l.b16 %v1332
        %v2141 = vunpack.c.h.b16 %v1332
        %v2142 = vunpack.c.l.b16 %v1333
        %v2143 = vunpack.c.l.b16 %v1334
        %v2144 = vunpack.c.h.b16 %v1334
        %v2145 = vunpack.c.l.b16 %v1335
        %v2146 = vunpack.c.h.b16 %v1335
        %v2147 = vunpack.c.l.b16 %v1336
        %v2148 = vunpack.c.h.b16 %v1336
        %v2149 = vunpack.c.l.b16 %v1337
        %v2150 = vunpack.c.l.b16 %v1338
        %v2151 = vunpack.c.h.b16 %v1338
        %v2152 = vunpack.c.l.b16 %v1339
        %v2153 = vunpack.c.h.b16 %v1339
        %v2154 = vunpack.c.l.b16 %v1340
        %v2155 = vunpack.c.h.b16 %v1340
        %v2156 = vunpack.c.l.b16 %v1341
        %v2157 = vunpack.c.l.b16 %v1342
        %v2158 = vunpack.c.h.b16 %v1342
        %v2159 = vunpack.c.l.b16 %v1343
        %v2160 = vunpack.c.h.b16 %v1343
        %v2161 = vunpack.c.l.b16 %v1344
        %v2162 = vunpack.c.h.b16 %v1344
        %v2163 = vunpack.c.l.b16 %v1345
        %v2164 = vunpack.c.l.b16 %v1346
        %v2165 = vunpack.c.h.b16 %v1346
        %v2166 = vunpack.c.l.b16 %v1347
        %v2167 = vunpack.c.h.b16 %v1347
        %v2168 = vunpack.c.l.b16 %v1348
        %v2169 = vunpack.c.h.b16 %v1348
        %v2170 = vunpack.c.l.b16 %v1349
        %v2171 = vunpack.c.l.b16 %v1350
        %v2172 = vunpack.c.h.b16 %v1350
        %v2173 = vunpack.c.l.b16 %v1351
        %v2174 = vunpack.c.h.b16 %v1351
        %v2175 = vunpack.c.l.b16 %v1352
        %v2176 = vunpack.c.h.b16 %v1352
        %v2177 = vunpack.c.l.b16 %v1353
        %v2178 = vunpack.c.l.b16 %v1354
        %v2179 = vunpack.c.h.b16 %v1354
        %v2180 = vunpack.c.l.b16 %v1355
        %v2181 = vunpack.c.h.b16 %v1355
        %v2182 = vunpack.c.l.b16 %v1356
        %v2183 = vunpack.c.h.b16 %v1356
        %v2184 = vunpack.c.l.b16 %v1357
        %v2185 = vunpack.c.l.b16 %v1358
        %v2186 = vunpack.c.h.b16 %v1358
        %v2187 = vunpack.c.l.b16 %v1359
        %v2188 = vunpack.c.h.b16 %v1359
        %v2189 = vunpack.c.l.b16 %v1360
        %v2190 = vunpack.c.h.b16 %v1360
        %v2191 = vunpack.c.l.b16 %v1361
        %v2192 = vunpack.c.l.b16 %v1362
        %v2193 = vunpack.c.h.b16 %v1362
        %v2194 = vunpack.c.l.b16 %v1363
        %v2195 = vunpack.c.h.b16 %v1363
        %v2196 = vunpack.c.l.b16 %v1364
        %v2197 = vunpack.c.h.b16 %v1364
        %v2198 = vunpack.c.l.b16 %v1365
        %v2199 = vunpack.c.l.b16 %v1366
        %v2200 = vunpack.c.h.b16 %v1366
        %v2201 = vunpack.c.l.b16 %v1367
        %v2202 = vunpack.c.h.b16 %v1367
        %v2203 = vunpack.c.l.b16 %v1368
        %v2204 = vunpack.c.h.b16 %v1368
        %v2205 = vunpack.c.l.b16 %v1369
        %v2206 = vunpack.c.l.b16 %v1370
        %v2207 = vunpack.c.h.b16 %v1370
        %v2208 = vunpack.c.l.b16 %v1371
        %v2209 = vunpack.c.h.b16 %v1371
        %v2210 = vunpack.c.l.b16 %v1372
        %v2211 = vunpack.c.h.b16 %v1372
        %v2212 = vunpack.c.l.b16 %v1373
        %v2213 = vunpack.c.l.b16 %v1374
        %v2214 = vunpack.c.h.b16 %v1374
        %v2215 = vunpack.c.l.b16 %v1375
        %v2216 = vunpack.c.h.b16 %v1375
        %v2217 = vunpack.c.l.b16 %v1376
        %v2218 = vunpack.c.h.b16 %v1376
        %v2219 = vunpack.c.l.b16 %v1377
        %v2220 = vunpack.c.l.b16 %v1378
        %v2221 = vunpack.c.h.b16 %v1378
        %v2222 = vunpack.c.l.b16 %v1379
        %v2223 = vunpack.c.h.b16 %v1379
        %v2224 = vunpack.c.l.b16 %v1380
        %v2225 = vunpack.c.h.b16 %v1380
        %v2226 = vunpack.c.l.b16 %v1381
        %v2227 = vunpack.c.l.b16 %v1382
        %v2228 = vunpack.c.h.b16 %v1382
        %v2229 = vunpack.c.l.b16 %v1383
        %v2230 = vunpack.c.h.b16 %v1383
        %v2231 = vunpack.c.l.b16 %v1384
        %v2232 = vunpack.c.h.b16 %v1384
        %v2233 = vunpack.c.l.b16 %v1385
        %v2234 = vunpack.c.l.b16 %v1386
        %v2235 = vunpack.c.h.b16 %v1386
        %v2236 = vunpack.c.l.b16 %v1387
        %v2237 = vunpack.c.h.b16 %v1387
        %v2238 = vunpack.c.l.b16 %v1388
        %v2239 = vunpack.c.h.b16 %v1388
        %v2240 = vunpack.c.l.b16 %v1389
        %v2241 = vunpack.c.l.b16 %v1390
        %v2242 = vunpack.c.h.b16 %v1390
        %v2243 = vunpack.c.l.b16 %v1391
        %v2244 = vunpack.c.h.b16 %v1391
        %v2245 = vunpack.c.l.b16 %v1392
        %v2246 = vunpack.c.h.b16 %v1392
        %v2247 = vunpack.c.l.b16 %v1393
        %v2248 = vunpack.c.l.b16 %v1394
        %v2249 = vunpack.c.h.b16 %v1394
        %v2250 = vunpack.c.l.b16 %v1395
        %v2251 = vunpack.c.h.b16 %v1395
        %v2252 = vunpack.c.l.b16 %v1396
        %v2253 = vunpack.c.h.b16 %v1396
        %v2254 = vunpack.c.l.b16 %v1397
        %v2255 = vunpack.c.l.b16 %v1398
        %v2256 = vunpack.c.h.b16 %v1398
        %v2257 = vunpack.c.l.b16 %v1399
        %v2258 = vunpack.c.h.b16 %v1399
        %v2259 = vunpack.c.l.b16 %v1400
        %v2260 = vunpack.c.h.b16 %v1400
        %v2261 = vunpack.c.l.b16 %v1401
        %v2262 = vunpack.c.l.b16 %v1402
        %v2263 = vunpack.c.h.b16 %v1402
        %v2264 = vunpack.c.l.b16 %v1403
        %v2265 = vunpack.c.h.b16 %v1403
        %v2266 = vunpack.c.l.b16 %v1404
        %v2267 = vunpack.c.h.b16 %v1404
        %v2268 = vunpack.c.l.b16 %v1405
        %v2269 = vunpack.c.l.b16 %v1406
        %v2270 = vunpack.c.h.b16 %v1406
        %v2271 = vunpack.c.l.b16 %v1407
        %v2272 = vunpack.c.h.b16 %v1407
        %v2273 = vunpack.c.l.b16 %v1408
        %v2274 = vunpack.c.h.b16 %v1408
        %v2275 = vunpack.c.l.b16 %v1409
        %v2276 = vunpack.c.l.b16 %v1410
        %v2277 = vunpack.c.h.b16 %v1410
        %v2278 = vunpack.c.l.b16 %v1411
        %v2279 = vunpack.c.h.b16 %v1411
        %v2280 = vunpack.c.l.b16 %v1412
        %v2281 = vunpack.c.h.b16 %v1412
        %v2282 = vunpack.c.l.b16 %v1413
        %v2283 = vunpack.c.l.b16 %v1414
        %v2284 = vunpack.c.h.b16 %v1414
        %v2285 = vunpack.c.l.b16 %v1415
        %v2286 = vunpack.c.h.b16 %v1415
        %v2287 = vunpack.c.l.b16 %v1416
        %v2288 = vunpack.c.h.b16 %v1416
        %v2289 = vunpack.c.l.b16 %v1417
        %v2290 = vunpack.c.l.b16 %v1418
        %v2291 = vunpack.c.h.b16 %v1418
        %v2292 = vunpack.c.l.b16 %v1419
        %v2293 = vunpack.c.h.b16 %v1419
        %v2294 = vunpack.c.l.b16 %v1420
        %v2295 = vunpack.c.h.b16 %v1420
        %v2296 = vunpack.c.l.b16 %v1421
        %v2297 = vunpack.c.l.b16 %v1422
        %v2298 = vunpack.c.h.b16 %v1422
        %v2299 = vunpack.c.l.b16 %v1423
        %v2300 = vunpack.c.h.b16 %v1423
        %v2301 = vunpack.c.l.b16 %v1424
        %v2302 = vunpack.c.h.b16 %v1424
        %v2303 = vunpack.c.l.b16 %v1425
        %v2304 = vunpack.c.l.b16 %v1426
        %v2305 = vunpack.c.h.b16 %v1426
        %v2306 = vunpack.c.l.b16 %v1427
        %v2307 = vunpack.c.h.b16 %v1427
        %v2308 = vunpack.c.l.b16 %v1428
        %v2309 = vunpack.c.h.b16 %v1428
        %v2310 = vunpack.c.l.b16 %v1429
        %v2311 = vunpack.c.l.b16 %v1430
        %v2312 = vunpack.c.h.b16 %v1430
        %v2313 = vunpack.c.l.b16 %v1431
        %v2314 = vunpack.c.h.b16 %v1431
        %v2315 = vunpack.c.l.b16 %v1432
        %v2316 = vunpack.c.h.b16 %v1432
        %v2317 = vunpack.c.l.b16 %v1433
        %v2318 = vunpack.c.l.b16 %v1434
        %v2319 = vunpack.c.h.b16 %v1434
        %v2320 = vunpack.c.l.b16 %v1435
        %v2321 = vunpack.c.h.b16 %v1435
        %v2322 = vunpack.c.l.b16 %v1436
        %v2323 = vunpack.c.h.b16 %v1436
        %v2324 = vunpack.c.l.b16 %v1437
        %v2325 = vunpack.c.l.b16 %v1438
        %v2326 = vunpack.c.h.b16 %v1438
        %v2327 = vunpack.c.l.b16 %v1439
        %v2328 = vunpack.c.h.b16 %v1439
        %v2329 = vunpack.c.l.b16 %v1440
        %v2330 = vunpack.c.h.b16 %v1440
        %v2331 = vunpack.c.l.b16 %v1441
        %v2332 = vunpack.c.l.b16 %v1442
        %v2333 = vunpack.c.h.b16 %v1442
        %v2334 = vunpack.c.l.b16 %v1443
        %v2335 = vunpack.c.h.b16 %v1443
        %v2336 = vunpack.c.l.b16 %v1444
        %v2337 = vunpack.c.h.b16 %v1444
        %v2338 = vunpack.c.l.b16 %v1445
        %v2339 = vunpack.c.l.b16 %v1446
        %v2340 = vunpack.c.h.b16 %v1446
        %v2341 = vunpack.c.l.b16 %v1447
        %v2342 = vunpack.c.h.b16 %v1447
        %v2343 = vunpack.c.l.b16 %v1448
        %v2344 = vunpack.c.h.b16 %v1448
        %v2345 = vunpack.c.l.b16 %v1449
        %v2346 = vunpack.c.l.b16 %v1450
        %v2347 = vunpack.c.h.b16 %v1450
        %v2348 = vunpack.c.l.b16 %v1451
        %v2349 = vunpack.c.h.b16 %v1451
        %v2350 = vunpack.c.l.b16 %v1452
        %v2351 = vunpack.c.h.b16 %v1452
        %v2352 = vunpack.c.l.b16 %v1453
        %v2353 = vunpack.c.l.b16 %v1454
        %v2354 = vunpack.c.h.b16 %v1454
        %v2355 = vunpack.c.l.b16 %v1455
        %v2356 = vunpack.c.h.b16 %v1455
        %v2357 = vunpack.c.l.b16 %v1456
        %v2358 = vunpack.c.h.b16 %v1456
        %v2359 = vunpack.c.l.b16 %v1457
        %v2360 = vunpack.c.l.b16 %v1458
        %v2361 = vunpack.c.h.b16 %v1458
        %v2362 = vunpack.c.l.b16 %v1459
        %v2363 = vunpack.c.h.b16 %v1459
        %v2364 = vunpack.c.l.b16 %v1460
        %v2365 = vunpack.c.h.b16 %v1460
        %v2366 = vunpack.c.l.b16 %v1461
        %v2367 = vunpack.c.l.b16 %v1462
        %v2368 = vunpack.c.h.b16 %v1462
        %v2369 = vunpack.c.l.b16 %v1463
        %v2370 = vunpack.c.h.b16 %v1463
        %v2371 = vunpack.c.l.b16 %v1464
        %v2372 = vunpack.c.h.b16 %v1464
        %v2373 = vunpack.c.l.b16 %v1465
        %v2374 = vunpack.c.l.b16 %v1466
        %v2375 = vunpack.c.h.b16 %v1466
        %v2376 = vunpack.c.l.b16 %v1467
        %v2377 = vunpack.c.h.b16 %v1467
        %v2378 = vunpack.c.l.b16 %v1468
        %v2379 = vunpack.c.h.b16 %v1468
        %v2380 = vunpack.c.l.b16 %v1469
        %v2381 = vunpack.c.l.b16 %v1470
        %v2382 = vunpack.c.h.b16 %v1470
        %v2383 = vunpack.c.l.b16 %v1471
        %v2384 = vunpack.c.h.b16 %v1471
        %v2385 = vunpack.c.l.b16 %v1472
        %v2386 = vunpack.c.h.b16 %v1472
        %v2387 = vunpack.c.l.b16 %v1473
        %v2388 = vunpack.c.l.b16 %v1474
        %v2389 = vunpack.c.h.b16 %v1474
        %v2390 = vunpack.c.l.b16 %v1475
        %v2391 = vunpack.c.h.b16 %v1475
        %v2392 = vunpack.c.l.b16 %v1476
        %v2393 = vunpack.c.h.b16 %v1476
        %v2394 = vunpack.c.l.b16 %v1477
        %v2395 = vunpack.c.l.b16 %v1478
        %v2396 = vunpack.c.h.b16 %v1478
        %v2397 = vunpack.c.l.b16 %v1479
        %v2398 = vunpack.c.h.b16 %v1479
        %v2399 = vunpack.c.l.b16 %v1480
        %v2400 = vunpack.c.h.b16 %v1480
        %v2401 = vunpack.c.l.b16 %v1481
        %v2402 = vunpack.c.l.b16 %v1482
        %v2403 = vunpack.c.h.b16 %v1482
        %v2404 = vunpack.c.l.b16 %v1483
        %v2405 = vunpack.c.h.b16 %v1483
        %v2406 = vunpack.c.l.b16 %v1484
        %v2407 = vunpack.c.h.b16 %v1484
        %v2408 = vunpack.c.l.b16 %v1485
        %v2409 = vunpack.c.l.b16 %v1486
        %v2410 = vunpack.c.h.b16 %v1486
        %v2411 = vunpack.c.l.b16 %v1487
        %v2412 = vunpack.c.h.b16 %v1487
        %v2413 = vunpack.c.l.b16 %v1488
        %v2414 = vunpack.c.h.b16 %v1488
        %v2415 = vunpack.c.l.b16 %v1489
        %v2416 = vunpack.c.l.b16 %v1490
        %v2417 = vunpack.c.h.b16 %v1490
        %v2418 = vunpack.c.l.b16 %v1491
        %v2419 = vunpack.c.h.b16 %v1491
        %v2420 = vunpack.c.l.b16 %v1492
        %v2421 = vunpack.c.h.b16 %v1492
        %v2422 = vunpack.c.l.b16 %v1493
        %v2423 = vunpack.c.l.b16 %v1494
        %v2424 = vunpack.c.h.b16 %v1494
        %v2425 = vunpack.c.l.b16 %v1495
        %v2426 = vunpack.c.h.b16 %v1495
        %v2427 = vunpack.c.l.b16 %v1496
        %v2428 = vunpack.c.h.b16 %v1496
        %v2429 = vunpack.c.l.b16 %v1497
        %v2430 = vunpack.c.l.b16 %v1498
        %v2431 = vunpack.c.h.b16 %v1498
        %v2432 = vunpack.c.l.b16 %v1499
        %v2433 = vunpack.c.h.b16 %v1499
        %v2434 = vunpack.c.l.b16 %v1500
        %v2435 = vunpack.c.h.b16 %v1500
        %v2436 = vunpack.c.l.b16 %v1501
        %v2437 = vunpack.c.l.b16 %v1502
        %v2438 = vunpack.c.h.b16 %v1502
        %v2439 = vunpack.c.l.b16 %v1503
        %v2440 = vunpack.c.h.b16 %v1503
        %v2441 = vunpack.c.l.b16 %v1504
        %v2442 = vunpack.c.h.b16 %v1504
        %v2443 = vunpack.c.l.b16 %v1505
        %v2444 = vunpack.c.l.b16 %v1506
        %v2445 = vunpack.c.h.b16 %v1506
        %v2446 = vunpack.c.l.b16 %v1507
        %v2447 = vunpack.c.h.b16 %v1507
        %v2448 = vunpack.c.l.b16 %v1508
        %v2449 = vunpack.c.h.b16 %v1508
        %v2450 = vunpack.c.l.b16 %v1509
        %v2451 = vunpack.c.l.b16 %v1510
        %v2452 = vunpack.c.h.b16 %v1510
        %v2453 = vunpack.c.l.b16 %v1511
        %v2454 = vunpack.c.h.b16 %v1511
        %v2455 = vunpack.c.l.b16 %v1512
        %v2456 = vunpack.c.h.b16 %v1512
        %v2457 = vunpack.c.l.b16 %v1513
        %v2458 = vunpack.c.l.b16 %v1514
        %v2459 = vunpack.c.h.b16 %v1514
        %v2460 = vunpack.c.l.b16 %v1515
        %v2461 = vunpack.c.h.b16 %v1515
        %v2462 = vunpack.c.l.b16 %v1516
        %v2463 = vunpack.c.h.b16 %v1516
        %v2464 = vunpack.c.l.b16 %v1517
        %v2465 = vunpack.c.l.b16 %v1518
        %v2466 = vunpack.c.h.b16 %v1518
        %v2467 = vunpack.c.l.b16 %v1519
        %v2468 = vunpack.c.h.b16 %v1519
        %v2469 = vunpack.c.l.b16 %v1520
        %v2470 = vunpack.c.h.b16 %v1520
        %v2471 = vunpack.c.l.b16 %v1521
        %v2472 = vunpack.c.l.b16 %v1522
        %v2473 = vunpack.c.h.b16 %v1522
        %v2474 = vunpack.c.l.b16 %v1523
        %v2475 = vunpack.c.h.b16 %v1523
        %v2476 = vunpack.c.l.b16 %v1524
        %v2477 = vunpack.c.h.b16 %v1524
        %v2478 = vunpack.c.l.b16 %v1525
        %v2479 = vunpack.c.l.b16 %v1526
        %v2480 = vunpack.c.h.b16 %v1526
        %v2481 = vunpack.c.l.b16 %v1527
        %v2482 = vunpack.c.h.b16 %v1527
        %v2483 = vunpack.c.l.b16 %v1528
        %v2484 = vunpack.c.h.b16 %v1528
        %v2485 = vunpack.c.l.b16 %v1529
        %v2486 = vunpack.c.l.b16 %v1530
        %v2487 = vunpack.c.h.b16 %v1530
        %v2488 = vunpack.c.l.b16 %v1531
        %v2489 = vunpack.c.h.b16 %v1531
        %v2490 = vunpack.c.l.b16 %v1532
        %v2491 = vunpack.c.h.b16 %v1532
        %v2492 = vunpack.c.l.b16 %v1533
        %v2493 = vunpack.c.l.b16 %v1534
        %v2494 = vunpack.c.h.b16 %v1534
        %v2495 = vunpack.c.l.b16 %v1535
        %v2496 = vunpack.c.h.b16 %v1535
        %v2497 = vunpack.c.l.b16 %v1536
        %v2498 = vunpack.c.h.b16 %v1536
        %v2499 = vunpack.c.l.b16 %v1537
        %v2500 = vunpack.c.l.b16 %v1538
        %v2501 = vunpack.c.h.b16 %v1538
        %v2502 = vunpack.c.l.b16 %v1539
        %v2503 = vunpack.c.h.b16 %v1539
        %v2504 = vunpack.c.l.b16 %v1540
        %v2505 = vunpack.c.h.b16 %v1540
        %v2506 = vunpack.c.l.b16 %v1541
        %v2507 = vunpack.c.l.b16 %v1542
        %v2508 = vunpack.c.h.b16 %v1542
        %v2509 = vunpack.c.l.b16 %v1543
        %v2510 = vunpack.c.h.b16 %v1543
        %v2511 = vunpack.c.l.b16 %v1544
        %v2512 = vunpack.c.h.b16 %v1544
        %v2513 = vunpack.c.l.b16 %v1545
        %v2514 = vunpack.c.l.b16 %v1546
        %v2515 = vunpack.c.h.b16 %v1546
        %v2516 = vunpack.c.l.b16 %v1547
        %v2517 = vunpack.c.h.b16 %v1547
        %v2518 = vunpack.c.l.b16 %v1548
        %v2519 = vunpack.c.h.b16 %v1548
        %v2520 = vunpack.c.l.b16 %v1549
        %v2521 = vunpack.c.l.b16 %v1550
        %v2522 = vunpack.c.h.b16 %v1550
        %v2523 = vunpack.c.l.b16 %v1551
        %v2524 = vunpack.c.h.b16 %v1551
        %v2525 = vunpack.c.l.b16 %v1552
        %v2526 = vunpack.c.h.b16 %v1552
        %v2527 = vunpack.c.l.b16 %v1553
        %v2528 = vunpack.c.l.b16 %v1554
        %v2529 = vunpack.c.h.b16 %v1554
        %v2530 = vunpack.c.l.b16 %v1555
        %v2531 = vunpack.c.h.b16 %v1555
        %v2532 = vunpack.c.l.b16 %v1556
        %v2533 = vunpack.c.h.b16 %v1556
        %v2534 = vunpack.c.l.b16 %v1557
        %v2535 = vunpack.c.l.b16 %v1558
        %v2536 = vunpack.c.h.b16 %v1558
        %v2537 = vunpack.c.l.b16 %v1559
        %v2538 = vunpack.c.h.b16 %v1559
        %v2539 = vunpack.c.l.b16 %v1560
        %v2540 = vunpack.c.h.b16 %v1560
        %v2541 = vunpack.c.l.b16 %v1561
        %v2542 = vunpack.c.l.b16 %v1562
        %v2543 = vunpack.c.h.b16 %v1562
        %v2544 = vunpack.c.l.b16 %v1563
        %v2545 = vunpack.c.h.b16 %v1563
        %v2546 = vunpack.c.l.b16 %v1564
        %v2547 = vunpack.c.h.b16 %v1564
        %v2548 = vunpack.c.l.b16 %v1565
        %v2549 = vunpack.c.l.b16 %v1566
        %v2550 = vunpack.c.h.b16 %v1566
        %v2551 = vunpack.c.l.b16 %v1567
        %v2552 = vunpack.c.h.b16 %v1567
        %v2553 = vunpack.c.l.b16 %v1568
        %v2554 = vunpack.c.h.b16 %v1568
        %v2555 = vunpack.c.l.b16 %v1569
        %v2556 = vunpack.c.l.b16 %v1570
        %v2557 = vunpack.c.h.b16 %v1570
        %v2558 = vunpack.c.l.b16 %v1571
        %v2559 = vunpack.c.h.b16 %v1571
        %v2560 = vunpack.c.l.b16 %v1572
        %v2561 = vunpack.c.h.b16 %v1572
        %v2562 = vunpack.c.l.b16 %v1573
        %v2563 = vunpack.c.l.b16 %v1574
        %v2564 = vunpack.c.h.b16 %v1574
        %v2565 = vunpack.c.l.b16 %v1575
        %v2566 = vunpack.c.h.b16 %v1575
        %v2567 = vunpack.c.l.b16 %v1576
        %v2568 = vunpack.c.h.b16 %v1576
        %v2569 = vunpack.c.l.b16 %v1577
        %v2570 = vunpack.c.l.b16 %v1578
        %v2571 = vunpack.c.h.b16 %v1578
        %v2572 = vunpack.c.l.b16 %v1579
        %v2573 = vunpack.c.h.b16 %v1579
        %v2574 = vunpack.c.l.b16 %v1580
        %v2575 = vunpack.c.h.b16 %v1580
        %v2576 = vunpack.c.l.b16 %v1581
        %v2577 = vunpack.c.l.b16 %v1582
        %v2578 = vunpack.c.h.b16 %v1582
        %v2579 = vunpack.c.l.b16 %v1583
        %v2580 = vunpack.c.h.b16 %v1583
        %v2581 = vunpack.c.l.b16 %v1584
        %v2582 = vunpack.c.h.b16 %v1584
        %v2583 = vunpack.c.l.b16 %v1585
        %v2584 = vunpack.c.l.b16 %v1586
        %v2585 = vunpack.c.h.b16 %v1586
        %v2586 = vunpack.c.l.b16 %v1587
        %v2587 = vunpack.c.h.b16 %v1587
        %v2588 = vunpack.c.l.b16 %v1588
        %v2589 = vunpack.c.h.b16 %v1588
        %v2590 = vunpack.c.l.b16 %v1589
        %v2591 = vunpack.c.l.b16 %v1590
        %v2592 = vunpack.c.h.b16 %v1590
        %v2593 = vunpack.c.l.b16 %v1591
        %v2594 = vunpack.c.h.b16 %v1591
        %v2595 = vunpack.c.l.b16 %v1592
        %v2596 = vunpack.c.h.b16 %v1592
        %v2597 = vunpack.c.l.b16 %v1593
        %v2598 = vunpack.c.l.b16 %v1594
        %v2599 = vunpack.c.h.b16 %v1594
        %v2600 = vunpack.c.l.b16 %v1595
        %v2601 = vunpack.c.h.b16 %v1595
        %v2602 = vunpack.c.l.b16 %v1596
        %v2603 = vunpack.c.h.b16 %v1596
        %v2604 = vunpack.c.l.b16 %v1597
        %v2605 = vunpack.c.l.b16 %v1598
        %v2606 = vunpack.c.h.b16 %v1598
        %v2607 = vunpack.c.l.b16 %v1599
        %v2608 = vunpack.c.h.b16 %v1599
        %v2609 = vunpack.c.l.b16 %v1600
        %v2610 = vunpack.c.h.b16 %v1600
        %v2611 = vunpack.c.l.b16 %v1601
        %v2612 = vunpack.c.l.b16 %v1602
        %v2613 = vunpack.c.h.b16 %v1602
        %v2614 = vunpack.c.l.b16 %v1603
        %v2615 = vunpack.c.h.b16 %v1603
        %v2616 = vunpack.c.l.b16 %v1604
        %v2617 = vunpack.c.h.b16 %v1604
        %v2618 = vunpack.c.l.b16 %v1605
        %v2619 = vunpack.c.l.b16 %v1606
        %v2620 = vunpack.c.h.b16 %v1606
        %v2621 = vunpack.c.l.b16 %v1607
        %v2622 = vunpack.c.h.b16 %v1607
        %v2623 = vunpack.c.l.b16 %v1608
        %v2624 = vunpack.c.h.b16 %v1608
        %v2625 = vunpack.c.l.b16 %v1609
        %v2626 = vunpack.c.l.b16 %v1610
        %v2627 = vunpack.c.h.b16 %v1610
        %v2628 = vunpack.c.l.b16 %v1611
        %v2629 = vunpack.c.h.b16 %v1611
        %v2630 = vunpack.c.l.b16 %v1612
        %v2631 = vunpack.c.h.b16 %v1612
        %v2632 = vunpack.c.l.b16 %v1613
        %v2633 = vunpack.c.l.b16 %v1614
        %v2634 = vunpack.c.h.b16 %v1614
        %v2635 = vunpack.c.l.b16 %v1615
        %v2636 = vunpack.c.h.b16 %v1615
        %v2637 = vunpack.c.l.b16 %v1616
        %v2638 = vunpack.c.h.b16 %v1616
        %v2639 = vunpack.c.l.b16 %v1617
        %v2640 = vunpack.c.l.b16 %v1618
        %v2641 = vunpack.c.h.b16 %v1618
        %v2642 = vunpack.c.l.b16 %v1619
        %v2643 = vunpack.c.h.b16 %v1619
        %v2644 = vunpack.c.l.b16 %v1620
        %v2645 = vunpack.c.h.b16 %v1620
        %v2646 = vunpack.c.l.b16 %v1621
        %v2647 = vunpack.c.l.b16 %v1622
        %v2648 = vunpack.c.h.b16 %v1622
        %v2649 = vunpack.c.l.b16 %v1623
        %v2650 = vunpack.c.h.b16 %v1623
        %v2651 = vunpack.c.l.b16 %v1624
        %v2652 = vunpack.c.h.b16 %v1624
        %v2653 = vunpack.c.l.b16 %v1625
        %v2654 = vunpack.c.l.b16 %v1626
        %v2655 = vunpack.c.h.b16 %v1626
        %v2656 = vunpack.c.l.b16 %v1627
        %v2657 = vunpack.c.h.b16 %v1627
        %v2658 = vunpack.c.l.b16 %v1628
        %v2659 = vunpack.c.h.b16 %v1628
        %v2660 = vunpack.c.l.b16 %v1629
        %v2661 = vunpack.c.l.b16 %v1630
        %v2662 = vunpack.c.h.b16 %v1630
        %v2663 = vunpack.c.l.b16 %v1631
        %v2664 = vunpack.c.h.b16 %v1631
        %v2665 = vunpack.c.l.b16 %v1632
        %v2666 = vunpack.c.h.b16 %v1632
        %v2667 = vunpack.c.l.b16 %v1633
        %v2668 = vunpack.c.l.b16 %v1634
        %v2669 = vunpack.c.h.b16 %v1634
        %v2670 = vunpack.c.l.b16 %v1635
        %v2671 = vunpack.c.h.b16 %v1635
        %v2672 = vunpack.c.l.b16 %v1636
        %v2673 = vunpack.c.h.b16 %v1636
        %v2674 = vunpack.c.l.b16 %v1637
        %v2675 = vunpack.c.l.b16 %v1638
        %v2676 = vunpack.c.h.b16 %v1638
        %v2677 = vunpack.c.l.b16 %v1639
        %v2678 = vunpack.c.h.b16 %v1639
        %v2679 = vunpack.c.l.b16 %v1640
        %v2680 = vunpack.c.h.b16 %v1640
        %v2681 = vunpack.c.l.b16 %v1641
        %v2682 = vunpack.c.l.b16 %v1642
        %v2683 = vunpack.c.h.b16 %v1642
        %v2684 = vunpack.c.l.b16 %v1643
        %v2685 = vunpack.c.h.b16 %v1643
        %v2686 = vunpack.c.l.b16 %v1644
        %v2687 = vunpack.c.h.b16 %v1644
        %v2688 = vunpack.c.l.b16 %v1645
        %v2689 = vunpack.c.l.b16 %v1646
        %v2690 = vunpack.c.h.b16 %v1646
        %v2691 = vunpack.c.l.b16 %v1647
        %v2692 = vunpack.c.h.b16 %v1647
        %v2693 = vunpack.c.l.b16 %v1648
        %v2694 = vunpack.c.h.b16 %v1648
        %v2695 = vunpack.c.l.b16 %v1649
        %v2696 = vunpack.c.l.b16 %v1650
        %v2697 = vunpack.c.h.b16 %v1650
        %v2698 = vunpack.c.l.b16 %v1651
        %v2699 = vunpack.c.h.b16 %v1651
        %v2700 = vunpack.c.l.b16 %v1652
        %v2701 = vunpack.c.h.b16 %v1652
        %v2702 = vunpack.c.l.b16 %v1653
        %v2703 = vunpack.c.l.b16 %v1654
        %v2704 = vunpack.c.h.b16 %v1654
        %v2705 = vunpack.c.l.b16 %v1655
        %v2706 = vunpack.c.h.b16 %v1655
        %v2707 = vunpack.c.l.b16 %v1656
        %v2708 = vunpack.c.h.b16 %v1656
        %v2709 = vunpack.c.l.b16 %v1657
        %v2710 = vunpack.c.l.b16 %v1658
        %v2711 = vunpack.c.h.b16 %v1658
        %v2712 = vunpack.c.l.b16 %v1659
        %v2713 = vunpack.c.h.b16 %v1659
        %v2714 = vunpack.c.l.b16 %v1660
        %v2715 = vunpack.c.h.b16 %v1660
        %v2716 = vunpack.c.l.b16 %v1661
        %v2717 = vunpack.c.l.b16 %v1662
        %v2718 = vunpack.c.h.b16 %v1662
        %v2719 = vunpack.c.l.b16 %v1663
        %v2720 = vunpack.c.h.b16 %v1663
        %v2721 = vunpack.c.l.b16 %v1664
        %v2722 = vunpack.c.h.b16 %v1664
        %v2723 = vunpack.c.l.b16 %v1665
        %v2724 = vunpack.c.l.b16 %v1666
        %v2725 = vunpack.c.h.b16 %v1666
        %v2726 = vunpack.c.l.b16 %v1667
        %v2727 = vunpack.c.h.b16 %v1667
        %v2728 = vunpack.c.l.b16 %v1668
        %v2729 = vunpack.c.h.b16 %v1668
        %v2730 = vunpack.c.l.b16 %v1669
        %v2731 = vunpack.c.l.b16 %v1670
        %v2732 = vunpack.c.h.b16 %v1670
        %v2733 = vunpack.c.l.b16 %v1671
        %v2734 = vunpack.c.h.b16 %v1671
        %v2735 = vunpack.c.l.b16 %v1672
        %v2736 = vunpack.c.h.b16 %v1672
        %v2737 = vunpack.c.l.b16 %v1673
        %v2738 = vunpack.c.l.b16 %v1674
        %v2739 = vunpack.c.h.b16 %v1674
        %v2740 = vunpack.c.l.b16 %v1675
        %v2741 = vunpack.c.h.b16 %v1675
        %v2742 = vunpack.c.l.b16 %v1676
        %v2743 = vunpack.c.h.b16 %v1676
        %v2744 = vunpack.c.l.b16 %v1677
        %v2745 = vunpack.c.l.b16 %v1678
        %v2746 = vunpack.c.h.b16 %v1678
        %v2747 = vunpack.c.l.b16 %v1679
        %v2748 = vunpack.c.h.b16 %v1679
        %v2749 = vunpack.c.l.b16 %v1680
        %v2750 = vunpack.c.h.b16 %v1680
        %v2751 = vunpack.c.l.b16 %v1681
        %v2752 = vunpack.c.l.b16 %v1682
        %v2753 = vunpack.c.h.b16 %v1682
        %v2754 = vunpack.c.l.b16 %v1683
        %v2755 = vunpack.c.h.b16 %v1683
        %v2756 = vunpack.c.l.b16 %v1684
        %v2757 = vunpack.c.h.b16 %v1684
        %v2758 = vunpack.c.l.b16 %v1685
        %v2759 = vunpack.c.l.b16 %v1686
        %v2760 = vunpack.c.h.b16 %v1686
        %v2761 = vunpack.c.l.b16 %v1687
        %v2762 = vunpack.c.h.b16 %v1687
        %v2763 = vunpack.c.l.b16 %v1688
        %v2764 = vunpack.c.h.b16 %v1688
        %v2765 = vunpack.c.l.b16 %v1689
        %v2766 = vunpack.c.l.b16 %v1690
        %v2767 = vunpack.c.h.b16 %v1690
        %v2768 = vunpack.c.l.b16 %v1691
        %v2769 = vunpack.c.h.b16 %v1691
        %v2770 = vunpack.c.l.b16 %v1692
        %v2771 = vunpack.c.h.b16 %v1692
        %v2772 = vunpack.c.l.b16 %v1693
        %v2773 = vunpack.c.l.b16 %v1694
        %v2774 = vunpack.c.h.b16 %v1694
        %v2775 = vunpack.c.l.b16 %v1695
        %v2776 = vunpack.c.h.b16 %v1695
        %v2777 = vunpack.c.l.b16 %v1696
        %v2778 = vunpack.c.h.b16 %v1696
        %v2779 = vunpack.c.l.b16 %v1697
        %v2780 = vunpack.c.l.b16 %v1698
        %v2781 = vunpack.c.h.b16 %v1698
        %v2782 = vunpack.c.l.b16 %v1699
        %v2783 = vunpack.c.h.b16 %v1699
        %v2784 = vunpack.c.l.b16 %v1700
        %v2785 = vunpack.c.h.b16 %v1700
        %v2786 = vunpack.c.l.b16 %v1701
        %v2787 = vunpack.c.l.b16 %v1702
        %v2788 = vunpack.c.h.b16 %v1702
        %v2789 = vunpack.c.l.b16 %v1703
        %v2790 = vunpack.c.h.b16 %v1703
        %v2791 = vunpack.c.l.b16 %v1704
        %v2792 = vunpack.c.h.b16 %v1704
        %v2793 = vunpack.c.l.b16 %v1705
        %v2794 = vunpack.c.l.b16 %v1706
        %v2795 = vunpack.c.h.b16 %v1706
        %v2796 = vunpack.c.l.b16 %v1707
        %v2797 = vunpack.c.h.b16 %v1707
        %v2798 = vunpack.c.l.b16 %v1708
        %v2799 = vunpack.c.h.b16 %v1708
        %v2800 = vunpack.c.l.b16 %v1709
        %v2801 = vunpack.c.l.b16 %v1710
        %v2802 = vunpack.c.h.b16 %v1710
        %v2803 = vunpack.c.l.b16 %v1711
        %v2804 = vunpack.c.h.b16 %v1711
        %v2805 = vunpack.c.l.b16 %v1712
        %v2806 = vunpack.c.h.b16 %v1712
        %v2807 = vunpack.c.l.b16 %v1713
        %v2808 = vunpack.c.l.b16 %v1714
        %v2809 = vunpack.c.h.b16 %v1714
        %v2810 = vunpack.c.l.b16 %v1715
        %v2811 = vunpack.c.h.b16 %v1715
        %v2812 = vunpack.c.l.b16 %v1716
        %v2813 = vunpack.c.h.b16 %v1716
        %v2814 = vunpack.c.l.b16 %v1717
        %v2815 = vunpack.c.l.b16 %v1718
        %v2816 = vunpack.c.h.b16 %v1718
        %v2817 = vunpack.c.l.b16 %v1719
        %v2818 = vunpack.c.h.b16 %v1719
        %v2819 = vunpack.c.l.b16 %v1720
        %v2820 = vunpack.c.h.b16 %v1720
        %v2821 = vunpack.c.l.b16 %v1721
        %v2822 = vpack.c.b16 %v2129, %v2122
        %v2823 = vpack.c.b16 %v2130, %v2123
        %v2824 = vpack.c.b16 %v2131, %v2124
        %v2825 = vpack.c.b16 %v2132, %v2125
        %v2826 = vpack.c.b16 %v2133, %v2126
        %v2827 = vpack.c.b16 %v2134, %v2127
        %v2828 = vpack.c.b16 %v2135, %v2128
        %v2829 = vpack.c.b16 %v2143, %v2136
        %v2830 = vpack.c.b16 %v2144, %v2137
        %v2831 = vpack.c.b16 %v2145, %v2138
        %v2832 = vpack.c.b16 %v2146, %v2139
        %v2833 = vpack.c.b16 %v2147, %v2140
        %v2834 = vpack.c.b16 %v2148, %v2141
        %v2835 = vpack.c.b16 %v2149, %v2142
        %v2836 = vpack.c.b16 %v2157, %v2150
        %v2837 = vpack.c.b16 %v2158, %v2151
        %v2838 = vpack.c.b16 %v2159, %v2152
        %v2839 = vpack.c.b16 %v2160, %v2153
        %v2840 = vpack.c.b16 %v2161, %v2154
        %v2841 = vpack.c.b16 %v2162, %v2155
        %v2842 = vpack.c.b16 %v2163, %v2156
        %v2843 = vpack.c.b16 %v2171, %v2164
        %v2844 = vpack.c.b16 %v2172, %v2165
        %v2845 = vpack.c.b16 %v2173, %v2166
        %v2846 = vpack.c.b16 %v2174, %v2167
        %v2847 = vpack.c.b16 %v2175, %v2168
        %v2848 = vpack.c.b16 %v2176, %v2169
        %v2849 = vpack.c.b16 %v2177, %v2170
        %v2850 = vpack.c.b16 %v2185, %v2178
        %v2851 = vpack.c.b16 %v2186, %v2179
        %v2852 = vpack.c.b16 %v2187, %v2180
        %v2853 = vpack.c.b16 %v2188, %v2181
        %v2854 = vpack.c.b16 %v2189, %v2182
        %v2855 = vpack.c.b16 %v2190, %v2183
        %v2856 = vpack.c.b16 %v2191, %v2184
        %v2857 = vpack.c.b16 %v2199, %v2192
        %v2858 = vpack.c.b16 %v2200, %v2193
        %v2859 = vpack.c.b16 %v2201, %v2194
        %v2860 = vpack.c.b16 %v2202, %v2195
        %v2861 = vpack.c.b16 %v2203, %v2196
        %v2862 = vpack.c.b16 %v2204, %v2197
        %v2863 = vpack.c.b16 %v2205, %v2198
        %v2864 = vpack.c.b16 %v2213, %v2206
        %v2865 = vpack.c.b16 %v2214, %v2207
        %v2866 = vpack.c.b16 %v2215, %v2208
        %v2867 = vpack.c.b16 %v2216, %v2209
        %v2868 = vpack.c.b16 %v2217, %v2210
        %v2869 = vpack.c.b16 %v2218, %v2211
        %v2870 = vpack.c.b16 %v2219, %v2212
        %v2871 = vpack.c.b16 %v2227, %v2220
        %v2872 = vpack.c.b16 %v2228, %v2221
        %v2873 = vpack.c.b16 %v2229, %v2222
        %v2874 = vpack.c.b16 %v2230, %v2223
        %v2875 = vpack.c.b16 %v2231, %v2224
        %v2876 = vpack.c.b16 %v2232, %v2225
        %v2877 = vpack.c.b16 %v2233, %v2226
        %v2878 = vpack.c.b16 %v2241, %v2234
        %v2879 = vpack.c.b16 %v2242, %v2235
        %v2880 = vpack.c.b16 %v2243, %v2236
        %v2881 = vpack.c.b16 %v2244, %v2237
        %v2882 = vpack.c.b16 %v2245, %v2238
        %v2883 = vpack.c.b16 %v2246, %v2239
        %v2884 = vpack.c.b16 %v2247, %v2240
        %v2885 = vpack.c.b16 %v2255, %v2248
        %v2886 = vpack.c.b16 %v2256, %v2249
        %v2887 = vpack.c.b16 %v2257, %v2250
        %v2888 = vpack.c.b16 %v2258, %v2251
        %v2889 = vpack.c.b16 %v2259, %v2252
        %v2890 = vpack.c.b16 %v2260, %v2253
        %v2891 = vpack.c.b16 %v2261, %v2254
        %v2892 = vpack.c.b16 %v2269, %v2262
        %v2893 = vpack.c.b16 %v2270, %v2263
        %v2894 = vpack.c.b16 %v2271, %v2264
        %v2895 = vpack.c.b16 %v2272, %v2265
        %v2896 = vpack.c.b16 %v2273, %v2266
        %v2897 = vpack.c.b16 %v2274, %v2267
        %v2898 = vpack.c.b16 %v2275, %v2268
        %v2899 = vpack.c.b16 %v2283, %v2276
        %v2900 = vpack.c.b16 %v2284, %v2277
        %v2901 = vpack.c.b16 %v2285, %v2278
        %v2902 = vpack.c.b16 %v2286, %v2279
        %v2903 = vpack.c.b16 %v2287, %v2280
        %v2904 = vpack.c.b16 %v2288, %v2281
        %v2905 = vpack.c.b16 %v2289, %v2282
        %v2906 = vpack.c.b16 %v2297, %v2290
        %v2907 = vpack.c.b16 %v2298, %v2291
        %v2908 = vpack.c.b16 %v2299, %v2292
        %v2909 = vpack.c.b16 %v2300, %v2293
        %v2910 = vpack.c.b16 %v2301, %v2294
        %v2911 = vpack.c.b16 %v2302, %v2295
        %v2912 = vpack.c.b16 %v2303, %v2296
        %v2913 = vpack.c.b16 %v2311, %v2304
        %v2914 = vpack.c.b16 %v2312, %v2305
        %v2915 = vpack.c.b16 %v2313, %v2306
        %v2916 = vpack.c.b16 %v2314, %v2307
        %v2917 = vpack.c.b16 %v2315, %v2308
        %v2918 = vpack.c.b16 %v2316, %v2309
        %v2919 = vpack.c.b16 %v2317, %v2310
        %v2920 = vpack.c.b16 %v2325, %v2318
        %v2921 = vpack.c.b16 %v2326, %v2319
        %v2922 = vpack.c.b16 %v2327, %v2320
        %v2923 = vpack.c.b16 %v2328, %v2321
        %v2924 = vpack.c.b16 %v2329, %v2322
        %v2925 = vpack.c.b16 %v2330, %v2323
        %v2926 = vpack.c.b16 %v2331, %v2324
        %v2927 = vpack.c.b16 %v2339, %v2332
        %v2928 = vpack.c.b16 %v2340, %v2333
        %v2929 = vpack.c.b16 %v2341, %v2334
        %v2930 = vpack.c.b16 %v2342, %v2335
        %v2931 = vpack.c.b16 %v2343, %v2336
        %v2932 = vpack.c.b16 %v2344, %v2337
        %v2933 = vpack.c.b16 %v2345, %v2338
        %v2934 = vpack.c.b16 %v2353, %v2346
        %v2935 = vpack.c.b16 %v2354, %v2347
        %v2936 = vpack.c.b16 %v2355, %v2348
        %v2937 = vpack.c.b16 %v2356, %v2349
        %v2938 = vpack.c.b16 %v2357, %v2350
        %v2939 = vpack.c.b16 %v2358, %v2351
        %v2940 = vpack.c.b16 %v2359, %v2352
        %v2941 = vpack.c.b16 %v2367, %v2360
        %v2942 = vpack.c.b16 %v2368, %v2361
        %v2943 = vpack.c.b16 %v2369, %v2362
        %v2944 = vpack.c.b16 %v2370, %v2363
        %v2945 = vpack.c.b16 %v2371, %v2364
        %v2946 = vpack.c.b16 %v2372, %v2365
        %v2947 = vpack.c.b16 %v2373, %v2366
        %v2948 = vpack.c.b16 %v2381, %v2374
        %v2949 = vpack.c.b16 %v2382, %v2375
        %v2950 = vpack.c.b16 %v2383, %v2376
        %v2951 = vpack.c.b16 %v2384, %v2377
        %v2952 = vpack.c.b16 %v2385, %v2378
        %v2953 = vpack.c.b16 %v2386, %v2379
        %v2954 = vpack.c.b16 %v2387, %v2380
        %v2955 = vpack.c.b16 %v2395, %v2388
        %v2956 = vpack.c.b16 %v2396, %v2389
        %v2957 = vpack.c.b16 %v2397, %v2390
        %v2958 = vpack.c.b16 %v2398, %v2391
        %v2959 = vpack.c.b16 %v2399, %v2392
        %v2960 = vpack.c.b16 %v2400, %v2393
        %v2961 = vpack.c.b16 %v2401, %v2394
        %v2962 = vpack.c.b16 %v2409, %v2402
        %v2963 = vpack.c.b16 %v2410, %v2403
        %v2964 = vpack.c.b16 %v2411, %v2404
        %v2965 = vpack.c.b16 %v2412, %v2405
        %v2966 = vpack.c.b16 %v2413, %v2406
        %v2967 = vpack.c.b16 %v2414, %v2407
        %v2968 = vpack.c.b16 %v2415, %v2408
        %v2969 = vpack.c.b16 %v2423, %v2416
        %v2970 = vpack.c.b16 %v2424, %v2417
        %v2971 = vpack.c.b16 %v2425, %v2418
        %v2972 = vpack.c.b16 %v2426, %v2419
        %v2973 = vpack.c.b16 %v2427, %v2420
        %v2974 = vpack.c.b16 %v2428, %v2421
        %v2975 = vpack.c.b16 %v2429, %v2422
        %v2976 = vpack.c.b16 %v2437, %v2430
        %v2977 = vpack.c.b16 %v2438, %v2431
        %v2978 = vpack.c.b16 %v2439, %v2432
        %v2979 = vpack.c.b16 %v2440, %v2433
        %v2980 = vpack.c.b16 %v2441, %v2434
        %v2981 = vpack.c.b16 %v2442, %v2435
        %v2982 = vpack.c.b16 %v2443, %v2436
        %v2983 = vpack.c.b16 %v2451, %v2444
        %v2984 = vpack.c.b16 %v2452, %v2445
        %v2985 = vpack.c.b16 %v2453, %v2446
        %v2986 = vpack.c.b16 %v2454, %v2447
        %v2987 = vpack.c.b16 %v2455, %v2448
        %v2988 = vpack.c.b16 %v2456, %v2449
        %v2989 = vpack.c.b16 %v2457, %v2450
        %v2990 = vpack.c.b16 %v2465, %v2458
        %v2991 = vpack.c.b16 %v2466, %v2459
        %v2992 = vpack.c.b16 %v2467, %v2460
        %v2993 = vpack.c.b16 %v2468, %v2461
        %v2994 = vpack.c.b16 %v2469, %v2462
        %v2995 = vpack.c.b16 %v2470, %v2463
        %v2996 = vpack.c.b16 %v2471, %v2464
        %v2997 = vpack.c.b16 %v2479, %v2472
        %v2998 = vpack.c.b16 %v2480, %v2473
        %v2999 = vpack.c.b16 %v2481, %v2474
        %v3000 = vpack.c.b16 %v2482, %v2475
        %v3001 = vpack.c.b16 %v2483, %v2476
        %v3002 = vpack.c.b16 %v2484, %v2477
        %v3003 = vpack.c.b16 %v2485, %v2478
        %v3004 = vpack.c.b16 %v2493, %v2486
        %v3005 = vpack.c.b16 %v2494, %v2487
        %v3006 = vpack.c.b16 %v2495, %v2488
        %v3007 = vpack.c.b16 %v2496, %v2489
        %v3008 = vpack.c.b16 %v2497, %v2490
        %v3009 = vpack.c.b16 %v2498, %v2491
        %v3010 = vpack.c.b16 %v2499, %v2492
        %v3011 = vpack.c.b16 %v2507, %v2500
        %v3012 = vpack.c.b16 %v2508, %v2501
        %v3013 = vpack.c.b16 %v2509, %v2502
        %v3014 = vpack.c.b16 %v2510, %v2503
        %v3015 = vpack.c.b16 %v2511, %v2504
        %v3016 = vpack.c.b16 %v2512, %v2505
        %v3017 = vpack.c.b16 %v2513, %v2506
        %v3018 = vpack.c.b16 %v2521, %v2514
        %v3019 = vpack.c.b16 %v2522, %v2515
        %v3020 = vpack.c.b16 %v2523, %v2516
        %v3021 = vpack.c.b16 %v2524, %v2517
        %v3022 = vpack.c.b16 %v2525, %v2518
        %v3023 = vpack.c.b16 %v2526, %v2519
        %v3024 = vpack.c.b16 %v2527, %v2520
        %v3025 = vpack.c.b16 %v2535, %v2528
        %v3026 = vpack.c.b16 %v2536, %v2529
        %v3027 = vpack.c.b16 %v2537, %v2530
        %v3028 = vpack.c.b16 %v2538, %v2531
        %v3029 = vpack.c.b16 %v2539, %v2532
        %v3030 = vpack.c.b16 %v2540, %v2533
        %v3031 = vpack.c.b16 %v2541, %v2534
        %v3032 = vpack.c.b16 %v2549, %v2542
        %v3033 = vpack.c.b16 %v2550, %v2543
        %v3034 = vpack.c.b16 %v2551, %v2544
        %v3035 = vpack.c.b16 %v2552, %v2545
        %v3036 = vpack.c.b16 %v2553, %v2546
        %v3037 = vpack.c.b16 %v2554, %v2547
        %v3038 = vpack.c.b16 %v2555, %v2548
        %v3039 = vpack.c.b16 %v2563, %v2556
        %v3040 = vpack.c.b16 %v2564, %v2557
        %v3041 = vpack.c.b16 %v2565, %v2558
        %v3042 = vpack.c.b16 %v2566, %v2559
        %v3043 = vpack.c.b16 %v2567, %v2560
        %v3044 = vpack.c.b16 %v2568, %v2561
        %v3045 = vpack.c.b16 %v2569, %v2562
        %v3046 = vpack.c.b16 %v2577, %v2570
        %v3047 = vpack.c.b16 %v2578, %v2571
        %v3048 = vpack.c.b16 %v2579, %v2572
        %v3049 = vpack.c.b16 %v2580, %v2573
        %v3050 = vpack.c.b16 %v2581, %v2574
        %v3051 = vpack.c.b16 %v2582, %v2575
        %v3052 = vpack.c.b16 %v2583, %v2576
        %v3053 = vpack.c.b16 %v2591, %v2584
        %v3054 = vpack.c.b16 %v2592, %v2585
        %v3055 = vpack.c.b16 %v2593, %v2586
        %v3056 = vpack.c.b16 %v2594, %v2587
        %v3057 = vpack.c.b16 %v2595, %v2588
        %v3058 = vpack.c.b16 %v2596, %v2589
        %v3059 = vpack.c.b16 %v2597, %v2590
        %v3060 = vpack.c.b16 %v2605, %v2598
        %v3061 = vpack.c.b16 %v2606, %v2599
        %v3062 = vpack.c.b16 %v2607, %v2600
        %v3063 = vpack.c.b16 %v2608, %v2601
        %v3064 = vpack.c.b16 %v2609, %v2602
        %v3065 = vpack.c.b16 %v2610, %v2603
        %v3066 = vpack.c.b16 %v2611, %v2604
        %v3067 = vpack.c.b16 %v2619, %v2612
        %v3068 = vpack.c.b16 %v2620, %v2613
        %v3069 = vpack.c.b16 %v2621, %v2614
        %v3070 = vpack.c.b16 %v2622, %v2615
        %v3071 = vpack.c.b16 %v2623, %v2616
        %v3072 = vpack.c.b16 %v2624, %v2617
        %v3073 = vpack.c.b16 %v2625, %v2618
        %v3074 = vpack.c.b16 %v2633, %v2626
        %v3075 = vpack.c.b16 %v2634, %v2627
        %v3076 = vpack.c.b16 %v2635, %v2628
        %v3077 = vpack.c.b16 %v2636, %v2629
        %v3078 = vpack.c.b16 %v2637, %v2630
        %v3079 = vpack.c.b16 %v2638, %v2631
        %v3080 = vpack.c.b16 %v2639, %v2632
        %v3081 = vpack.c.b16 %v2647, %v2640
        %v3082 = vpack.c.b16 %v2648, %v2641
        %v3083 = vpack.c.b16 %v2649, %v2642
        %v3084 = vpack.c.b16 %v2650, %v2643
        %v3085 = vpack.c.b16 %v2651, %v2644
        %v3086 = vpack.c.b16 %v2652, %v2645
        %v3087 = vpack.c.b16 %v2653, %v2646
        %v3088 = vpack.c.b16 %v2661, %v2654
        %v3089 = vpack.c.b16 %v2662, %v2655
        %v3090 = vpack.c.b16 %v2663, %v2656
        %v3091 = vpack.c.b16 %v2664, %v2657
        %v3092 = vpack.c.b16 %v2665, %v2658
        %v3093 = vpack.c.b16 %v2666, %v2659
        %v3094 = vpack.c.b16 %v2667, %v2660
        %v3095 = vpack.c.b16 %v2675, %v2668
        %v3096 = vpack.c.b16 %v2676, %v2669
        %v3097 = vpack.c.b16 %v2677, %v2670
        %v3098 = vpack.c.b16 %v2678, %v2671
        %v3099 = vpack.c.b16 %v2679, %v2672
        %v3100 = vpack.c.b16 %v2680, %v2673
        %v3101 = vpack.c.b16 %v2681, %v2674
        %v3102 = vpack.c.b16 %v2689, %v2682
        %v3103 = vpack.c.b16 %v2690, %v2683
        %v3104 = vpack.c.b16 %v2691, %v2684
        %v3105 = vpack.c.b16 %v2692, %v2685
        %v3106 = vpack.c.b16 %v2693, %v2686
        %v3107 = vpack.c.b16 %v2694, %v2687
        %v3108 = vpack.c.b16 %v2695, %v2688
        %v3109 = vpack.c.b16 %v2703, %v2696
        %v3110 = vpack.c.b16 %v2704, %v2697
        %v3111 = vpack.c.b16 %v2705, %v2698
        %v3112 = vpack.c.b16 %v2706, %v2699
        %v3113 = vpack.c.b16 %v2707, %v2700
        %v3114 = vpack.c.b16 %v2708, %v2701
        %v3115 = vpack.c.b16 %v2709, %v2702
        %v3116 = vpack.c.b16 %v2717, %v2710
        %v3117 = vpack.c.b16 %v2718, %v2711
        %v3118 = vpack.c.b16 %v2719, %v2712
        %v3119 = vpack.c.b16 %v2720, %v2713
        %v3120 = vpack.c.b16 %v2721, %v2714
        %v3121 = vpack.c.b16 %v2722, %v2715
        %v3122 = vpack.c.b16 %v2723, %v2716
        %v3123 = vpack.c.b16 %v2731, %v2724
        %v3124 = vpack.c.b16 %v2732, %v2725
        %v3125 = vpack.c.b16 %v2733, %v2726
        %v3126 = vpack.c.b16 %v2734, %v2727
        %v3127 = vpack.c.b16 %v2735, %v2728
        %v3128 = vpack.c.b16 %v2736, %v2729
        %v3129 = vpack.c.b16 %v2737, %v2730
        %v3130 = vpack.c.b16 %v2745, %v2738
        %v3131 = vpack.c.b16 %v2746, %v2739
        %v3132 = vpack.c.b16 %v2747, %v2740
        %v3133 = vpack.c.b16 %v2748, %v2741
        %v3134 = vpack.c.b16 %v2749, %v2742
        %v3135 = vpack.c.b16 %v2750, %v2743
        %v3136 = vpack.c.b16 %v2751, %v2744
        %v3137 = vpack.c.b16 %v2759, %v2752
        %v3138 = vpack.c.b16 %v2760, %v2753
        %v3139 = vpack.c.b16 %v2761, %v2754
        %v3140 = vpack.c.b16 %v2762, %v2755
        %v3141 = vpack.c.b16 %v2763, %v2756
        %v3142 = vpack.c.b16 %v2764, %v2757
        %v3143 = vpack.c.b16 %v2765, %v2758
        %v3144 = vpack.c.b16 %v2773, %v2766
        %v3145 = vpack.c.b16 %v2774, %v2767
        %v3146 = vpack.c.b16 %v2775, %v2768
        %v3147 = vpack.c.b16 %v2776, %v2769
        %v3148 = vpack.c.b16 %v2777, %v2770
        %v3149 = vpack.c.b16 %v2778, %v2771
        %v3150 = vpack.c.b16 %v2779, %v2772
        %v3151 = vpack.c.b16 %v2787, %v2780
        %v3152 = vpack.c.b16 %v2788, %v2781
        %v3153 = vpack.c.b16 %v2789, %v2782
        %v3154 = vpack.c.b16 %v2790, %v2783
        %v3155 = vpack.c.b16 %v2791, %v2784
        %v3156 = vpack.c.b16 %v2792, %v2785
        %v3157 = vpack.c.b16 %v2793, %v2786
        %v3158 = vpack.c.b16 %v2801, %v2794
        %v3159 = vpack.c.b16 %v2802, %v2795
        %v3160 = vpack.c.b16 %v2803, %v2796
        %v3161 = vpack.c.b16 %v2804, %v2797
        %v3162 = vpack.c.b16 %v2805, %v2798
        %v3163 = vpack.c.b16 %v2806, %v2799
        %v3164 = vpack.c.b16 %v2807, %v2800
        %v3165 = vpack.c.b16 %v2815, %v2808
        %v3166 = vpack.c.b16 %v2816, %v2809
        %v3167 = vpack.c.b16 %v2817, %v2810
        %v3168 = vpack.c.b16 %v2818, %v2811
        %v3169 = vpack.c.b16 %v2819, %v2812
        %v3170 = vpack.c.b16 %v2820, %v2813
        %v3171 = vpack.c.b16 %v2821, %v2814
        %vm3522 = vcmask 261120
        %v3524 = vsel %vm3522, %v1321, 0
        %3526 = vmatprep.subr.bf16.mxu0 %v2823
        %3527 = vmatpush1.bf16.msra.mxu0 %v2822
        %3528 = vmatprep.subr.bf16.mxu0 %v2830
        %3529 = vmatpush1.bf16.msra.mxu0 %v2829
        %3530 = vmatprep.subr.bf16.mxu0 %v2837
        %3531 = vmatpush1.bf16.msra.mxu0 %v2836
        %3532 = vmatprep.subr.bf16.mxu0 %v2844
        %3533 = vmatpush1.bf16.msra.mxu0 %v2843
        %3534 = vmatprep.subr.bf16.mxu0 %v2851
        %3535 = vmatpush1.bf16.msra.mxu0 %v2850
        %3536 = vmatprep.subr.bf16.mxu0 %v2858
        %3537 = vmatpush1.bf16.msra.mxu0 %v2857
        %3538 = vmatprep.subr.bf16.mxu0 %v2865
        %3539 = vmatpush1.bf16.msra.mxu0 %v2864
        %3540 = vmatprep.subr.bf16.mxu0 %v2872
        %3541 = vmatpush1.bf16.msra.mxu0 %v2871
        %3542 = vmatprep.subr.bf16.mxu0 %v2879
        %3543 = vmatpush1.bf16.msra.mxu0 %v2878
        %3544 = vmatprep.subr.bf16.mxu0 %v2886
        %3545 = vmatpush1.bf16.msra.mxu0 %v2885
        %3546 = vmatprep.subr.bf16.mxu0 %v2893
        %3547 = vmatpush1.bf16.msra.mxu0 %v2892
        %3548 = vmatprep.subr.bf16.mxu0 %v2900
        %3549 = vmatpush1.bf16.msra.mxu0 %v2899
        %3550 = vmatprep.subr.bf16.mxu0 %v2907
        %3551 = vmatpush1.bf16.msra.mxu0 %v2906
        %3552 = vmatprep.subr.bf16.mxu0 %v2914
        %3553 = vmatpush1.bf16.msra.mxu0 %v2913
        %3554 = vmatprep.subr.bf16.mxu0 %v2921
        %3555 = vmatpush1.bf16.msra.mxu0 %v2920
        %3556 = vmatprep.subr.bf16.mxu0 %v2928
        %3557 = vmatpush1.bf16.msra.mxu0 %v2927
        %3558 = vmatprep.mubr.bf16.mxu0 %v1316
        %3559 = vmatmul.mubr.bf16.gmra.mrb[0].mxu0 %v1315
        %v3560 = vpop.f32.mrb[0].mxu0
        %v3561 = vadd.f32 0.0, %v3560
        %v3562 = vpop.f32.mrb[0].mxu0
        %v3563 = vadd.f32 0.0, %v3562
        %v3564 = vpop.f32.mrb[0].mxu0
        %v3565 = vpop.f32.mrb[0].mxu0
        %3566 = vdwg.mxu0
        %3567 = vmatprep.subr.bf16.mxu0 %v2935
        %3568 = vmatpush1.bf16.msra.mxu0 %v2934
        %3569 = vmatprep.subr.bf16.mxu0 %v2942
        %3570 = vmatpush1.bf16.msra.mxu0 %v2941
        %3571 = vmatprep.subr.bf16.mxu0 %v2949
        %3572 = vmatpush1.bf16.msra.mxu0 %v2948
        %3573 = vmatprep.subr.bf16.mxu0 %v2956
        %3574 = vmatpush1.bf16.msra.mxu0 %v2955
        %3575 = vmatprep.subr.bf16.mxu0 %v2963
        %3576 = vmatpush1.bf16.msra.mxu0 %v2962
        %3577 = vmatprep.subr.bf16.mxu0 %v2970
        %3578 = vmatpush1.bf16.msra.mxu0 %v2969
        %3579 = vmatprep.subr.bf16.mxu0 %v2977
        %3580 = vmatpush1.bf16.msra.mxu0 %v2976
        %3581 = vmatprep.subr.bf16.mxu0 %v2984
        %3582 = vmatpush1.bf16.msra.mxu0 %v2983
        %3583 = vmatprep.subr.bf16.mxu0 %v2991
        %3584 = vmatpush1.bf16.msra.mxu0 %v2990
        %3585 = vmatprep.subr.bf16.mxu0 %v2998
        %3586 = vmatpush1.bf16.msra.mxu0 %v2997
        %3587 = vmatprep.subr.bf16.mxu0 %v3005
        %3588 = vmatpush1.bf16.msra.mxu0 %v3004
        %3589 = vmatprep.subr.bf16.mxu0 %v3012
        %3590 = vmatpush1.bf16.msra.mxu0 %v3011
        %3591 = vmatprep.subr.bf16.mxu0 %v3019
        %3592 = vmatpush1.bf16.msra.mxu0 %v3018
        %3593 = vmatprep.subr.bf16.mxu0 %v3026
        %3594 = vmatpush1.bf16.msra.mxu0 %v3025
        %3595 = vmatprep.subr.bf16.mxu0 %v3033
        %3596 = vmatpush1.bf16.msra.mxu0 %v3032
        %3597 = vmatprep.subr.bf16.mxu0 %v3040
        %3598 = vmatpush1.bf16.msra.mxu0 %v3039
        %3599 = vmatprep.mubr.bf16.mxu0 %v1318
        %3600 = vmatmul.mubr.bf16.gmra.mrb[0].mxu0 %v1317
        %v3601 = vpop.f32.mrb[0].mxu0
        %v3602 = vadd.f32 %v3561, %v3601
        %v3603 = vpop.f32.mrb[0].mxu0
        %v3604 = vadd.f32 %v3563, %v3603
        %v3605 = vpop.f32.mrb[0].mxu0
        %v3606 = vpop.f32.mrb[0].mxu0
        %3607 = vdwg.mxu0
        %3608 = vmatprep.subr.bf16.mxu0 %v3047
        %3609 = vmatpush1.bf16.msra.mxu0 %v3046
        %3610 = vmatprep.subr.bf16.mxu0 %v3054
        %3611 = vmatpush1.bf16.msra.mxu0 %v3053
        %3612 = vmatprep.subr.bf16.mxu0 %v3061
        %3613 = vmatpush1.bf16.msra.mxu0 %v3060
        %3614 = vmatprep.subr.bf16.mxu0 %v3068
        %3615 = vmatpush1.bf16.msra.mxu0 %v3067
        %3616 = vmatprep.subr.bf16.mxu0 %v3075
        %3617 = vmatpush1.bf16.msra.mxu0 %v3074
        %3618 = vmatprep.subr.bf16.mxu0 %v3082
        %3619 = vmatpush1.bf16.msra.mxu0 %v3081
        %3620 = vmatprep.subr.bf16.mxu0 %v3089
        %3621 = vmatpush1.bf16.msra.mxu0 %v3088
        %3622 = vmatprep.subr.bf16.mxu0 %v3096
        %3623 = vmatpush1.bf16.msra.mxu0 %v3095
        %3624 = vmatprep.subr.bf16.mxu0 %v3103
        %3625 = vmatpush1.bf16.msra.mxu0 %v3102
        %3626 = vmatprep.subr.bf16.mxu0 %v3110
        %3627 = vmatpush1.bf16.msra.mxu0 %v3109
        %3628 = vmatprep.subr.bf16.mxu0 %v3117
        %3629 = vmatpush1.bf16.msra.mxu0 %v3116
        %3630 = vmatprep.subr.bf16.mxu0 %v3124
        %3631 = vmatpush1.bf16.msra.mxu0 %v3123
        %3632 = vmatprep.subr.bf16.mxu0 %v3131
        %3633 = vmatpush1.bf16.msra.mxu0 %v3130
        %3634 = vmatprep.subr.bf16.mxu0 %v3138
        %3635 = vmatpush1.bf16.msra.mxu0 %v3137
        %3636 = vmatprep.subr.bf16.mxu0 %v3145
        %3637 = vmatpush1.bf16.msra.mxu0 %v3144
        %3638 = vmatprep.subr.bf16.mxu0 %v3152
        %3639 = vmatpush1.bf16.msra.mxu0 %v3151
        %3640 = vmatprep.mubr.bf16.mxu0 %v1320
        %3641 = vmatmul.mubr.bf16.gmra.mrb[0].mxu0 %v1319
        %v3642 = vpop.f32.mrb[0].mxu0
        %v3643 = vadd.f32 %v3602, %v3642
        %v3644 = vpop.f32.mrb[0].mxu0
        %v3645 = vadd.f32 %v3604, %v3644
        %v3646 = vpop.f32.mrb[0].mxu0
        %v3647 = vpop.f32.mrb[0].mxu0
        %3648 = vdwg.mxu0
        %3649 = vmatprep.subr.bf16.mxu0 %v3159
        %3650 = vmatpush1.bf16.msra.mxu0 %v3158
        %3651 = vmatprep.subr.bf16.mxu0 %v3166
        %3652 = vmatpush1.bf16.msra.mxu0 %v3165
        %3653 = vmatprep.subr.bf16.mxu0 0
        %3654 = vmatpush1.bf16.msra.mxu0 0
        %3655 = vmatprep.subr.bf16.mxu0 0
        %3656 = vmatpush1.bf16.msra.mxu0 0
        %3657 = vmatprep.subr.bf16.mxu0 0
        %3658 = vmatpush1.bf16.msra.mxu0 0
        %3659 = vmatprep.subr.bf16.mxu0 0
        %3660 = vmatpush1.bf16.msra.mxu0 0
        %3661 = vmatprep.subr.bf16.mxu0 0
        %3662 = vmatpush1.bf16.msra.mxu0 0
        %3663 = vmatprep.subr.bf16.mxu0 0
        %3664 = vmatpush1.bf16.msra.mxu0 0
        %3665 = vmatprep.subr.bf16.mxu0 0
        %3666 = vmatpush1.bf16.msra.mxu0 0
        %3667 = vmatprep.subr.bf16.mxu0 0
        %3668 = vmatpush1.bf16.msra.mxu0 0
        %3669 = vmatprep.subr.bf16.mxu0 0
        %3670 = vmatpush1.bf16.msra.mxu0 0
        %3671 = vmatprep.subr.bf16.mxu0 0
        %3672 = vmatpush1.bf16.msra.mxu0 0
        %3673 = vmatprep.subr.bf16.mxu0 0
        %3674 = vmatpush1.bf16.msra.mxu0 0
        %3675 = vmatprep.subr.bf16.mxu0 0
        %3676 = vmatpush1.bf16.msra.mxu0 0
        %3677 = vmatprep.subr.bf16.mxu0 0
        %3678 = vmatpush1.bf16.msra.mxu0 0
        %3679 = vmatprep.subr.bf16.mxu0 0
        %3680 = vmatpush1.bf16.msra.mxu0 0
        %3681 = vmatprep.mubr.bf16.mxu0 0
        %3682 = vmatmul.mubr.bf16.gmra.mrb[0].mxu0 %v3524
        %v3683 = vpop.f32.mrb[0].mxu0
        %v3684 = vadd.f32 %v3643, %v3683
        %v3685 = vpop.f32.mrb[0].mxu0
        %v3686 = vadd.f32 %v3645, %v3685
        %v3687 = vpop.f32.mrb[0].mxu0
        %v3688 = vpop.f32.mrb[0].mxu0
        %3689 = vdwg.mxu0
        %3690 = vmatprep.subr.bf16.mxu0 %v2825
        %3691 = vmatpush1.bf16.msra.mxu0 %v2824
        %3692 = vmatprep.subr.bf16.mxu0 %v2832
        %3693 = vmatpush1.bf16.msra.mxu0 %v2831
        %3694 = vmatprep.subr.bf16.mxu0 %v2839
        %3695 = vmatpush1.bf16.msra.mxu0 %v2838
        %3696 = vmatprep.subr.bf16.mxu0 %v2846
        %3697 = vmatpush1.bf16.msra.mxu0 %v2845
        %3698 = vmatprep.subr.bf16.mxu0 %v2853
        %3699 = vmatpush1.bf16.msra.mxu0 %v2852
        %3700 = vmatprep.subr.bf16.mxu0 %v2860
        %3701 = vmatpush1.bf16.msra.mxu0 %v2859
        %3702 = vmatprep.subr.bf16.mxu0 %v2867
        %3703 = vmatpush1.bf16.msra.mxu0 %v2866
        %3704 = vmatprep.subr.bf16.mxu0 %v2874
        %3705 = vmatpush1.bf16.msra.mxu0 %v2873
        %3706 = vmatprep.subr.bf16.mxu0 %v2881
        %3707 = vmatpush1.bf16.msra.mxu0 %v2880
        %3708 = vmatprep.subr.bf16.mxu0 %v2888
        %3709 = vmatpush1.bf16.msra.mxu0 %v2887
        %3710 = vmatprep.subr.bf16.mxu0 %v2895
        %3711 = vmatpush1.bf16.msra.mxu0 %v2894
        %3712 = vmatprep.subr.bf16.mxu0 %v2902
        %3713 = vmatpush1.bf16.msra.mxu0 %v2901
        %3714 = vmatprep.subr.bf16.mxu0 %v2909
        %3715 = vmatpush1.bf16.msra.mxu0 %v2908
        %3716 = vmatprep.subr.bf16.mxu0 %v2916
        %3717 = vmatpush1.bf16.msra.mxu0 %v2915
        %3718 = vmatprep.subr.bf16.mxu0 %v2923
        %3719 = vmatpush1.bf16.msra.mxu0 %v2922
        %3720 = vmatprep.subr.bf16.mxu0 %v2930
        %3721 = vmatpush1.bf16.msra.mxu0 %v2929
        %3722 = vmatprep.mubr.bf16.mxu0 %v1316
        %3723 = vmatmul.mubr.bf16.gmra.mrb[0].mxu0 %v1315
        %v3724 = vpop.f32.mrb[0].mxu0
        %v3725 = vadd.f32 0.0, %v3724
        %v3726 = vpop.f32.mrb[0].mxu0
        %v3727 = vadd.f32 0.0, %v3726
        %v3728 = vpop.f32.mrb[0].mxu0
        %v3729 = vpop.f32.mrb[0].mxu0
        %3730 = vdwg.mxu0
        %3731 = vmatprep.subr.bf16.mxu0 %v2937
        %3732 = vmatpush1.bf16.msra.mxu0 %v2936
        %3733 = vmatprep.subr.bf16.mxu0 %v2944
        %3734 = vmatpush1.bf16.msra.mxu0 %v2943
        %3735 = vmatprep.subr.bf16.mxu0 %v2951
        %3736 = vmatpush1.bf16.msra.mxu0 %v2950
        %3737 = vmatprep.subr.bf16.mxu0 %v2958
        %3738 = vmatpush1.bf16.msra.mxu0 %v2957
        %3739 = vmatprep.subr.bf16.mxu0 %v2965
        %3740 = vmatpush1.bf16.msra.mxu0 %v2964
        %3741 = vmatprep.subr.bf16.mxu0 %v2972
        %3742 = vmatpush1.bf16.msra.mxu0 %v2971
        %3743 = vmatprep.subr.bf16.mxu0 %v2979
        %3744 = vmatpush1.bf16.msra.mxu0 %v2978
        %3745 = vmatprep.subr.bf16.mxu0 %v2986
        %3746 = vmatpush1.bf16.msra.mxu0 %v2985
        %3747 = vmatprep.subr.bf16.mxu0 %v2993
        %3748 = vmatpush1.bf16.msra.mxu0 %v2992
        %3749 = vmatprep.subr.bf16.mxu0 %v3000
        %3750 = vmatpush1.bf16.msra.mxu0 %v2999
        %3751 = vmatprep.subr.bf16.mxu0 %v3007
        %3752 = vmatpush1.bf16.msra.mxu0 %v3006
        %3753 = vmatprep.subr.bf16.mxu0 %v3014
        %3754 = vmatpush1.bf16.msra.mxu0 %v3013
        %3755 = vmatprep.subr.bf16.mxu0 %v3021
        %3756 = vmatpush1.bf16.msra.mxu0 %v3020
        %3757 = vmatprep.subr.bf16.mxu0 %v3028
        %3758 = vmatpush1.bf16.msra.mxu0 %v3027
        %3759 = vmatprep.subr.bf16.mxu0 %v3035
        %3760 = vmatpush1.bf16.msra.mxu0 %v3034
        %3761 = vmatprep.subr.bf16.mxu0 %v3042
        %3762 = vmatpush1.bf16.msra.mxu0 %v3041
        %3763 = vmatprep.mubr.bf16.mxu0 %v1318
        %3764 = vmatmul.mubr.bf16.gmra.mrb[0].mxu0 %v1317
        %v3765 = vpop.f32.mrb[0].mxu0
        %v3766 = vadd.f32 %v3725, %v3765
        %v3767 = vpop.f32.mrb[0].mxu0
        %v3768 = vadd.f32 %v3727, %v3767
        %v3769 = vpop.f32.mrb[0].mxu0
        %v3770 = vpop.f32.mrb[0].mxu0
        %3771 = vdwg.mxu0
        %3772 = vmatprep.subr.bf16.mxu0 %v3049
        %3773 = vmatpush1.bf16.msra.mxu0 %v3048
        %3774 = vmatprep.subr.bf16.mxu0 %v3056
        %3775 = vmatpush1.bf16.msra.mxu0 %v3055
        %3776 = vmatprep.subr.bf16.mxu0 %v3063
        %3777 = vmatpush1.bf16.msra.mxu0 %v3062
        %3778 = vmatprep.subr.bf16.mxu0 %v3070
        %3779 = vmatpush1.bf16.msra.mxu0 %v3069
        %3780 = vmatprep.subr.bf16.mxu0 %v3077
        %3781 = vmatpush1.bf16.msra.mxu0 %v3076
        %3782 = vmatprep.subr.bf16.mxu0 %v3084
        %3783 = vmatpush1.bf16.msra.mxu0 %v3083
        %3784 = vmatprep.subr.bf16.mxu0 %v3091
        %3785 = vmatpush1.bf16.msra.mxu0 %v3090
        %3786 = vmatprep.subr.bf16.mxu0 %v3098
        %3787 = vmatpush1.bf16.msra.mxu0 %v3097
        %3788 = vmatprep.subr.bf16.mxu0 %v3105
        %3789 = vmatpush1.bf16.msra.mxu0 %v3104
        %3790 = vmatprep.subr.bf16.mxu0 %v3112
        %3791 = vmatpush1.bf16.msra.mxu0 %v3111
        %3792 = vmatprep.subr.bf16.mxu0 %v3119
        %3793 = vmatpush1.bf16.msra.mxu0 %v3118
        %3794 = vmatprep.subr.bf16.mxu0 %v3126
        %3795 = vmatpush1.bf16.msra.mxu0 %v3125
        %3796 = vmatprep.subr.bf16.mxu0 %v3133
        %3797 = vmatpush1.bf16.msra.mxu0 %v3132
        %3798 = vmatprep.subr.bf16.mxu0 %v3140
        %3799 = vmatpush1.bf16.msra.mxu0 %v3139
        %3800 = vmatprep.subr.bf16.mxu0 %v3147
        %3801 = vmatpush1.bf16.msra.mxu0 %v3146
        %3802 = vmatprep.subr.bf16.mxu0 %v3154
        %3803 = vmatpush1.bf16.msra.mxu0 %v3153
        %3804 = vmatprep.mubr.bf16.mxu0 %v1320
        %3805 = vmatmul.mubr.bf16.gmra.mrb[0].mxu0 %v1319
        %v3806 = vpop.f32.mrb[0].mxu0
        %v3807 = vadd.f32 %v3766, %v3806
        %v3808 = vpop.f32.mrb[0].mxu0
        %v3809 = vadd.f32 %v3768, %v3808
        %v3810 = vpop.f32.mrb[0].mxu0
        %v3811 = vpop.f32.mrb[0].mxu0
        %3812 = vdwg.mxu0
        %3813 = vmatprep.subr.bf16.mxu0 %v3161
        %3814 = vmatpush1.bf16.msra.mxu0 %v3160
        %3815 = vmatprep.subr.bf16.mxu0 %v3168
        %3816 = vmatpush1.bf16.msra.mxu0 %v3167
        %3817 = vmatprep.subr.bf16.mxu0 0
        %3818 = vmatpush1.bf16.msra.mxu0 0
        %3819 = vmatprep.subr.bf16.mxu0 0
        %3820 = vmatpush1.bf16.msra.mxu0 0
        %3821 = vmatprep.subr.bf16.mxu0 0
        %3822 = vmatpush1.bf16.msra.mxu0 0
        %3823 = vmatprep.subr.bf16.mxu0 0
        %3824 = vmatpush1.bf16.msra.mxu0 0
        %3825 = vmatprep.subr.bf16.mxu0 0
        %3826 = vmatpush1.bf16.msra.mxu0 0
        %3827 = vmatprep.subr.bf16.mxu0 0
        %3828 = vmatpush1.bf16.msra.mxu0 0
        %3829 = vmatprep.subr.bf16.mxu0 0
        %3830 = vmatpush1.bf16.msra.mxu0 0
        %3831 = vmatprep.subr.bf16.mxu0 0
        %3832 = vmatpush1.bf16.msra.mxu0 0
        %3833 = vmatprep.subr.bf16.mxu0 0
        %3834 = vmatpush1.bf16.msra.mxu0 0
        %3835 = vmatprep.subr.bf16.mxu0 0
        %3836 = vmatpush1.bf16.msra.mxu0 0
        %3837 = vmatprep.subr.bf16.mxu0 0
        %3838 = vmatpush1.bf16.msra.mxu0 0
        %3839 = vmatprep.subr.bf16.mxu0 0
        %3840 = vmatpush1.bf16.msra.mxu0 0
        %3841 = vmatprep.subr.bf16.mxu0 0
        %3842 = vmatpush1.bf16.msra.mxu0 0
        %3843 = vmatprep.subr.bf16.mxu0 0
        %3844 = vmatpush1.bf16.msra.mxu0 0
        %3845 = vmatprep.mubr.bf16.mxu0 0
        %3846 = vmatmul.mubr.bf16.gmra.mrb[0].mxu0 %v3524
        %v3847 = vpop.f32.mrb[0].mxu0
        %v3848 = vadd.f32 %v3807, %v3847
        %v3849 = vpop.f32.mrb[0].mxu0
        %v3850 = vadd.f32 %v3809, %v3849
        %v3851 = vpop.f32.mrb[0].mxu0
        %v3852 = vpop.f32.mrb[0].mxu0
        %3853 = vdwg.mxu0
        %3854 = vmatprep.subr.bf16.mxu0 %v2827
        %3855 = vmatpush1.bf16.msra.mxu0 %v2826
        %3856 = vmatprep.subr.bf16.mxu0 %v2834
        %3857 = vmatpush1.bf16.msra.mxu0 %v2833
        %3858 = vmatprep.subr.bf16.mxu0 %v2841
        %3859 = vmatpush1.bf16.msra.mxu0 %v2840
        %3860 = vmatprep.subr.bf16.mxu0 %v2848
        %3861 = vmatpush1.bf16.msra.mxu0 %v2847
        %3862 = vmatprep.subr.bf16.mxu0 %v2855
        %3863 = vmatpush1.bf16.msra.mxu0 %v2854
        %3864 = vmatprep.subr.bf16.mxu0 %v2862
        %3865 = vmatpush1.bf16.msra.mxu0 %v2861
        %3866 = vmatprep.subr.bf16.mxu0 %v2869
        %3867 = vmatpush1.bf16.msra.mxu0 %v2868
        %3868 = vmatprep.subr.bf16.mxu0 %v2876
        %3869 = vmatpush1.bf16.msra.mxu0 %v2875
        %3870 = vmatprep.subr.bf16.mxu0 %v2883
        %3871 = vmatpush1.bf16.msra.mxu0 %v2882
        %3872 = vmatprep.subr.bf16.mxu0 %v2890
        %3873 = vmatpush1.bf16.msra.mxu0 %v2889
        %3874 = vmatprep.subr.bf16.mxu0 %v2897
        %3875 = vmatpush1.bf16.msra.mxu0 %v2896
        %3876 = vmatprep.subr.bf16.mxu0 %v2904
        %3877 = vmatpush1.bf16.msra.mxu0 %v2903
        %3878 = vmatprep.subr.bf16.mxu0 %v2911
        %3879 = vmatpush1.bf16.msra.mxu0 %v2910
        %3880 = vmatprep.subr.bf16.mxu0 %v2918
        %3881 = vmatpush1.bf16.msra.mxu0 %v2917
        %3882 = vmatprep.subr.bf16.mxu0 %v2925
        %3883 = vmatpush1.bf16.msra.mxu0 %v2924
        %3884 = vmatprep.subr.bf16.mxu0 %v2932
        %3885 = vmatpush1.bf16.msra.mxu0 %v2931
        %3886 = vmatprep.mubr.bf16.mxu0 %v1316
        %3887 = vmatmul.mubr.bf16.gmra.mrb[0].mxu0 %v1315
        %v3888 = vpop.f32.mrb[0].mxu0
        %v3889 = vadd.f32 0.0, %v3888
        %v3890 = vpop.f32.mrb[0].mxu0
        %v3891 = vadd.f32 0.0, %v3890
        %v3892 = vpop.f32.mrb[0].mxu0
        %v3893 = vpop.f32.mrb[0].mxu0
        %3894 = vdwg.mxu0
        %3895 = vmatprep.subr.bf16.mxu0 %v2939
        %3896 = vmatpush1.bf16.msra.mxu0 %v2938
        %3897 = vmatprep.subr.bf16.mxu0 %v2946
        %3898 = vmatpush1.bf16.msra.mxu0 %v2945
        %3899 = vmatprep.subr.bf16.mxu0 %v2953
        %3900 = vmatpush1.bf16.msra.mxu0 %v2952
        %3901 = vmatprep.subr.bf16.mxu0 %v2960
        %3902 = vmatpush1.bf16.msra.mxu0 %v2959
        %3903 = vmatprep.subr.bf16.mxu0 %v2967
        %3904 = vmatpush1.bf16.msra.mxu0 %v2966
        %3905 = vmatprep.subr.bf16.mxu0 %v2974
        %3906 = vmatpush1.bf16.msra.mxu0 %v2973
        %3907 = vmatprep.subr.bf16.mxu0 %v2981
        %3908 = vmatpush1.bf16.msra.mxu0 %v2980
        %3909 = vmatprep.subr.bf16.mxu0 %v2988
        %3910 = vmatpush1.bf16.msra.mxu0 %v2987
        %3911 = vmatprep.subr.bf16.mxu0 %v2995
        %3912 = vmatpush1.bf16.msra.mxu0 %v2994
        %3913 = vmatprep.subr.bf16.mxu0 %v3002
        %3914 = vmatpush1.bf16.msra.mxu0 %v3001
        %3915 = vmatprep.subr.bf16.mxu0 %v3009
        %3916 = vmatpush1.bf16.msra.mxu0 %v3008
        %3917 = vmatprep.subr.bf16.mxu0 %v3016
        %3918 = vmatpush1.bf16.msra.mxu0 %v3015
        %3919 = vmatprep.subr.bf16.mxu0 %v3023
        %3920 = vmatpush1.bf16.msra.mxu0 %v3022
        %3921 = vmatprep.subr.bf16.mxu0 %v3030
        %3922 = vmatpush1.bf16.msra.mxu0 %v3029
        %3923 = vmatprep.subr.bf16.mxu0 %v3037
        %3924 = vmatpush1.bf16.msra.mxu0 %v3036
        %3925 = vmatprep.subr.bf16.mxu0 %v3044
        %3926 = vmatpush1.bf16.msra.mxu0 %v3043
        %3927 = vmatprep.mubr.bf16.mxu0 %v1318
        %3928 = vmatmul.mubr.bf16.gmra.mrb[0].mxu0 %v1317
        %v3929 = vpop.f32.mrb[0].mxu0
        %v3930 = vadd.f32 %v3889, %v3929
        %v3931 = vpop.f32.mrb[0].mxu0
        %v3932 = vadd.f32 %v3891, %v3931
        %v3933 = vpop.f32.mrb[0].mxu0
        %v3934 = vpop.f32.mrb[0].mxu0
        %3935 = vdwg.mxu0
        %3936 = vmatprep.subr.bf16.mxu0 %v3051
        %3937 = vmatpush1.bf16.msra.mxu0 %v3050
        %3938 = vmatprep.subr.bf16.mxu0 %v3058
        %3939 = vmatpush1.bf16.msra.mxu0 %v3057
        %3940 = vmatprep.subr.bf16.mxu0 %v3065
        %3941 = vmatpush1.bf16.msra.mxu0 %v3064
        %3942 = vmatprep.subr.bf16.mxu0 %v3072
        %3943 = vmatpush1.bf16.msra.mxu0 %v3071
        %3944 = vmatprep.subr.bf16.mxu0 %v3079
        %3945 = vmatpush1.bf16.msra.mxu0 %v3078
        %3946 = vmatprep.subr.bf16.mxu0 %v3086
        %3947 = vmatpush1.bf16.msra.mxu0 %v3085
        %3948 = vmatprep.subr.bf16.mxu0 %v3093
        %3949 = vmatpush1.bf16.msra.mxu0 %v3092
        %3950 = vmatprep.subr.bf16.mxu0 %v3100
        %3951 = vmatpush1.bf16.msra.mxu0 %v3099
        %3952 = vmatprep.subr.bf16.mxu0 %v3107
        %3953 = vmatpush1.bf16.msra.mxu0 %v3106
        %3954 = vmatprep.subr.bf16.mxu0 %v3114
        %3955 = vmatpush1.bf16.msra.mxu0 %v3113
        %3956 = vmatprep.subr.bf16.mxu0 %v3121
        %3957 = vmatpush1.bf16.msra.mxu0 %v3120
        %3958 = vmatprep.subr.bf16.mxu0 %v3128
        %3959 = vmatpush1.bf16.msra.mxu0 %v3127
        %3960 = vmatprep.subr.bf16.mxu0 %v3135
        %3961 = vmatpush1.bf16.msra.mxu0 %v3134
        %3962 = vmatprep.subr.bf16.mxu0 %v3142
        %3963 = vmatpush1.bf16.msra.mxu0 %v3141
        %3964 = vmatprep.subr.bf16.mxu0 %v3149
        %3965 = vmatpush1.bf16.msra.mxu0 %v3148
        %3966 = vmatprep.subr.bf16.mxu0 %v3156
        %3967 = vmatpush1.bf16.msra.mxu0 %v3155
        %3968 = vmatprep.mubr.bf16.mxu0 %v1320
        %3969 = vmatmul.mubr.bf16.gmra.mrb[0].mxu0 %v1319
        %v3970 = vpop.f32.mrb[0].mxu0
        %v3971 = vadd.f32 %v3930, %v3970
        %v3972 = vpop.f32.mrb[0].mxu0
        %v3973 = vadd.f32 %v3932, %v3972
        %v3974 = vpop.f32.mrb[0].mxu0
        %v3975 = vpop.f32.mrb[0].mxu0
        %3976 = vdwg.mxu0
        %3977 = vmatprep.subr.bf16.mxu0 %v3163
        %3978 = vmatpush1.bf16.msra.mxu0 %v3162
        %3979 = vmatprep.subr.bf16.mxu0 %v3170
        %3980 = vmatpush1.bf16.msra.mxu0 %v3169
        %3981 = vmatprep.subr.bf16.mxu0 0
        %3982 = vmatpush1.bf16.msra.mxu0 0
        %3983 = vmatprep.subr.bf16.mxu0 0
        %3984 = vmatpush1.bf16.msra.mxu0 0
        %3985 = vmatprep.subr.bf16.mxu0 0
        %3986 = vmatpush1.bf16.msra.mxu0 0
        %3987 = vmatprep.subr.bf16.mxu0 0
        %3988 = vmatpush1.bf16.msra.mxu0 0
        %3989 = vmatprep.subr.bf16.mxu0 0
        %3990 = vmatpush1.bf16.msra.mxu0 0
        %3991 = vmatprep.subr.bf16.mxu0 0
        %3992 = vmatpush1.bf16.msra.mxu0 0
        %3993 = vmatprep.subr.bf16.mxu0 0
        %3994 = vmatpush1.bf16.msra.mxu0 0
        %3995 = vmatprep.subr.bf16.mxu0 0
        %3996 = vmatpush1.bf16.msra.mxu0 0
        %3997 = vmatprep.subr.bf16.mxu0 0
        %3998 = vmatpush1.bf16.msra.mxu0 0
        %3999 = vmatprep.subr.bf16.mxu0 0
        %4000 = vmatpush1.bf16.msra.mxu0 0
        %4001 = vmatprep.subr.bf16.mxu0 0
        %4002 = vmatpush1.bf16.msra.mxu0 0
        %4003 = vmatprep.subr.bf16.mxu0 0
        %4004 = vmatpush1.bf16.msra.mxu0 0
        %4005 = vmatprep.subr.bf16.mxu0 0
        %4006 = vmatpush1.bf16.msra.mxu0 0
        %4007 = vmatprep.subr.bf16.mxu0 0
        %4008 = vmatpush1.bf16.msra.mxu0 0
        %4009 = vmatprep.mubr.bf16.mxu0 0
        %4010 = vmatmul.mubr.bf16.gmra.mrb[0].mxu0 %v3524
        %v4011 = vpop.f32.mrb[0].mxu0
        %v4012 = vadd.f32 %v3971, %v4011
        %v4013 = vpop.f32.mrb[0].mxu0
        %v4014 = vadd.f32 %v3973, %v4013
        %v4015 = vpop.f32.mrb[0].mxu0
        %v4016 = vpop.f32.mrb[0].mxu0
        %4017 = vdwg.mxu0
        %4018 = vmatprep.subr.bf16.mxu0 0
        %4019 = vmatpush1.bf16.msra.mxu0 %v2828
        %4020 = vmatprep.subr.bf16.mxu0 0
        %4021 = vmatpush1.bf16.msra.mxu0 %v2835
        %4022 = vmatprep.subr.bf16.mxu0 0
        %4023 = vmatpush1.bf16.msra.mxu0 %v2842
        %4024 = vmatprep.subr.bf16.mxu0 0
        %4025 = vmatpush1.bf16.msra.mxu0 %v2849
        %4026 = vmatprep.subr.bf16.mxu0 0
        %4027 = vmatpush1.bf16.msra.mxu0 %v2856
        %4028 = vmatprep.subr.bf16.mxu0 0
        %4029 = vmatpush1.bf16.msra.mxu0 %v2863
        %4030 = vmatprep.subr.bf16.mxu0 0
        %4031 = vmatpush1.bf16.msra.mxu0 %v2870
        %4032 = vmatprep.subr.bf16.mxu0 0
        %4033 = vmatpush1.bf16.msra.mxu0 %v2877
        %4034 = vmatprep.subr.bf16.mxu0 0
        %4035 = vmatpush1.bf16.msra.mxu0 %v2884
        %4036 = vmatprep.subr.bf16.mxu0 0
        %4037 = vmatpush1.bf16.msra.mxu0 %v2891
        %4038 = vmatprep.subr.bf16.mxu0 0
        %4039 = vmatpush1.bf16.msra.mxu0 %v2898
        %4040 = vmatprep.subr.bf16.mxu0 0
        %4041 = vmatpush1.bf16.msra.mxu0 %v2905
        %4042 = vmatprep.subr.bf16.mxu0 0
        %4043 = vmatpush1.bf16.msra.mxu0 %v2912
        %4044 = vmatprep.subr.bf16.mxu0 0
        %4045 = vmatpush1.bf16.msra.mxu0 %v2919
        %4046 = vmatprep.subr.bf16.mxu0 0
        %4047 = vmatpush1.bf16.msra.mxu0 %v2926
        %4048 = vmatprep.subr.bf16.mxu0 0
        %4049 = vmatpush1.bf16.msra.mxu0 %v2933
        %4050 = vmatprep.mubr.bf16.mxu0 %v1316
        %4051 = vmatmul.mubr.bf16.gmra.mrb[0].mxu0 %v1315
        %v4052 = vpop.f32.mrb[0].mxu0
        %v4053 = vadd.f32 0.0, %v4052
        %v4054 = vpop.f32.mrb[0].mxu0
        %v4055 = vpop.f32.mrb[0].mxu0
        %v4056 = vpop.f32.mrb[0].mxu0
        %4057 = vdwg.mxu0
        %4058 = vmatprep.subr.bf16.mxu0 0
        %4059 = vmatpush1.bf16.msra.mxu0 %v2940
        %4060 = vmatprep.subr.bf16.mxu0 0
        %4061 = vmatpush1.bf16.msra.mxu0 %v2947
        %4062 = vmatprep.subr.bf16.mxu0 0
        %4063 = vmatpush1.bf16.msra.mxu0 %v2954
        %4064 = vmatprep.subr.bf16.mxu0 0
        %4065 = vmatpush1.bf16.msra.mxu0 %v2961
        %4066 = vmatprep.subr.bf16.mxu0 0
        %4067 = vmatpush1.bf16.msra.mxu0 %v2968
        %4068 = vmatprep.subr.bf16.mxu0 0
        %4069 = vmatpush1.bf16.msra.mxu0 %v2975
        %4070 = vmatprep.subr.bf16.mxu0 0
        %4071 = vmatpush1.bf16.msra.mxu0 %v2982
        %4072 = vmatprep.subr.bf16.mxu0 0
        %4073 = vmatpush1.bf16.msra.mxu0 %v2989
        %4074 = vmatprep.subr.bf16.mxu0 0
        %4075 = vmatpush1.bf16.msra.mxu0 %v2996
        %4076 = vmatprep.subr.bf16.mxu0 0
        %4077 = vmatpush1.bf16.msra.mxu0 %v3003
        %4078 = vmatprep.subr.bf16.mxu0 0
        %4079 = vmatpush1.bf16.msra.mxu0 %v3010
        %4080 = vmatprep.subr.bf16.mxu0 0
        %4081 = vmatpush1.bf16.msra.mxu0 %v3017
        %4082 = vmatprep.subr.bf16.mxu0 0
        %4083 = vmatpush1.bf16.msra.mxu0 %v3024
        %4084 = vmatprep.subr.bf16.mxu0 0
        %4085 = vmatpush1.bf16.msra.mxu0 %v3031
        %4086 = vmatprep.subr.bf16.mxu0 0
        %4087 = vmatpush1.bf16.msra.mxu0 %v3038
        %4088 = vmatprep.subr.bf16.mxu0 0
        %4089 = vmatpush1.bf16.msra.mxu0 %v3045
        %4090 = vmatprep.mubr.bf16.mxu0 %v1318
        %4091 = vmatmul.mubr.bf16.gmra.mrb[0].mxu0 %v1317
        %v4092 = vpop.f32.mrb[0].mxu0
        %v4093 = vadd.f32 %v4053, %v4092
        %v4094 = vpop.f32.mrb[0].mxu0
        %v4095 = vpop.f32.mrb[0].mxu0
        %v4096 = vpop.f32.mrb[0].mxu0
        %4097 = vdwg.mxu0
        %4098 = vmatprep.subr.bf16.mxu0 0
        %4099 = vmatpush1.bf16.msra.mxu0 %v3052
        %4100 = vmatprep.subr.bf16.mxu0 0
        %4101 = vmatpush1.bf16.msra.mxu0 %v3059
        %4102 = vmatprep.subr.bf16.mxu0 0
        %4103 = vmatpush1.bf16.msra.mxu0 %v3066
        %4104 = vmatprep.subr.bf16.mxu0 0
        %4105 = vmatpush1.bf16.msra.mxu0 %v3073
        %4106 = vmatprep.subr.bf16.mxu0 0
        %4107 = vmatpush1.bf16.msra.mxu0 %v3080
        %4108 = vmatprep.subr.bf16.mxu0 0
        %4109 = vmatpush1.bf16.msra.mxu0 %v3087
        %4110 = vmatprep.subr.bf16.mxu0 0
        %4111 = vmatpush1.bf16.msra.mxu0 %v3094
        %4112 = vmatprep.subr.bf16.mxu0 0
        %4113 = vmatpush1.bf16.msra.mxu0 %v3101
        %4114 = vmatprep.subr.bf16.mxu0 0
        %4115 = vmatpush1.bf16.msra.mxu0 %v3108
        %4116 = vmatprep.subr.bf16.mxu0 0
        %4117 = vmatpush1.bf16.msra.mxu0 %v3115
        %4118 = vmatprep.subr.bf16.mxu0 0
        %4119 = vmatpush1.bf16.msra.mxu0 %v3122
        %4120 = vmatprep.subr.bf16.mxu0 0
        %4121 = vmatpush1.bf16.msra.mxu0 %v3129
        %4122 = vmatprep.subr.bf16.mxu0 0
        %4123 = vmatpush1.bf16.msra.mxu0 %v3136
        %4124 = vmatprep.subr.bf16.mxu0 0
        %4125 = vmatpush1.bf16.msra.mxu0 %v3143
        %4126 = vmatprep.subr.bf16.mxu0 0
        %4127 = vmatpush1.bf16.msra.mxu0 %v3150
        %4128 = vmatprep.subr.bf16.mxu0 0
        %4129 = vmatpush1.bf16.msra.mxu0 %v3157
        %4130 = vmatprep.mubr.bf16.mxu0 %v1320
        %4131 = vmatmul.mubr.bf16.gmra.mrb[0].mxu0 %v1319
        %v4132 = vpop.f32.mrb[0].mxu0
        %v4133 = vadd.f32 %v4093, %v4132
        %v4134 = vpop.f32.mrb[0].mxu0
        %v4135 = vpop.f32.mrb[0].mxu0
        %v4136 = vpop.f32.mrb[0].mxu0
        %4137 = vdwg.mxu0
        %4138 = vmatprep.subr.bf16.mxu0 0
        %4139 = vmatpush1.bf16.msra.mxu0 %v3164
        %4140 = vmatprep.subr.bf16.mxu0 0
        %4141 = vmatpush1.bf16.msra.mxu0 %v3171
        %4142 = vmatprep.subr.bf16.mxu0 0
        %4143 = vmatpush1.bf16.msra.mxu0 0
        %4144 = vmatprep.subr.bf16.mxu0 0
        %4145 = vmatpush1.bf16.msra.mxu0 0
        %4146 = vmatprep.subr.bf16.mxu0 0
        %4147 = vmatpush1.bf16.msra.mxu0 0
        %4148 = vmatprep.subr.bf16.mxu0 0
        %4149 = vmatpush1.bf16.msra.mxu0 0
        %4150 = vmatprep.subr.bf16.mxu0 0
        %4151 = vmatpush1.bf16.msra.mxu0 0
        %4152 = vmatprep.subr.bf16.mxu0 0
        %4153 = vmatpush1.bf16.msra.mxu0 0
        %4154 = vmatprep.subr.bf16.mxu0 0
        %4155 = vmatpush1.bf16.msra.mxu0 0
        %4156 = vmatprep.subr.bf16.mxu0 0
        %4157 = vmatpush1.bf16.msra.mxu0 0
        %4158 = vmatprep.subr.bf16.mxu0 0
        %4159 = vmatpush1.bf16.msra.mxu0 0
        %4160 = vmatprep.subr.bf16.mxu0 0
        %4161 = vmatpush1.bf16.msra.mxu0 0
        %4162 = vmatprep.subr.bf16.mxu0 0
        %4163 = vmatpush1.bf16.msra.mxu0 0
        %4164 = vmatprep.subr.bf16.mxu0 0
        %4165 = vmatpush1.bf16.msra.mxu0 0
        %4166 = vmatprep.subr.bf16.mxu0 0
        %4167 = vmatpush1.bf16.msra.mxu0 0
        %4168 = vmatprep.subr.bf16.mxu0 0
        %4169 = vmatpush1.bf16.msra.mxu0 0
        %4170 = vmatprep.mubr.bf16.mxu0 0
        %4171 = vmatmul.mubr.bf16.gmra.mrb[0].mxu0 %v3524
        %v4172 = vpop.f32.mrb[0].mxu0
        %v4173 = vadd.f32 %v4133, %v4172
        %v4174 = vpop.f32.mrb[0].mxu0
        %v4175 = vpop.f32.mrb[0].mxu0
        %v4176 = vpop.f32.mrb[0].mxu0
        %4177 = vdwg.mxu0
        %v4178 = vrot.slane %v3684, 4
        %v4179 = vadd.f32 %v3684, %v4178
        %v4180 = vrot.slane %v4179, 2
        %v4181 = vadd.f32 %v4179, %v4180
        %v4182 = vrot.slane %v4181, 1
        %v4183 = vadd.f32 %v4181, %v4182
        %v4184 = vrot.slane %v3686, 4
        %v4185 = vadd.f32 %v3686, %v4184
        %v4186 = vrot.slane %v4185, 2
        %v4187 = vadd.f32 %v4185, %v4186
        %v4188 = vrot.slane %v4187, 1
        %v4189 = vadd.f32 %v4187, %v4188
        %v4190 = vrot.slane %v3848, 4
        %v4191 = vadd.f32 %v3848, %v4190
        %v4192 = vrot.slane %v4191, 2
        %v4193 = vadd.f32 %v4191, %v4192
        %v4194 = vrot.slane %v4193, 1
        %v4195 = vadd.f32 %v4193, %v4194
        %v4196 = vrot.slane %v3850, 4
        %v4197 = vadd.f32 %v3850, %v4196
        %v4198 = vrot.slane %v4197, 2
        %v4199 = vadd.f32 %v4197, %v4198
        %v4200 = vrot.slane %v4199, 1
        %v4201 = vadd.f32 %v4199, %v4200
        %v4202 = vrot.slane %v4012, 4
        %v4203 = vadd.f32 %v4012, %v4202
        %v4204 = vrot.slane %v4203, 2
        %v4205 = vadd.f32 %v4203, %v4204
        %v4206 = vrot.slane %v4205, 1
        %v4207 = vadd.f32 %v4205, %v4206
        %v4208 = vrot.slane %v4014, 4
        %v4209 = vadd.f32 %v4014, %v4208
        %v4210 = vrot.slane %v4209, 2
        %v4211 = vadd.f32 %v4209, %v4210
        %v4212 = vrot.slane %v4211, 1
        %v4213 = vadd.f32 %v4211, %v4212
        %v4214 = vrot.slane %v4173, 4
        %v4215 = vadd.f32 %v4173, %v4214
        %v4216 = vrot.slane %v4215, 2
        %v4217 = vadd.f32 %v4215, %v4216
        %v4218 = vrot.slane %v4217, 1
        %v4219 = vadd.f32 %v4217, %v4218
        %v4220 = vmul.f32 %v4183, %v1014
        %v4221 = vmul.f32 %v4189, %v1014
        %v4222 = vmul.f32 %v4195, %v1014
        %v4223 = vmul.f32 %v4201, %v1014
        %v4224 = vmul.f32 %v4207, %v1014
        %v4225 = vmul.f32 %v4213, %v1014
        %v4226 = vmul.f32 %v4219, %v1014
        %v4227 = vsub.f32 %v3684, %v4220
        %v4228 = vsub.f32 %v3686, %v4221
        %v4229 = vsub.f32 %v3848, %v4222
        %v4230 = vsub.f32 %v3850, %v4223
        %v4231 = vsub.f32 %v4012, %v4224
        %v4232 = vsub.f32 %v4014, %v4225
        %v4233 = vsub.f32 %v4173, %v4226
        %v4234 = vmul.f32 %v4227, %v4227
        %v4235 = vmul.f32 %v4228, %v4228
        %v4236 = vmul.f32 %v4229, %v4229
        %v4237 = vmul.f32 %v4230, %v4230
        %v4238 = vmul.f32 %v4231, %v4231
        %v4239 = vmul.f32 %v4232, %v4232
        %v4240 = vmul.f32 %v4233, %v4233
        %v4241 = vrot.slane %v4234, 4
        %v4242 = vadd.f32 %v4234, %v4241
        %v4243 = vrot.slane %v4242, 2
        %v4244 = vadd.f32 %v4242, %v4243
        %v4245 = vrot.slane %v4244, 1
        %v4246 = vadd.f32 %v4244, %v4245
        %v4247 = vrot.slane %v4235, 4
        %v4248 = vadd.f32 %v4235, %v4247
        %v4249 = vrot.slane %v4248, 2
        %v4250 = vadd.f32 %v4248, %v4249
        %v4251 = vrot.slane %v4250, 1
        %v4252 = vadd.f32 %v4250, %v4251
        %v4253 = vrot.slane %v4236, 4
        %v4254 = vadd.f32 %v4236, %v4253
        %v4255 = vrot.slane %v4254, 2
        %v4256 = vadd.f32 %v4254, %v4255
        %v4257 = vrot.slane %v4256, 1
        %v4258 = vadd.f32 %v4256, %v4257
        %v4259 = vrot.slane %v4237, 4
        %v4260 = vadd.f32 %v4237, %v4259
        %v4261 = vrot.slane %v4260, 2
        %v4262 = vadd.f32 %v4260, %v4261
        %v4263 = vrot.slane %v4262, 1
        %v4264 = vadd.f32 %v4262, %v4263
        %v4265 = vrot.slane %v4238, 4
        %v4266 = vadd.f32 %v4238, %v4265
        %v4267 = vrot.slane %v4266, 2
        %v4268 = vadd.f32 %v4266, %v4267
        %v4269 = vrot.slane %v4268, 1
        %v4270 = vadd.f32 %v4268, %v4269
        %v4271 = vrot.slane %v4239, 4
        %v4272 = vadd.f32 %v4239, %v4271
        %v4273 = vrot.slane %v4272, 2
        %v4274 = vadd.f32 %v4272, %v4273
        %v4275 = vrot.slane %v4274, 1
        %v4276 = vadd.f32 %v4274, %v4275
        %v4277 = vrot.slane %v4240, 4
        %v4278 = vadd.f32 %v4240, %v4277
        %v4279 = vrot.slane %v4278, 2
        %v4280 = vadd.f32 %v4278, %v4279
        %v4281 = vrot.slane %v4280, 1
        %v4282 = vadd.f32 %v4280, %v4281
        %v4283 = vmul.f32 %v4246, %v1014
        %v4284 = vmul.f32 %v4252, %v1014
        %v4285 = vmul.f32 %v4258, %v1014
        %v4286 = vmul.f32 %v4264, %v1014
        %v4287 = vmul.f32 %v4270, %v1014
        %v4288 = vmul.f32 %v4276, %v1014
        %v4289 = vmul.f32 %v4282, %v1014
        %v4290 = vld [vmem:[#allocation11] sm:$0xff]
        %v4291 = vadd.f32 %v4283, 1e-05
        %v4292 = vadd.f32 %v4284, 1e-05
        %v4293 = vadd.f32 %v4285, 1e-05
        %v4294 = vadd.f32 %v4286, 1e-05
        %v4295 = vadd.f32 %v4287, 1e-05
        %v4296 = vadd.f32 %v4288, 1e-05
        %v4297 = vadd.f32 %v4289, 1e-05
        %v4298 = vrsqrt.pop %v4291
        %v4299 = vrsqrt.pop %v4292
        %v4300 = vrsqrt.pop %v4293
        %v4301 = vrsqrt.pop %v4294
        %v4302 = vrsqrt.pop %v4295
        %v4303 = vrsqrt.pop %v4296
        %v4304 = vrsqrt.pop %v4297
        %v4312 = vcombine.low %v4298, %v4299
        %v4313 = vcombine.low %v4300, %v4301
        %v4314 = vcombine.low %v4302, %v4303
        %v4316 = vunpack.c.l.s4 1966171168
        %v4317 = vunpack.c.0.s8 %v4316
        %v4318 = vlaneseq
        %v4319 = vshrl.u32 %v4318, 7
        %v4320 = vsub.s32 %v4317, %v4319
        %v4321 = vrot.slane %v4312, %v4320
        %v4323 = vunpack.c.l.s4 1966171168
        %v4324 = vunpack.c.0.s8 %v4323
        %v4325 = vlaneseq
        %v4326 = vshrl.u32 %v4325, 7
        %v4327 = vsub.s32 %v4324, %v4326
        %v4328 = vrot.slane %v4313, %v4327
        %v4330 = vunpack.c.l.s4 1966171168
        %v4331 = vunpack.c.0.s8 %v4330
        %v4332 = vlaneseq
        %v4333 = vshrl.u32 %v4332, 7
        %v4334 = vsub.s32 %v4331, %v4333
        %v4335 = vrot.slane %v4314, %v4334
        %v4337 = vunpack.c.l.s4 1966171168
        %v4338 = vunpack.c.0.s8 %v4337
        %v4339 = vlaneseq
        %v4340 = vshrl.u32 %v4339, 7
        %v4341 = vsub.s32 %v4338, %v4340
        %v4342 = vrot.slane %v4304, %v4341
        %v4343 = vcombine.low %v4321, %v4328
        %v4344 = vcombine.low %v4335, %v4342
        %v4346 = vunpack.c.l.s4 1966171168
        %v4347 = vunpack.c.0.s8 %v4346
        %v4348 = vlaneseq
        %v4349 = vshrl.u32 %v4348, 7
        %v4350 = vsub.s32 %v4347, %v4349
        %v4351 = vrot.slane %v4343, %v4350
        %v4353 = vunpack.c.l.s4 1966171168
        %v4354 = vunpack.c.0.s8 %v4353
        %v4355 = vlaneseq
        %v4356 = vshrl.u32 %v4355, 7
        %v4357 = vsub.s32 %v4354, %v4356
        %v4358 = vrot.slane %v4344, %v4357
        %v4359 = vcombine.low %v4351, %v4358
        %v4361 = vmul.f32 %v4290, %v4359
        %v4362 = vld [vmem:[#allocation13] sm:$0xff]
        %v4364 = vlaneseq
        %v4365 = vshrl.u32 %v4364, 7
        %v4366 = vsub.s32 0, %v4365
        %v4367 = vrot.slane %v4361, %v4366
        %v4368 = vlaneseq
        %v4369 = vshrl.u32 %v4368, 7
        %v4370 = vsub.s32 1, %v4369
        %v4371 = vrot.slane %v4361, %v4370
        %v4372 = vlaneseq
        %v4373 = vshrl.u32 %v4372, 7
        %v4374 = vsub.s32 2, %v4373
        %v4375 = vrot.slane %v4361, %v4374
        %v4376 = vlaneseq
        %v4377 = vshrl.u32 %v4376, 7
        %v4378 = vsub.s32 3, %v4377
        %v4379 = vrot.slane %v4361, %v4378
        %v4380 = vlaneseq
        %v4381 = vshrl.u32 %v4380, 7
        %v4382 = vsub.s32 4, %v4381
        %v4383 = vrot.slane %v4361, %v4382
        %v4384 = vlaneseq
        %v4385 = vshrl.u32 %v4384, 7
        %v4386 = vsub.s32 5, %v4385
        %v4387 = vrot.slane %v4361, %v4386
        %v4388 = vlaneseq
        %v4389 = vshrl.u32 %v4388, 7
        %v4390 = vsub.s32 6, %v4389
        %v4391 = vrot.slane %v4361, %v4390
        %v4399 = vmul.f32 %v4220, %v4367
        %v4400 = vmul.f32 %v4221, %v4371
        %v4401 = vmul.f32 %v4222, %v4375
        %v4402 = vmul.f32 %v4223, %v4379
        %v4403 = vmul.f32 %v4224, %v4383
        %v4404 = vmul.f32 %v4225, %v4387
        %v4405 = vmul.f32 %v4226, %v4391
        %v4413 = vcombine.low %v4399, %v4400
        %v4414 = vcombine.low %v4401, %v4402
        %v4415 = vcombine.low %v4403, %v4404
        %v4417 = vunpack.c.l.s4 1966171168
        %v4418 = vunpack.c.0.s8 %v4417
        %v4419 = vlaneseq
        %v4420 = vshrl.u32 %v4419, 7
        %v4421 = vsub.s32 %v4418, %v4420
        %v4422 = vrot.slane %v4413, %v4421
        %v4424 = vunpack.c.l.s4 1966171168
        %v4425 = vunpack.c.0.s8 %v4424
        %v4426 = vlaneseq
        %v4427 = vshrl.u32 %v4426, 7
        %v4428 = vsub.s32 %v4425, %v4427
        %v4429 = vrot.slane %v4414, %v4428
        %v4431 = vunpack.c.l.s4 1966171168
        %v4432 = vunpack.c.0.s8 %v4431
        %v4433 = vlaneseq
        %v4434 = vshrl.u32 %v4433, 7
        %v4435 = vsub.s32 %v4432, %v4434
        %v4436 = vrot.slane %v4415, %v4435
        %v4438 = vunpack.c.l.s4 1966171168
        %v4439 = vunpack.c.0.s8 %v4438
        %v4440 = vlaneseq
        %v4441 = vshrl.u32 %v4440, 7
        %v4442 = vsub.s32 %v4439, %v4441
        %v4443 = vrot.slane %v4405, %v4442
        %v4444 = vcombine.low %v4422, %v4429
        %v4445 = vcombine.low %v4436, %v4443
        %v4447 = vunpack.c.l.s4 1966171168
        %v4448 = vunpack.c.0.s8 %v4447
        %v4449 = vlaneseq
        %v4450 = vshrl.u32 %v4449, 7
        %v4451 = vsub.s32 %v4448, %v4450
        %v4452 = vrot.slane %v4444, %v4451
        %v4454 = vunpack.c.l.s4 1966171168
        %v4455 = vunpack.c.0.s8 %v4454
        %v4456 = vlaneseq
        %v4457 = vshrl.u32 %v4456, 7
        %v4458 = vsub.s32 %v4455, %v4457
        %v4459 = vrot.slane %v4445, %v4458
        %v4460 = vcombine.low %v4452, %v4459
        %v4462 = vsub.f32 %v4362, %v4460
        %v4463 = vmul.f32 %v3684, %v4367
        %v4464 = vmul.f32 %v3686, %v4371
        %v4465 = vmul.f32 %v3848, %v4375
        %v4466 = vmul.f32 %v3850, %v4379
        %v4467 = vmul.f32 %v4012, %v4383
        %v4468 = vmul.f32 %v4014, %v4387
        %v4469 = vmul.f32 %v4173, %v4391
        %v4471 = vlaneseq
        %v4472 = vshrl.u32 %v4471, 7
        %v4473 = vsub.s32 0, %v4472
        %v4474 = vrot.slane %v4462, %v4473
        %v4475 = vlaneseq
        %v4476 = vshrl.u32 %v4475, 7
        %v4477 = vsub.s32 1, %v4476
        %v4478 = vrot.slane %v4462, %v4477
        %v4479 = vlaneseq
        %v4480 = vshrl.u32 %v4479, 7
        %v4481 = vsub.s32 2, %v4480
        %v4482 = vrot.slane %v4462, %v4481
        %v4483 = vlaneseq
        %v4484 = vshrl.u32 %v4483, 7
        %v4485 = vsub.s32 3, %v4484
        %v4486 = vrot.slane %v4462, %v4485
        %v4487 = vlaneseq
        %v4488 = vshrl.u32 %v4487, 7
        %v4489 = vsub.s32 4, %v4488
        %v4490 = vrot.slane %v4462, %v4489
        %v4491 = vlaneseq
        %v4492 = vshrl.u32 %v4491, 7
        %v4493 = vsub.s32 5, %v4492
        %v4494 = vrot.slane %v4462, %v4493
        %v4495 = vlaneseq
        %v4496 = vshrl.u32 %v4495, 7
        %v4497 = vsub.s32 6, %v4496
        %v4498 = vrot.slane %v4462, %v4497
        %v4506 = vadd.f32 %v4463, %v4474
        %v4507 = vadd.f32 %v4464, %v4478
        %v4508 = vadd.f32 %v4465, %v4482
        %v4509 = vadd.f32 %v4466, %v4486
        %v4510 = vadd.f32 %v4467, %v4490
        %v4511 = vadd.f32 %v4468, %v4494
        %v4512 = vadd.f32 %v4469, %v4498
        %v4513 = vmax.f32 %v4506, 0.0
        %v4514 = vmax.f32 %v4507, 0.0
        %v4515 = vmax.f32 %v4508, 0.0
        %v4516 = vmax.f32 %v4509, 0.0
        %v4517 = vmax.f32 %v4510, 0.0
        %v4518 = vmax.f32 %v4511, 0.0
        %v4519 = vmax.f32 %v4512, 0.0
        %v4520 = vpack.c.bf16 %v4513, %v4513
        %v4521 = vpack.c.bf16 %v4514, %v4514
        %v4522 = vpack.c.bf16 %v4515, %v4515
        %v4523 = vpack.c.bf16 %v4516, %v4516
        %v4524 = vpack.c.bf16 %v4517, %v4517
        %v4525 = vpack.c.bf16 %v4518, %v4518
        %v4526 = vpack.c.bf16 %v4519, %v4519
        %v4527 = vld [vmem:[#allocation14] sm:$0xf]
        %v4528 = vld [vmem:[#allocation14 + $0x4] sm:$0xf]
        %v4529 = vld [vmem:[#allocation14 + $0x8] sm:$0xf]
        %v4530 = vld [vmem:[#allocation14 + $0xc] sm:$0xf]
        %v4531 = vld [vmem:[#allocation14 + $0x10] sm:$0xf]
        %v4532 = vld [vmem:[#allocation14 + $0x14] sm:$0xf]
        %v4533 = vld [vmem:[#allocation14 + $0x18] sm:$0xf]
        %v4534 = vld [vmem:[#allocation14 + $0x1c] sm:$0xf]
        %v4535 = vld [vmem:[#allocation14 + $0x20] sm:$0xf]
        %v4536 = vld [vmem:[#allocation14 + $0x24] sm:$0xf]
        %v4537 = vld [vmem:[#allocation14 + $0x28] sm:$0xf]
        %v4538 = vld [vmem:[#allocation14 + $0x2c] sm:$0xf]
        %v4539 = vld [vmem:[#allocation14 + $0x30] sm:$0xf]
        %v4540 = vld [vmem:[#allocation14 + $0x34] sm:$0xf]
        %v4541 = vld [vmem:[#allocation14 + $0x38] sm:$0xf]
        %v4542 = vld [vmem:[#allocation14 + $0x3c] sm:$0xf]
        %v4543 = vld [vmem:[#allocation14 + $0x40] sm:$0xf]
        %v4544 = vld [vmem:[#allocation14 + $0x44] sm:$0xf]
        %v4545 = vld [vmem:[#allocation14 + $0x48] sm:$0xf]
        %v4546 = vld [vmem:[#allocation14 + $0x4c] sm:$0xf]
        %v4547 = vld [vmem:[#allocation14 + $0x50] sm:$0xf]
        %v4548 = vld [vmem:[#allocation14 + $0x54] sm:$0xf]
        %v4549 = vld [vmem:[#allocation14 + $0x58] sm:$0xf]
        %v4550 = vld [vmem:[#allocation14 + $0x5c] sm:$0xf]
        %v4551 = vld [vmem:[#allocation14 + $0x60] sm:$0xf]
        %v4552 = vld [vmem:[#allocation14 + $0x64] sm:$0xf]
        %v4553 = vld [vmem:[#allocation14 + $0x68] sm:$0xf]
        %v4554 = vld [vmem:[#allocation14 + $0x6c] sm:$0xf]
        %v4555 = vld [vmem:[#allocation14 + $0x70] sm:$0xf]
        %v4556 = vld [vmem:[#allocation14 + $0x74] sm:$0xf]
        %v4557 = vld [vmem:[#allocation14 + $0x78] sm:$0xf]
        %v4558 = vld [vmem:[#allocation14 + $0x7c] sm:$0xf]
        %v4559 = vld [vmem:[#allocation14 + $0x80] sm:$0xf]
        %v4560 = vld [vmem:[#allocation14 + $0x84] sm:$0xf]
        %v4561 = vld [vmem:[#allocation14 + $0x88] sm:$0xf]
        %v4562 = vld [vmem:[#allocation14 + $0x8c] sm:$0xf]
        %v4563 = vld [vmem:[#allocation14 + $0x90] sm:$0xf]
        %v4564 = vld [vmem:[#allocation14 + $0x94] sm:$0xf]
        %v4565 = vld [vmem:[#allocation14 + $0x98] sm:$0xf]
        %v4566 = vld [vmem:[#allocation14 + $0x9c] sm:$0xf]
        %v4567 = vld [vmem:[#allocation14 + $0xa0] sm:$0xf]
        %v4568 = vld [vmem:[#allocation14 + $0xa4] sm:$0xf]
        %v4569 = vld [vmem:[#allocation14 + $0xa8] sm:$0xf]
        %v4570 = vld [vmem:[#allocation14 + $0xac] sm:$0xf]
        %v4571 = vld [vmem:[#allocation14 + $0xb0] sm:$0xf]
        %v4572 = vld [vmem:[#allocation14 + $0xb4] sm:$0xf]
        %v4573 = vld [vmem:[#allocation14 + $0xb8] sm:$0xf]
        %v4574 = vld [vmem:[#allocation14 + $0xbc] sm:$0xf]
        %v4575 = vld [vmem:[#allocation14 + $0xc0] sm:$0xf]
        %v4576 = vld [vmem:[#allocation14 + $0xc4] sm:$0xf]
        %v4577 = vld [vmem:[#allocation14 + $0xc8] sm:$0xf]
        %v4578 = vld [vmem:[#allocation14 + $0xcc] sm:$0xf]
        %v4579 = vld [vmem:[#allocation14 + $0xd0] sm:$0xf]
        %v4580 = vld [vmem:[#allocation14 + $0xd4] sm:$0xf]
        %v4581 = vld [vmem:[#allocation14 + $0xd8] sm:$0xf]
        %v4582 = vld [vmem:[#allocation14 + $0xdc] sm:$0xf]
        %v4583 = vld [vmem:[#allocation14 + $0xe0] sm:$0xf]
        %v4584 = vld [vmem:[#allocation14 + $0xe4] sm:$0xf]
        %v4585 = vld [vmem:[#allocation14 + $0xe8] sm:$0xf]
        %v4586 = vld [vmem:[#allocation14 + $0xec] sm:$0xf]
        %v4587 = vld [vmem:[#allocation14 + $0xf0] sm:$0xf]
        %v4588 = vld [vmem:[#allocation14 + $0xf4] sm:$0xf]
        %v4589 = vld [vmem:[#allocation14 + $0xf8] sm:$0xf]
        %v4590 = vld [vmem:[#allocation14 + $0xfc] sm:$0xf]
        %v4591 = vld [vmem:[#allocation14 + $0x100] sm:$0xf]
        %v4592 = vld [vmem:[#allocation14 + $0x104] sm:$0xf]
        %v4593 = vld [vmem:[#allocation14 + $0x108] sm:$0xf]
        %v4594 = vld [vmem:[#allocation14 + $0x10c] sm:$0xf]
        %v4595 = vld [vmem:[#allocation14 + $0x110] sm:$0xf]
        %v4596 = vld [vmem:[#allocation14 + $0x114] sm:$0xf]
        %v4597 = vld [vmem:[#allocation14 + $0x118] sm:$0xf]
        %v4598 = vld [vmem:[#allocation14 + $0x11c] sm:$0xf]
        %v4599 = vld [vmem:[#allocation14 + $0x120] sm:$0xf]
        %v4600 = vld [vmem:[#allocation14 + $0x124] sm:$0xf]
        %v4601 = vld [vmem:[#allocation14 + $0x128] sm:$0xf]
        %v4602 = vld [vmem:[#allocation14 + $0x12c] sm:$0xf]
        %v4603 = vld [vmem:[#allocation14 + $0x130] sm:$0xf]
        %v4604 = vld [vmem:[#allocation14 + $0x134] sm:$0xf]
        %v4605 = vld [vmem:[#allocation14 + $0x138] sm:$0xf]
        %v4606 = vld [vmem:[#allocation14 + $0x13c] sm:$0xf]
        %v4607 = vld [vmem:[#allocation14 + $0x140] sm:$0xf]
        %v4608 = vld [vmem:[#allocation14 + $0x144] sm:$0xf]
        %v4609 = vld [vmem:[#allocation14 + $0x148] sm:$0xf]
        %v4610 = vld [vmem:[#allocation14 + $0x14c] sm:$0xf]
        %v4611 = vld [vmem:[#allocation14 + $0x150] sm:$0xf]
        %v4612 = vld [vmem:[#allocation14 + $0x154] sm:$0xf]
        %v4613 = vld [vmem:[#allocation14 + $0x158] sm:$0xf]
        %v4614 = vld [vmem:[#allocation14 + $0x15c] sm:$0xf]
        %v4615 = vld [vmem:[#allocation14 + $0x160] sm:$0xf]
        %v4616 = vld [vmem:[#allocation14 + $0x164] sm:$0xf]
        %v4617 = vld [vmem:[#allocation14 + $0x168] sm:$0xf]
        %v4618 = vld [vmem:[#allocation14 + $0x16c] sm:$0xf]
        %v4619 = vld [vmem:[#allocation14 + $0x170] sm:$0xf]
        %v4620 = vld [vmem:[#allocation14 + $0x174] sm:$0xf]
        %v4621 = vld [vmem:[#allocation14 + $0x178] sm:$0xf]
        %v4622 = vld [vmem:[#allocation14 + $0x17c] sm:$0xf]
        %v4623 = vld [vmem:[#allocation14 + $0x180] sm:$0xf]
        %v4624 = vld [vmem:[#allocation14 + $0x184] sm:$0xf]
        %v4625 = vld [vmem:[#allocation14 + $0x188] sm:$0xf]
        %v4626 = vld [vmem:[#allocation14 + $0x18c] sm:$0xf]
        %v4627 = vld [vmem:[#allocation16] sm:$0x1]
        %v4629 = vlaneseq
        %v4630 = vshrl.u32 %v4629, 7
        %v4631 = vsub.s32 0, %v4630
        %v4632 = vrot.slane %v4627, %v4631
        %v4734 = vunpack.c.l.b16 %v4527
        %v4735 = vunpack.c.l.b16 %v4528
        %v4736 = vunpack.c.l.b16 %v4529
        %v4737 = vunpack.c.l.b16 %v4530
        %v4738 = vunpack.c.l.b16 %v4531
        %v4739 = vunpack.c.l.b16 %v4532
        %v4740 = vunpack.c.l.b16 %v4533
        %v4741 = vunpack.c.l.b16 %v4534
        %v4742 = vunpack.c.l.b16 %v4535
        %v4743 = vunpack.c.l.b16 %v4536
        %v4744 = vunpack.c.l.b16 %v4537
        %v4745 = vunpack.c.l.b16 %v4538
        %v4746 = vunpack.c.l.b16 %v4539
        %v4747 = vunpack.c.l.b16 %v4540
        %v4748 = vunpack.c.l.b16 %v4541
        %v4749 = vunpack.c.l.b16 %v4542
        %v4750 = vunpack.c.l.b16 %v4543
        %v4751 = vunpack.c.l.b16 %v4544
        %v4752 = vunpack.c.l.b16 %v4545
        %v4753 = vunpack.c.l.b16 %v4546
        %v4754 = vunpack.c.l.b16 %v4547
        %v4755 = vunpack.c.l.b16 %v4548
        %v4756 = vunpack.c.l.b16 %v4549
        %v4757 = vunpack.c.l.b16 %v4550
        %v4758 = vunpack.c.l.b16 %v4551
        %v4759 = vunpack.c.l.b16 %v4552
        %v4760 = vunpack.c.l.b16 %v4553
        %v4761 = vunpack.c.l.b16 %v4554
        %v4762 = vunpack.c.l.b16 %v4555
        %v4763 = vunpack.c.l.b16 %v4556
        %v4764 = vunpack.c.l.b16 %v4557
        %v4765 = vunpack.c.l.b16 %v4558
        %v4766 = vunpack.c.l.b16 %v4559
        %v4767 = vunpack.c.l.b16 %v4560
        %v4768 = vunpack.c.l.b16 %v4561
        %v4769 = vunpack.c.l.b16 %v4562
        %v4770 = vunpack.c.l.b16 %v4563
        %v4771 = vunpack.c.l.b16 %v4564
        %v4772 = vunpack.c.l.b16 %v4565
        %v4773 = vunpack.c.l.b16 %v4566
        %v4774 = vunpack.c.l.b16 %v4567
        %v4775 = vunpack.c.l.b16 %v4568
        %v4776 = vunpack.c.l.b16 %v4569
        %v4777 = vunpack.c.l.b16 %v4570
        %v4778 = vunpack.c.l.b16 %v4571
        %v4779 = vunpack.c.l.b16 %v4572
        %v4780 = vunpack.c.l.b16 %v4573
        %v4781 = vunpack.c.l.b16 %v4574
        %v4782 = vunpack.c.l.b16 %v4575
        %v4783 = vunpack.c.l.b16 %v4576
        %v4784 = vunpack.c.l.b16 %v4577
        %v4785 = vunpack.c.l.b16 %v4578
        %v4786 = vunpack.c.l.b16 %v4579
        %v4787 = vunpack.c.l.b16 %v4580
        %v4788 = vunpack.c.l.b16 %v4581
        %v4789 = vunpack.c.l.b16 %v4582
        %v4790 = vunpack.c.l.b16 %v4583
        %v4791 = vunpack.c.l.b16 %v4584
        %v4792 = vunpack.c.l.b16 %v4585
        %v4793 = vunpack.c.l.b16 %v4586
        %v4794 = vunpack.c.l.b16 %v4587
        %v4795 = vunpack.c.l.b16 %v4588
        %v4796 = vunpack.c.l.b16 %v4589
        %v4797 = vunpack.c.l.b16 %v4590
        %v4798 = vunpack.c.l.b16 %v4591
        %v4799 = vunpack.c.l.b16 %v4592
        %v4800 = vunpack.c.l.b16 %v4593
        %v4801 = vunpack.c.l.b16 %v4594
        %v4802 = vunpack.c.l.b16 %v4595
        %v4803 = vunpack.c.l.b16 %v4596
        %v4804 = vunpack.c.l.b16 %v4597
        %v4805 = vunpack.c.l.b16 %v4598
        %v4806 = vunpack.c.l.b16 %v4599
        %v4807 = vunpack.c.l.b16 %v4600
        %v4808 = vunpack.c.l.b16 %v4601
        %v4809 = vunpack.c.l.b16 %v4602
        %v4810 = vunpack.c.l.b16 %v4603
        %v4811 = vunpack.c.l.b16 %v4604
        %v4812 = vunpack.c.l.b16 %v4605
        %v4813 = vunpack.c.l.b16 %v4606
        %v4814 = vunpack.c.l.b16 %v4607
        %v4815 = vunpack.c.l.b16 %v4608
        %v4816 = vunpack.c.l.b16 %v4609
        %v4817 = vunpack.c.l.b16 %v4610
        %v4818 = vunpack.c.l.b16 %v4611
        %v4819 = vunpack.c.l.b16 %v4612
        %v4820 = vunpack.c.l.b16 %v4613
        %v4821 = vunpack.c.l.b16 %v4614
        %v4822 = vunpack.c.l.b16 %v4615
        %v4823 = vunpack.c.l.b16 %v4616
        %v4824 = vunpack.c.l.b16 %v4617
        %v4825 = vunpack.c.l.b16 %v4618
        %v4826 = vunpack.c.l.b16 %v4619
        %v4827 = vunpack.c.l.b16 %v4620
        %v4828 = vunpack.c.l.b16 %v4621
        %v4829 = vunpack.c.l.b16 %v4622
        %v4830 = vunpack.c.l.b16 %v4623
        %v4831 = vunpack.c.l.b16 %v4624
        %v4832 = vunpack.c.l.b16 %v4625
        %v4833 = vunpack.c.l.b16 %v4626
        %v4834 = vpack.c.b16 %v4735, %v4734
        %v4835 = vpack.c.b16 %v4737, %v4736
        %v4836 = vpack.c.b16 %v4739, %v4738
        %v4837 = vpack.c.b16 %v4741, %v4740
        %v4838 = vpack.c.b16 %v4743, %v4742
        %v4839 = vpack.c.b16 %v4745, %v4744
        %v4840 = vpack.c.b16 %v4747, %v4746
        %v4841 = vpack.c.b16 %v4749, %v4748
        %v4842 = vpack.c.b16 %v4751, %v4750
        %v4843 = vpack.c.b16 %v4753, %v4752
        %v4844 = vpack.c.b16 %v4755, %v4754
        %v4845 = vpack.c.b16 %v4757, %v4756
        %v4846 = vpack.c.b16 %v4759, %v4758
        %v4847 = vpack.c.b16 %v4761, %v4760
        %v4848 = vpack.c.b16 %v4763, %v4762
        %v4849 = vpack.c.b16 %v4765, %v4764
        %v4850 = vpack.c.b16 %v4767, %v4766
        %v4851 = vpack.c.b16 %v4769, %v4768
        %v4852 = vpack.c.b16 %v4771, %v4770
        %v4853 = vpack.c.b16 %v4773, %v4772
        %v4854 = vpack.c.b16 %v4775, %v4774
        %v4855 = vpack.c.b16 %v4777, %v4776
        %v4856 = vpack.c.b16 %v4779, %v4778
        %v4857 = vpack.c.b16 %v4781, %v4780
        %v4858 = vpack.c.b16 %v4783, %v4782
        %v4859 = vpack.c.b16 %v4785, %v4784
        %v4860 = vpack.c.b16 %v4787, %v4786
        %v4861 = vpack.c.b16 %v4789, %v4788
        %v4862 = vpack.c.b16 %v4791, %v4790
        %v4863 = vpack.c.b16 %v4793, %v4792
        %v4864 = vpack.c.b16 %v4795, %v4794
        %v4865 = vpack.c.b16 %v4797, %v4796
        %v4866 = vpack.c.b16 %v4799, %v4798
        %v4867 = vpack.c.b16 %v4801, %v4800
        %v4868 = vpack.c.b16 %v4803, %v4802
        %v4869 = vpack.c.b16 %v4805, %v4804
        %v4870 = vpack.c.b16 %v4807, %v4806
        %v4871 = vpack.c.b16 %v4809, %v4808
        %v4872 = vpack.c.b16 %v4811, %v4810
        %v4873 = vpack.c.b16 %v4813, %v4812
        %v4874 = vpack.c.b16 %v4815, %v4814
        %v4875 = vpack.c.b16 %v4817, %v4816
        %v4876 = vpack.c.b16 %v4819, %v4818
        %v4877 = vpack.c.b16 %v4821, %v4820
        %v4878 = vpack.c.b16 %v4823, %v4822
        %v4879 = vpack.c.b16 %v4825, %v4824
        %v4880 = vpack.c.b16 %v4827, %v4826
        %v4881 = vpack.c.b16 %v4829, %v4828
        %v4882 = vpack.c.b16 %v4831, %v4830
        %v4883 = vpack.c.b16 %v4833, %v4832
        %v4935 = vsel %vm3522, %v4526, 0
        %4937 = vmatprep.subr.bf16.mxu0 0
        %4938 = vmatpush1.bf16.msra.mxu0 %v4834
        %4939 = vmatprep.subr.bf16.mxu0 0
        %4940 = vmatpush1.bf16.msra.mxu0 %v4835
        %4941 = vmatprep.subr.bf16.mxu0 0
        %4942 = vmatpush1.bf16.msra.mxu0 %v4836
        %4943 = vmatprep.subr.bf16.mxu0 0
        %4944 = vmatpush1.bf16.msra.mxu0 %v4837
        %4945 = vmatprep.subr.bf16.mxu0 0
        %4946 = vmatpush1.bf16.msra.mxu0 %v4838
        %4947 = vmatprep.subr.bf16.mxu0 0
        %4948 = vmatpush1.bf16.msra.mxu0 %v4839
        %4949 = vmatprep.subr.bf16.mxu0 0
        %4950 = vmatpush1.bf16.msra.mxu0 %v4840
        %4951 = vmatprep.subr.bf16.mxu0 0
        %4952 = vmatpush1.bf16.msra.mxu0 %v4841
        %4953 = vmatprep.subr.bf16.mxu0 0
        %4954 = vmatpush1.bf16.msra.mxu0 %v4842
        %4955 = vmatprep.subr.bf16.mxu0 0
        %4956 = vmatpush1.bf16.msra.mxu0 %v4843
        %4957 = vmatprep.subr.bf16.mxu0 0
        %4958 = vmatpush1.bf16.msra.mxu0 %v4844
        %4959 = vmatprep.subr.bf16.mxu0 0
        %4960 = vmatpush1.bf16.msra.mxu0 %v4845
        %4961 = vmatprep.subr.bf16.mxu0 0
        %4962 = vmatpush1.bf16.msra.mxu0 %v4846
        %4963 = vmatprep.subr.bf16.mxu0 0
        %4964 = vmatpush1.bf16.msra.mxu0 %v4847
        %4965 = vmatprep.subr.bf16.mxu0 0
        %4966 = vmatpush1.bf16.msra.mxu0 %v4848
        %4967 = vmatprep.subr.bf16.mxu0 0
        %4968 = vmatpush1.bf16.msra.mxu0 %v4849
        %4969 = vmatprep.mubr.bf16.mxu0 %v4521
        %4970 = vmatmul.mubr.bf16.gmra.mrb[0].mxu0 %v4520
        %v4971 = vpop.f32.mrb[0].mxu0
        %v4972 = vadd.f32 %v4632, %v4971
        %v4973 = vpop.f32.mrb[0].mxu0
        %v4974 = vpop.f32.mrb[0].mxu0
        %v4975 = vpop.f32.mrb[0].mxu0
        %4976 = vdwg.mxu0
        %4977 = vmatprep.subr.bf16.mxu0 0
        %4978 = vmatpush1.bf16.msra.mxu0 %v4850
        %4979 = vmatprep.subr.bf16.mxu0 0
        %4980 = vmatpush1.bf16.msra.mxu0 %v4851
        %4981 = vmatprep.subr.bf16.mxu0 0
        %4982 = vmatpush1.bf16.msra.mxu0 %v4852
        %4983 = vmatprep.subr.bf16.mxu0 0
        %4984 = vmatpush1.bf16.msra.mxu0 %v4853
        %4985 = vmatprep.subr.bf16.mxu0 0
        %4986 = vmatpush1.bf16.msra.mxu0 %v4854
        %4987 = vmatprep.subr.bf16.mxu0 0
        %4988 = vmatpush1.bf16.msra.mxu0 %v4855
        %4989 = vmatprep.subr.bf16.mxu0 0
        %4990 = vmatpush1.bf16.msra.mxu0 %v4856
        %4991 = vmatprep.subr.bf16.mxu0 0
        %4992 = vmatpush1.bf16.msra.mxu0 %v4857
        %4993 = vmatprep.subr.bf16.mxu0 0
        %4994 = vmatpush1.bf16.msra.mxu0 %v4858
        %4995 = vmatprep.subr.bf16.mxu0 0
        %4996 = vmatpush1.bf16.msra.mxu0 %v4859
        %4997 = vmatprep.subr.bf16.mxu0 0
        %4998 = vmatpush1.bf16.msra.mxu0 %v4860
        %4999 = vmatprep.subr.bf16.mxu0 0
        %5000 = vmatpush1.bf16.msra.mxu0 %v4861
        %5001 = vmatprep.subr.bf16.mxu0 0
        %5002 = vmatpush1.bf16.msra.mxu0 %v4862
        %5003 = vmatprep.subr.bf16.mxu0 0
        %5004 = vmatpush1.bf16.msra.mxu0 %v4863
        %5005 = vmatprep.subr.bf16.mxu0 0
        %5006 = vmatpush1.bf16.msra.mxu0 %v4864
        %5007 = vmatprep.subr.bf16.mxu0 0
        %5008 = vmatpush1.bf16.msra.mxu0 %v4865
        %5009 = vmatprep.mubr.bf16.mxu0 %v4523
        %5010 = vmatmul.mubr.bf16.gmra.mrb[0].mxu0 %v4522
        %v5011 = vpop.f32.mrb[0].mxu0
        %v5012 = vadd.f32 %v4972, %v5011
        %v5013 = vpop.f32.mrb[0].mxu0
        %v5014 = vpop.f32.mrb[0].mxu0
        %v5015 = vpop.f32.mrb[0].mxu0
        %5016 = vdwg.mxu0
        %5017 = vmatprep.subr.bf16.mxu0 0
        %5018 = vmatpush1.bf16.msra.mxu0 %v4866
        %5019 = vmatprep.subr.bf16.mxu0 0
        %5020 = vmatpush1.bf16.msra.mxu0 %v4867
        %5021 = vmatprep.subr.bf16.mxu0 0
        %5022 = vmatpush1.bf16.msra.mxu0 %v4868
        %5023 = vmatprep.subr.bf16.mxu0 0
        %5024 = vmatpush1.bf16.msra.mxu0 %v4869
        %5025 = vmatprep.subr.bf16.mxu0 0
        %5026 = vmatpush1.bf16.msra.mxu0 %v4870
        %5027 = vmatprep.subr.bf16.mxu0 0
        %5028 = vmatpush1.bf16.msra.mxu0 %v4871
        %5029 = vmatprep.subr.bf16.mxu0 0
        %5030 = vmatpush1.bf16.msra.mxu0 %v4872
        %5031 = vmatprep.subr.bf16.mxu0 0
        %5032 = vmatpush1.bf16.msra.mxu0 %v4873
        %5033 = vmatprep.subr.bf16.mxu0 0
        %5034 = vmatpush1.bf16.msra.mxu0 %v4874
        %5035 = vmatprep.subr.bf16.mxu0 0
        %5036 = vmatpush1.bf16.msra.mxu0 %v4875
        %5037 = vmatprep.subr.bf16.mxu0 0
        %5038 = vmatpush1.bf16.msra.mxu0 %v4876
        %5039 = vmatprep.subr.bf16.mxu0 0
        %5040 = vmatpush1.bf16.msra.mxu0 %v4877
        %5041 = vmatprep.subr.bf16.mxu0 0
        %5042 = vmatpush1.bf16.msra.mxu0 %v4878
        %5043 = vmatprep.subr.bf16.mxu0 0
        %5044 = vmatpush1.bf16.msra.mxu0 %v4879
        %5045 = vmatprep.subr.bf16.mxu0 0
        %5046 = vmatpush1.bf16.msra.mxu0 %v4880
        %5047 = vmatprep.subr.bf16.mxu0 0
        %5048 = vmatpush1.bf16.msra.mxu0 %v4881
        %5049 = vmatprep.mubr.bf16.mxu0 %v4525
        %5050 = vmatmul.mubr.bf16.gmra.mrb[0].mxu0 %v4524
        %v5051 = vpop.f32.mrb[0].mxu0
        %v5052 = vadd.f32 %v5012, %v5051
        %v5053 = vpop.f32.mrb[0].mxu0
        %v5054 = vpop.f32.mrb[0].mxu0
        %v5055 = vpop.f32.mrb[0].mxu0
        %5056 = vdwg.mxu0
        %5057 = vmatprep.subr.bf16.mxu0 0
        %5058 = vmatpush1.bf16.msra.mxu0 %v4882
        %5059 = vmatprep.subr.bf16.mxu0 0
        %5060 = vmatpush1.bf16.msra.mxu0 %v4883
        %5061 = vmatprep.subr.bf16.mxu0 0
        %5062 = vmatpush1.bf16.msra.mxu0 0
        %5063 = vmatprep.subr.bf16.mxu0 0
        %5064 = vmatpush1.bf16.msra.mxu0 0
        %5065 = vmatprep.subr.bf16.mxu0 0
        %5066 = vmatpush1.bf16.msra.mxu0 0
        %5067 = vmatprep.subr.bf16.mxu0 0
        %5068 = vmatpush1.bf16.msra.mxu0 0
        %5069 = vmatprep.subr.bf16.mxu0 0
        %5070 = vmatpush1.bf16.msra.mxu0 0
        %5071 = vmatprep.subr.bf16.mxu0 0
        %5072 = vmatpush1.bf16.msra.mxu0 0
        %5073 = vmatprep.subr.bf16.mxu0 0
        %5074 = vmatpush1.bf16.msra.mxu0 0
        %5075 = vmatprep.subr.bf16.mxu0 0
        %5076 = vmatpush1.bf16.msra.mxu0 0
        %5077 = vmatprep.subr.bf16.mxu0 0
        %5078 = vmatpush1.bf16.msra.mxu0 0
        %5079 = vmatprep.subr.bf16.mxu0 0
        %5080 = vmatpush1.bf16.msra.mxu0 0
        %5081 = vmatprep.subr.bf16.mxu0 0
        %5082 = vmatpush1.bf16.msra.mxu0 0
        %5083 = vmatprep.subr.bf16.mxu0 0
        %5084 = vmatpush1.bf16.msra.mxu0 0
        %5085 = vmatprep.subr.bf16.mxu0 0
        %5086 = vmatpush1.bf16.msra.mxu0 0
        %5087 = vmatprep.subr.bf16.mxu0 0
        %5088 = vmatpush1.bf16.msra.mxu0 0
        %5089 = vmatprep.mubr.bf16.mxu0 0
        %5090 = vmatmul.mubr.bf16.gmra.mrb[0].mxu0 %v4935
        %v5091 = vpop.f32.mrb[0].mxu0
        %v5092 = vadd.f32 %v5052, %v5091
        %v5093 = vpop.f32.mrb[0].mxu0
        %v5094 = vpop.f32.mrb[0].mxu0
        %v5095 = vpop.f32.mrb[0].mxu0
        %5096 = vdwg.mxu0
        %5097 = vst [vmem:[%s453] sm:$0xff] %v5092
        %s5098 = sand.u32 %s232, 1
        %s5099 = scalar_lea.sflag [#allocation4], %s5098
        %s5100 = sand.u32 %s232, 1
        %s5101 = smul.addr %s5100, 8
        %s5102 = scalar_lea.vmem [#allocation17], %s5101
        // Predicated region
        $region93: #{tpu_custom_call.1} parent=55 // pred_check
          %p5103 = pneg %p242
        $region94: #{tpu_custom_call.1} parent=55 // pred_check_branch
          %5105 = sbr.rel (%p5103) target = $region96
        $region95: #{tpu_custom_call.1} parent=55 // pred_region
          %s5107 = ssub.s32 128, 128
          %5108 = vsyncadd %s5099, %s5107
          %s5109 = smul.addr %s30, 128
          %s5110 = scalar_lea.hbm %s9, %s5109
          %s5112 = sshll.u32 %s5102, 4
          %s5113 = int_to_ptr.vmem [resolvable:$true] %s5112
          %5115 = dma.vmem_to_hbm [thread:$0]  %s5113, 128, %s5110, %s5099
        $region96: #{tpu_custom_call.1} parent=55 // pred_fallthru
          _
      $region56: #{tpu_custom_call.1} parent=5 // pred_fallthru
        _
      %p5116 = scmp.le.s32.totalorder 2, %s25
      // Predicated region
      $region97: #{tpu_custom_call.1} parent=5 // pred_check
        %p5117 = pneg %p5116
      $region98: #{tpu_custom_call.1} parent=5 // pred_check_branch
        %5119 = sbr.rel (%p5117) target = $region100
      $region99: #{tpu_custom_call.1} parent=5 // pred_region
        %s5120 = ssub.s32 %s25, 2
        // Predicated region
        $region101: #{tpu_custom_call.1} parent=99 // pred_check
          %p5121 = pneg %p248
        $region102: #{tpu_custom_call.1} parent=99 // pred_check_branch
          %5123 = sbr.rel (%p5121) target = $region104
        $region103: #{tpu_custom_call.1} parent=99 // pred_region
          %s5124 = sand.u32 %s233, 1
          %s5125 = scalar_lea.sflag [#allocation4], %s5124
          %s5126 = sand.u32 %s233, 1
          %s5127 = smul.addr %s5126, 8
          %s5128 = scalar_lea.vmem [#allocation17], %s5127
          %5129 = dma.done %s5125, 128
        $region104: #{tpu_custom_call.1} parent=99 // pred_fallthru
          _
      $region100: #{tpu_custom_call.1} parent=5 // pred_fallthru
        _
    $region6: #{tpu_custom_call.1} parent=1 // loop_footer
      %s29 = sadd.s32 1, %s25
    $region7: #{tpu_custom_call.1} parent=1 // loop_footer_branch
      %24 = sbr.rel target = $region3
    $region8: #{tpu_custom_call.1} parent=1 // loop_exit
      _
    %5130 = vsyncpa [#allocation3], 1
    %s5131 = scalar_lea.sflag [#allocation3], 1
    %5132 = vsyncpa %s5131, 1
    %5133 = vsyncpa [#allocation6], 1
    %5134 = vsyncpa [#allocation9], 1
    %5135 = vsyncpa [#allocation12], 1
    %5136 = vsyncpa [#allocation15], 1
    %5137 = vsyncpa [#allocation4], 1
    %s5138 = scalar_lea.sflag [#allocation4], 1
    %5139 = vsyncpa %s5138, 1

</llo_original>
